<compile_context>
chip_gen: v5e
topology: v5e:2x2
jax: 0.10.0
libtpu: 0.0.40
codegen_flags: <defaults>
</compile_context>

<pallas_src>
import jax
import jax.numpy as jnp
from jax import lax
from jax.experimental import pallas as pl
from jax.experimental.pallas import tpu as pltpu

HARDTANH_MIN = 0.0
HARDTANH_MAX = 448.0


def _basic_block_kernel(x_ref, w1_ref, w2_ref, relu1_ref, relu2_ref,
                        xpad, r1pad, p1, p2):
    """Fused conv3x3+Hardtanh -> conv3x3+Hardtanh for one image.

    x_ref     : (1, H, W, Cin)         current image (VMEM block)
    w1_ref    : (9*Cin, Cout)          conv1 weights, tap-major / cin-minor
    w2_ref    : (9*Cout, Cout)         conv2 weights
    relu1_ref : (1, H*W, Cout)         hardtanh(conv1) output block
    relu2_ref : (1, H*W, Cout)         hardtanh(conv2) output block
    xpad      : VMEM (H+2, W+2, Cin)   zero-padded input (halo handled here)
    r1pad     : VMEM (H+2, W+2, Cout)  zero-padded relu1 (stays on-chip)
    p1        : VMEM (H*W, 9*Cin)      im2col patch matrix for conv1
    p2        : VMEM (H*W, 9*Cout)     im2col patch matrix for conv2
    """
    _, H, W, Cin = x_ref.shape
    Cout = relu1_ref.shape[-1]

    def conv3x3_hardtanh(src_pad, patches, w_ref, cin):
        # im2col: one shifted-window copy per tap into VMEM scratch, then a
        # single MXU matmul with K = 9*cin and f32 accumulation.
        for kh in range(3):
            for kw in range(3):
                t = kh * 3 + kw
                win = src_pad[kh:kh + H, kw:kw + W, :]            # (H, W, cin)
                # (H, W, cin) -> (H*W, cin) collapses leading dims only
                # (H % 8 == 0), so it is a pure vreg re-index.
                patches[:, t * cin:(t + 1) * cin] = win.reshape(H * W, cin)
        acc = jnp.dot(patches[...], w_ref[...],
                      preferred_element_type=jnp.float32)          # (H*W, Cout)
        return jnp.clip(acc, HARDTANH_MIN, HARDTANH_MAX)           # Hardtanh(0,448)

    # ---- conv1 + hardtanh --------------------------------------------------
    xpad[...] = jnp.zeros(xpad.shape, xpad.dtype)     # zero halo in-kernel
    xpad[1:H + 1, 1:W + 1, :] = x_ref[0]
    r1 = conv3x3_hardtanh(xpad, p1, w1_ref, Cin).astype(relu1_ref.dtype)
    relu1_ref[0] = r1                                 # written to HBM once

    # ---- conv2 + hardtanh (relu1 stays VMEM-resident, no HBM round-trip) ---
    r1pad[...] = jnp.zeros(r1pad.shape, r1pad.dtype)
    r1pad[1:H + 1, 1:W + 1, :] = r1.reshape(H, W, Cout)
    r2 = conv3x3_hardtanh(r1pad, p2, w2_ref, Cout).astype(relu2_ref.dtype)
    relu2_ref[0] = r2


def _basic_block_pallas(x_nhwc, w1_2d, w2_2d):
    """Run the fused BasicBlock kernel. Returns (relu1, relu2) in NHWC."""
    N, H, W, Cin = x_nhwc.shape
    Cout = w1_2d.shape[-1]
    assert H % 8 == 0, "H must be a multiple of 8 (sublane tiling)"
    dt = x_nhwc.dtype
    itemsize = jnp.dtype(dt).itemsize

    flops = 2 * N * H * W * 9 * (Cin * Cout + Cout * Cout)
    bytes_accessed = itemsize * (x_nhwc.size + w1_2d.size + w2_2d.size
                                 + 2 * N * H * W * Cout)

    relu1, relu2 = pl.pallas_call(
        _basic_block_kernel,
        grid=(N,),
        in_specs=[
            pl.BlockSpec((1, H, W, Cin), lambda n: (n, 0, 0, 0)),
            pl.BlockSpec((9 * Cin, Cout), lambda n: (0, 0)),
            pl.BlockSpec((9 * Cout, Cout), lambda n: (0, 0)),
        ],
        out_specs=(
            pl.BlockSpec((1, H * W, Cout), lambda n: (n, 0, 0)),
            pl.BlockSpec((1, H * W, Cout), lambda n: (n, 0, 0)),
        ),
        out_shape=(
            jax.ShapeDtypeStruct((N, H * W, Cout), dt),
            jax.ShapeDtypeStruct((N, H * W, Cout), dt),
        ),
        scratch_shapes=[
            pltpu.VMEM((H + 2, W + 2, Cin), dt),
            pltpu.VMEM((H + 2, W + 2, Cout), dt),
            pltpu.VMEM((H * W, 9 * Cin), dt),
            pltpu.VMEM((H * W, 9 * Cout), dt),
        ],
        compiler_params=pltpu.CompilerParams(
            # batch axis is independent -> megacore sharding on v7x,
            # auto double-buffered DMA on all generations.
            dimension_semantics=("parallel",),
            # tiny per-image blocks; stay well inside v7x's 64 MiB VMEM.
            vmem_limit_bytes=32 * 1024 * 1024,
        ),
        cost_estimate=pl.CostEstimate(
            flops=flops, transcendentals=0, bytes_accessed=bytes_accessed),
    )(x_nhwc, w1_2d, w2_2d)

    # (N, H*W, Cout) and (N, H, W, Cout) share the same HBM layout -> free.
    return relu1.reshape(N, H, W, Cout), relu2.reshape(N, H, W, Cout)


def basic_block_forward_nhwc(x_nhwc, w1_oihw, w2_oihw):
    """BasicBlock.forward (BN=0, downsample=None, stride=1), NHWC activations.

    Weights are PyTorch-layout OIHW.  Returns (out, {'relu1','relu2'}) in NHWC.
    Works for f32 or bf16 activations (accumulation is always f32).
    """
    Cout, Cin = w1_oihw.shape[0], w1_oihw.shape[1]
    dt = x_nhwc.dtype
    # OIHW -> (kh, kw, cin, cout) -> (9*cin, cout); tap-major / cin-minor
    # matches the im2col packing order in the kernel. Weights are tiny.
    w1_2d = jnp.transpose(w1_oihw, (2, 3, 1, 0)).reshape(9 * Cin, Cout).astype(dt)
    w2_2d = jnp.transpose(w2_oihw, (2, 3, 1, 0)).reshape(9 * Cout, Cout).astype(dt)
    relu1, relu2 = _basic_block_pallas(x_nhwc, w1_2d, w2_2d)
    # TODO(synk): BN / downsample / quantized-conv (qn_on, fp_on) branches are
    # inactive under the module defaults and are not implemented here.
    return relu2, {"relu1": relu1, "relu2": relu2}


@jax.jit
def basic_block_forward(x_nchw, w1_oihw, w2_oihw):
    """PyTorch-layout (NCHW / OIHW) adapter around the NHWC Pallas block."""
    x = jnp.transpose(x_nchw, (0, 2, 3, 1))            # NCHW -> NHWC
    out_nhwc, a_nhwc = basic_block_forward_nhwc(x, w1_oihw, w2_oihw)
    out = jnp.transpose(out_nhwc, (0, 3, 1, 2))        # NHWC -> NCHW
    a = {"relu1": jnp.transpose(a_nhwc["relu1"], (0, 3, 1, 2)), "relu2": out}
    return out, a


def _reference_forward(x_nchw, w1_oihw, w2_oihw):
    """Pure-JAX reference (lax.conv) for correctness checking."""
    def conv(x, w):
        y = lax.conv_general_dilated(
            x, w, window_strides=(1, 1), padding=((1, 1), (1, 1)),
            dimension_numbers=("NCHW", "OIHW", "NCHW"))
        return jnp.clip(y, HARDTANH_MIN, HARDTANH_MAX)

    r1 = conv(x_nchw, w1_oihw)
    r2 = conv(r1, w2_oihw)
    return r2, {"relu1": r1, "relu2": r2}


if __name__ == "__main__":
    # Small shapes consistent with BasicBlock(inplanes=4, planes=8).
    N, Cin, Cout, H, W = 2, 4, 8, 16, 16

    key = jax.random.PRNGKey(0)
    kx, kw1, kw2 = jax.random.split(key, 3)

    x = jax.random.normal(kx, (N, Cin, H, W), dtype=jnp.float32)
    # Deterministic kaiming-like init for the two 3x3 conv weights (OIHW).
    w1 = jax.random.normal(kw1, (Cout, Cin, 3, 3), dtype=jnp.float32) * (
        2.0 / (Cin * 9)) ** 0.5
    w2 = jax.random.normal(kw2, (Cout, Cout, 3, 3), dtype=jnp.float32) * (
        2.0 / (Cout * 9)) ** 0.5

    out, acts = basic_block_forward(x, w1, w2)
    jax.block_until_ready(out)

    ref_out, ref_acts = _reference_forward(x, w1, w2)
    assert out.shape == (N, Cout, H, W)
    assert jnp.allclose(out, ref_out, atol=1e-4, rtol=1e-4)
    assert jnp.allclose(acts["relu1"], ref_acts["relu1"], atol=1e-4, rtol=1e-4)
    assert jnp.allclose(acts["relu2"], ref_acts["relu2"], atol=1e-4, rtol=1e-4)

    print("KERNEL_OK")
</pallas_src>

<mosaic_0001>
module attributes {stable_mosaic.version = 11 : i64} {
  func.func @_basic_block_kernel(%arg0: i32, %arg1: memref<1x16x16x4xf32, #tpu.memory_space<vmem>>, %arg2: memref<36x8xf32, #tpu.memory_space<vmem>>, %arg3: memref<72x8xf32, #tpu.memory_space<vmem>>, %arg4: memref<1x256x8xf32, #tpu.memory_space<vmem>>, %arg5: memref<1x256x8xf32, #tpu.memory_space<vmem>>, %arg6: memref<18x18x4xf32, #tpu.memory_space<vmem>>, %arg7: memref<18x18x8xf32, #tpu.memory_space<vmem>>, %arg8: memref<256x36xf32, #tpu.memory_space<vmem>>, %arg9: memref<256x72xf32, #tpu.memory_space<vmem>>) attributes {dimension_semantics = [#tpu.dimension_semantics<parallel>], iteration_bounds = array<i64: 2>, scalar_prefetch = 0 : i64, scratch_operands = 4 : i64, tpu.core_type = #tpu.core_type<tc>, window_params = [{transform_indices = @transform_0, window_bounds = array<i64: 1, 16, 16, 4>}, {pipeline_mode = #tpu.pipeline_mode<synchronous>, transform_indices = @transform_1, window_bounds = array<i64: 36, 8>}, {pipeline_mode = #tpu.pipeline_mode<synchronous>, transform_indices = @transform_2, window_bounds = array<i64: 72, 8>}, {transform_indices = @transform_3, window_bounds = array<i64: 1, 256, 8>}, {transform_indices = @transform_4, window_bounds = array<i64: 1, 256, 8>}]} {
    %cst = arith.constant 0.000000e+00 : f32
    %0 = vector.broadcast %cst : f32 to vector<18x18x4xf32>
    %c0 = arith.constant 0 : index
    %c0_0 = arith.constant 0 : index
    %c0_1 = arith.constant 0 : index
    %1 = vector.load %arg6[%c0, %c0_0, %c0_1] : memref<18x18x4xf32, #tpu.memory_space<vmem>>, vector<18x18x4xf32>
    tpu.vector_store %arg6[%c0, %c0_0, %c0_1], %0 {strides = array<i32>} : memref<18x18x4xf32, #tpu.memory_space<vmem>>, vector<18x18x4xf32>,
    %c0_2 = arith.constant 0 : index
    %c0_3 = arith.constant 0 : index
    %c0_4 = arith.constant 0 : index
    %c0_5 = arith.constant 0 : index
    %2 = vector.load %arg1[%c0_2, %c0_3, %c0_4, %c0_5] : memref<1x16x16x4xf32, #tpu.memory_space<vmem>>, vector<1x16x16x4xf32>
    %3 = vector.shape_cast %2 : vector<1x16x16x4xf32> to vector<16x16x4xf32>
    %c1 = arith.constant 1 : index
    %c1_6 = arith.constant 1 : index
    %c0_7 = arith.constant 0 : index
    %4 = vector.load %arg6[%c1, %c1_6, %c0_7] : memref<18x18x4xf32, #tpu.memory_space<vmem>>, vector<16x16x4xf32>
    tpu.vector_store %arg6[%c1, %c1_6, %c0_7], %3 {strides = array<i32>} : memref<18x18x4xf32, #tpu.memory_space<vmem>>, vector<16x16x4xf32>,
    %c0_8 = arith.constant 0 : index
    %c0_9 = arith.constant 0 : index
    %c0_10 = arith.constant 0 : index
    %5 = vector.load %arg6[%c0_8, %c0_9, %c0_10] : memref<18x18x4xf32, #tpu.memory_space<vmem>>, vector<16x16x4xf32>
    %6 = vector.shape_cast %5 : vector<16x16x4xf32> to vector<256x4xf32>
    %c0_11 = arith.constant 0 : index
    %c0_12 = arith.constant 0 : index
    %7 = vector.load %arg8[%c0_11, %c0_12] : memref<256x36xf32, #tpu.memory_space<vmem>>, vector<256x4xf32>
    tpu.vector_store %arg8[%c0_11, %c0_12], %6 {strides = array<i32>} : memref<256x36xf32, #tpu.memory_space<vmem>>, vector<256x4xf32>,
    %c0_13 = arith.constant 0 : index
    %c1_14 = arith.constant 1 : index
    %c0_15 = arith.constant 0 : index
    %8 = vector.load %arg6[%c0_13, %c1_14, %c0_15] : memref<18x18x4xf32, #tpu.memory_space<vmem>>, vector<16x16x4xf32>
    %9 = vector.shape_cast %8 : vector<16x16x4xf32> to vector<256x4xf32>
    %c0_16 = arith.constant 0 : index
    %c4 = arith.constant 4 : index
    %10 = vector.load %arg8[%c0_16, %c4] : memref<256x36xf32, #tpu.memory_space<vmem>>, vector<256x4xf32>
    tpu.vector_store %arg8[%c0_16, %c4], %9 {strides = array<i32>} : memref<256x36xf32, #tpu.memory_space<vmem>>, vector<256x4xf32>,
    %c0_17 = arith.constant 0 : index
    %c2 = arith.constant 2 : index
    %c0_18 = arith.constant 0 : index
    %11 = vector.load %arg6[%c0_17, %c2, %c0_18] : memref<18x18x4xf32, #tpu.memory_space<vmem>>, vector<16x16x4xf32>
    %12 = vector.shape_cast %11 : vector<16x16x4xf32> to vector<256x4xf32>
    %c0_19 = arith.constant 0 : index
    %c8 = arith.constant 8 : index
    %13 = vector.load %arg8[%c0_19, %c8] : memref<256x36xf32, #tpu.memory_space<vmem>>, vector<256x4xf32>
    tpu.vector_store %arg8[%c0_19, %c8], %12 {strides = array<i32>} : memref<256x36xf32, #tpu.memory_space<vmem>>, vector<256x4xf32>,
    %c1_20 = arith.constant 1 : index
    %c0_21 = arith.constant 0 : index
    %c0_22 = arith.constant 0 : index
    %14 = vector.load %arg6[%c1_20, %c0_21, %c0_22] : memref<18x18x4xf32, #tpu.memory_space<vmem>>, vector<16x16x4xf32>
    %15 = vector.shape_cast %14 : vector<16x16x4xf32> to vector<256x4xf32>
    %c0_23 = arith.constant 0 : index
    %c12 = arith.constant 12 : index
    %16 = vector.load %arg8[%c0_23, %c12] : memref<256x36xf32, #tpu.memory_space<vmem>>, vector<256x4xf32>
    tpu.vector_store %arg8[%c0_23, %c12], %15 {strides = array<i32>} : memref<256x36xf32, #tpu.memory_space<vmem>>, vector<256x4xf32>,
    %c1_24 = arith.constant 1 : index
    %c1_25 = arith.constant 1 : index
    %c0_26 = arith.constant 0 : index
    %17 = vector.load %arg6[%c1_24, %c1_25, %c0_26] : memref<18x18x4xf32, #tpu.memory_space<vmem>>, vector<16x16x4xf32>
    %18 = vector.shape_cast %17 : vector<16x16x4xf32> to vector<256x4xf32>
    %c0_27 = arith.constant 0 : index
    %c16 = arith.constant 16 : index
    %19 = vector.load %arg8[%c0_27, %c16] : memref<256x36xf32, #tpu.memory_space<vmem>>, vector<256x4xf32>
    tpu.vector_store %arg8[%c0_27, %c16], %18 {strides = array<i32>} : memref<256x36xf32, #tpu.memory_space<vmem>>, vector<256x4xf32>,
    %c1_28 = arith.constant 1 : index
    %c2_29 = arith.constant 2 : index
    %c0_30 = arith.constant 0 : index
    %20 = vector.load %arg6[%c1_28, %c2_29, %c0_30] : memref<18x18x4xf32, #tpu.memory_space<vmem>>, vector<16x16x4xf32>
    %21 = vector.shape_cast %20 : vector<16x16x4xf32> to vector<256x4xf32>
    %c0_31 = arith.constant 0 : index
    %c20 = arith.constant 20 : index
    %22 = vector.load %arg8[%c0_31, %c20] : memref<256x36xf32, #tpu.memory_space<vmem>>, vector<256x4xf32>
    tpu.vector_store %arg8[%c0_31, %c20], %21 {strides = array<i32>} : memref<256x36xf32, #tpu.memory_space<vmem>>, vector<256x4xf32>,
    %c2_32 = arith.constant 2 : index
    %c0_33 = arith.constant 0 : index
    %c0_34 = arith.constant 0 : index
    %23 = vector.load %arg6[%c2_32, %c0_33, %c0_34] : memref<18x18x4xf32, #tpu.memory_space<vmem>>, vector<16x16x4xf32>
    %24 = vector.shape_cast %23 : vector<16x16x4xf32> to vector<256x4xf32>
    %c0_35 = arith.constant 0 : index
    %c24 = arith.constant 24 : index
    %25 = vector.load %arg8[%c0_35, %c24] : memref<256x36xf32, #tpu.memory_space<vmem>>, vector<256x4xf32>
    tpu.vector_store %arg8[%c0_35, %c24], %24 {strides = array<i32>} : memref<256x36xf32, #tpu.memory_space<vmem>>, vector<256x4xf32>,
    %c2_36 = arith.constant 2 : index
    %c1_37 = arith.constant 1 : index
    %c0_38 = arith.constant 0 : index
    %26 = vector.load %arg6[%c2_36, %c1_37, %c0_38] : memref<18x18x4xf32, #tpu.memory_space<vmem>>, vector<16x16x4xf32>
    %27 = vector.shape_cast %26 : vector<16x16x4xf32> to vector<256x4xf32>
    %c0_39 = arith.constant 0 : index
    %c28 = arith.constant 28 : index
    %28 = vector.load %arg8[%c0_39, %c28] : memref<256x36xf32, #tpu.memory_space<vmem>>, vector<256x4xf32>
    tpu.vector_store %arg8[%c0_39, %c28], %27 {strides = array<i32>} : memref<256x36xf32, #tpu.memory_space<vmem>>, vector<256x4xf32>,
    %c2_40 = arith.constant 2 : index
    %c2_41 = arith.constant 2 : index
    %c0_42 = arith.constant 0 : index
    %29 = vector.load %arg6[%c2_40, %c2_41, %c0_42] : memref<18x18x4xf32, #tpu.memory_space<vmem>>, vector<16x16x4xf32>
    %30 = vector.shape_cast %29 : vector<16x16x4xf32> to vector<256x4xf32>
    %c0_43 = arith.constant 0 : index
    %c32 = arith.constant 32 : index
    %31 = vector.load %arg8[%c0_43, %c32] : memref<256x36xf32, #tpu.memory_space<vmem>>, vector<256x4xf32>
    tpu.vector_store %arg8[%c0_43, %c32], %30 {strides = array<i32>} : memref<256x36xf32, #tpu.memory_space<vmem>>, vector<256x4xf32>,
    %c0_44 = arith.constant 0 : index
    %c0_45 = arith.constant 0 : index
    %32 = vector.load %arg8[%c0_44, %c0_45] : memref<256x36xf32, #tpu.memory_space<vmem>>, vector<256x36xf32>
    %c0_46 = arith.constant 0 : index
    %c0_47 = arith.constant 0 : index
    %33 = vector.load %arg2[%c0_46, %c0_47] : memref<36x8xf32, #tpu.memory_space<vmem>>, vector<36x8xf32>
    %cst_48 = arith.constant dense<0.000000e+00> : vector<256x8xf32>
    %34 = tpu.matmul %32, %33, %cst_48 {dimension_numbers = #tpu.dot_dimension_numbers<[1], [0], [0], [1], [0, 0, 1, 1], [], []>} : vector<256x36xf32>, vector<36x8xf32>, vector<256x8xf32> -> vector<256x8xf32>
    %cst_49 = arith.constant 0.000000e+00 : f32
    %cst_50 = arith.constant 4.480000e+02 : f32
    %35 = vector.broadcast %cst_49 : f32 to vector<256x8xf32>
    %36 = arith.maximumf %35, %34 : vector<256x8xf32>
    %37 = vector.broadcast %cst_50 : f32 to vector<256x8xf32>
    %38 = arith.minimumf %37, %36 : vector<256x8xf32>
    %c0_51 = arith.constant 0 : index
    %c0_52 = arith.constant 0 : index
    %c0_53 = arith.constant 0 : index
    %39 = vector.load %arg4[%c0_51, %c0_52, %c0_53] : memref<1x256x8xf32, #tpu.memory_space<vmem>>, vector<1x256x8xf32>
    %40 = vector.shape_cast %39 : vector<1x256x8xf32> to vector<256x8xf32>
    %41 = vector.shape_cast %38 : vector<256x8xf32> to vector<1x256x8xf32>
    tpu.vector_store %arg4[%c0_51, %c0_52, %c0_53], %41 {strides = array<i32>} : memref<1x256x8xf32, #tpu.memory_space<vmem>>, vector<1x256x8xf32>,
    %cst_54 = arith.constant 0.000000e+00 : f32
    %42 = vector.broadcast %cst_54 : f32 to vector<18x18x8xf32>
    %c0_55 = arith.constant 0 : index
    %c0_56 = arith.constant 0 : index
    %c0_57 = arith.constant 0 : index
    %43 = vector.load %arg7[%c0_55, %c0_56, %c0_57] : memref<18x18x8xf32, #tpu.memory_space<vmem>>, vector<18x18x8xf32>
    tpu.vector_store %arg7[%c0_55, %c0_56, %c0_57], %42 {strides = array<i32>} : memref<18x18x8xf32, #tpu.memory_space<vmem>>, vector<18x18x8xf32>,
    %44 = vector.shape_cast %38 : vector<256x8xf32> to vector<16x16x8xf32>
    %c1_58 = arith.constant 1 : index
    %c1_59 = arith.constant 1 : index
    %c0_60 = arith.constant 0 : index
    %45 = vector.load %arg7[%c1_58, %c1_59, %c0_60] : memref<18x18x8xf32, #tpu.memory_space<vmem>>, vector<16x16x8xf32>
    tpu.vector_store %arg7[%c1_58, %c1_59, %c0_60], %44 {strides = array<i32>} : memref<18x18x8xf32, #tpu.memory_space<vmem>>, vector<16x16x8xf32>,
    %c0_61 = arith.constant 0 : index
    %c0_62 = arith.constant 0 : index
    %c0_63 = arith.constant 0 : index
    %46 = vector.load %arg7[%c0_61, %c0_62, %c0_63] : memref<18x18x8xf32, #tpu.memory_space<vmem>>, vector<16x16x8xf32>
    %47 = vector.shape_cast %46 : vector<16x16x8xf32> to vector<256x8xf32>
    %c0_64 = arith.constant 0 : index
    %c0_65 = arith.constant 0 : index
    %48 = vector.load %arg9[%c0_64, %c0_65] : memref<256x72xf32, #tpu.memory_space<vmem>>, vector<256x8xf32>
    tpu.vector_store %arg9[%c0_64, %c0_65], %47 {strides = array<i32>} : memref<256x72xf32, #tpu.memory_space<vmem>>, vector<256x8xf32>,
    %c0_66 = arith.constant 0 : index
    %c1_67 = arith.constant 1 : index
    %c0_68 = arith.constant 0 : index
    %49 = vector.load %arg7[%c0_66, %c1_67, %c0_68] : memref<18x18x8xf32, #tpu.memory_space<vmem>>, vector<16x16x8xf32>
    %50 = vector.shape_cast %49 : vector<16x16x8xf32> to vector<256x8xf32>
    %c0_69 = arith.constant 0 : index
    %c8_70 = arith.constant 8 : index
    %51 = vector.load %arg9[%c0_69, %c8_70] : memref<256x72xf32, #tpu.memory_space<vmem>>, vector<256x8xf32>
    tpu.vector_store %arg9[%c0_69, %c8_70], %50 {strides = array<i32>} : memref<256x72xf32, #tpu.memory_space<vmem>>, vector<256x8xf32>,
    %c0_71 = arith.constant 0 : index
    %c2_72 = arith.constant 2 : index
    %c0_73 = arith.constant 0 : index
    %52 = vector.load %arg7[%c0_71, %c2_72, %c0_73] : memref<18x18x8xf32, #tpu.memory_space<vmem>>, vector<16x16x8xf32>
    %53 = vector.shape_cast %52 : vector<16x16x8xf32> to vector<256x8xf32>
    %c0_74 = arith.constant 0 : index
    %c16_75 = arith.constant 16 : index
    %54 = vector.load %arg9[%c0_74, %c16_75] : memref<256x72xf32, #tpu.memory_space<vmem>>, vector<256x8xf32>
    tpu.vector_store %arg9[%c0_74, %c16_75], %53 {strides = array<i32>} : memref<256x72xf32, #tpu.memory_space<vmem>>, vector<256x8xf32>,
    %c1_76 = arith.constant 1 : index
    %c0_77 = arith.constant 0 : index
    %c0_78 = arith.constant 0 : index
    %55 = vector.load %arg7[%c1_76, %c0_77, %c0_78] : memref<18x18x8xf32, #tpu.memory_space<vmem>>, vector<16x16x8xf32>
    %56 = vector.shape_cast %55 : vector<16x16x8xf32> to vector<256x8xf32>
    %c0_79 = arith.constant 0 : index
    %c24_80 = arith.constant 24 : index
    %57 = vector.load %arg9[%c0_79, %c24_80] : memref<256x72xf32, #tpu.memory_space<vmem>>, vector<256x8xf32>
    tpu.vector_store %arg9[%c0_79, %c24_80], %56 {strides = array<i32>} : memref<256x72xf32, #tpu.memory_space<vmem>>, vector<256x8xf32>,
    %c1_81 = arith.constant 1 : index
    %c1_82 = arith.constant 1 : index
    %c0_83 = arith.constant 0 : index
    %58 = vector.load %arg7[%c1_81, %c1_82, %c0_83] : memref<18x18x8xf32, #tpu.memory_space<vmem>>, vector<16x16x8xf32>
    %59 = vector.shape_cast %58 : vector<16x16x8xf32> to vector<256x8xf32>
    %c0_84 = arith.constant 0 : index
    %c32_85 = arith.constant 32 : index
    %60 = vector.load %arg9[%c0_84, %c32_85] : memref<256x72xf32, #tpu.memory_space<vmem>>, vector<256x8xf32>
    tpu.vector_store %arg9[%c0_84, %c32_85], %59 {strides = array<i32>} : memref<256x72xf32, #tpu.memory_space<vmem>>, vector<256x8xf32>,
    %c1_86 = arith.constant 1 : index
    %c2_87 = arith.constant 2 : index
    %c0_88 = arith.constant 0 : index
    %61 = vector.load %arg7[%c1_86, %c2_87, %c0_88] : memref<18x18x8xf32, #tpu.memory_space<vmem>>, vector<16x16x8xf32>
    %62 = vector.shape_cast %61 : vector<16x16x8xf32> to vector<256x8xf32>
    %c0_89 = arith.constant 0 : index
    %c40 = arith.constant 40 : index
    %63 = vector.load %arg9[%c0_89, %c40] : memref<256x72xf32, #tpu.memory_space<vmem>>, vector<256x8xf32>
    tpu.vector_store %arg9[%c0_89, %c40], %62 {strides = array<i32>} : memref<256x72xf32, #tpu.memory_space<vmem>>, vector<256x8xf32>,
    %c2_90 = arith.constant 2 : index
    %c0_91 = arith.constant 0 : index
    %c0_92 = arith.constant 0 : index
    %64 = vector.load %arg7[%c2_90, %c0_91, %c0_92] : memref<18x18x8xf32, #tpu.memory_space<vmem>>, vector<16x16x8xf32>
    %65 = vector.shape_cast %64 : vector<16x16x8xf32> to vector<256x8xf32>
    %c0_93 = arith.constant 0 : index
    %c48 = arith.constant 48 : index
    %66 = vector.load %arg9[%c0_93, %c48] : memref<256x72xf32, #tpu.memory_space<vmem>>, vector<256x8xf32>
    tpu.vector_store %arg9[%c0_93, %c48], %65 {strides = array<i32>} : memref<256x72xf32, #tpu.memory_space<vmem>>, vector<256x8xf32>,
    %c2_94 = arith.constant 2 : index
    %c1_95 = arith.constant 1 : index
    %c0_96 = arith.constant 0 : index
    %67 = vector.load %arg7[%c2_94, %c1_95, %c0_96] : memref<18x18x8xf32, #tpu.memory_space<vmem>>, vector<16x16x8xf32>
    %68 = vector.shape_cast %67 : vector<16x16x8xf32> to vector<256x8xf32>
    %c0_97 = arith.constant 0 : index
    %c56 = arith.constant 56 : index
    %69 = vector.load %arg9[%c0_97, %c56] : memref<256x72xf32, #tpu.memory_space<vmem>>, vector<256x8xf32>
    tpu.vector_store %arg9[%c0_97, %c56], %68 {strides = array<i32>} : memref<256x72xf32, #tpu.memory_space<vmem>>, vector<256x8xf32>,
    %c2_98 = arith.constant 2 : index
    %c2_99 = arith.constant 2 : index
    %c0_100 = arith.constant 0 : index
    %70 = vector.load %arg7[%c2_98, %c2_99, %c0_100] : memref<18x18x8xf32, #tpu.memory_space<vmem>>, vector<16x16x8xf32>
    %71 = vector.shape_cast %70 : vector<16x16x8xf32> to vector<256x8xf32>
    %c0_101 = arith.constant 0 : index
    %c64 = arith.constant 64 : index
    %72 = vector.load %arg9[%c0_101, %c64] : memref<256x72xf32, #tpu.memory_space<vmem>>, vector<256x8xf32>
    tpu.vector_store %arg9[%c0_101, %c64], %71 {strides = array<i32>} : memref<256x72xf32, #tpu.memory_space<vmem>>, vector<256x8xf32>,
    %c0_102 = arith.constant 0 : index
    %c0_103 = arith.constant 0 : index
    %73 = vector.load %arg9[%c0_102, %c0_103] : memref<256x72xf32, #tpu.memory_space<vmem>>, vector<256x72xf32>
    %c0_104 = arith.constant 0 : index
    %c0_105 = arith.constant 0 : index
    %74 = vector.load %arg3[%c0_104, %c0_105] : memref<72x8xf32, #tpu.memory_space<vmem>>, vector<72x8xf32>
    %cst_106 = arith.constant dense<0.000000e+00> : vector<256x8xf32>
    %75 = tpu.matmul %73, %74, %cst_106 {dimension_numbers = #tpu.dot_dimension_numbers<[1], [0], [0], [1], [0, 0, 1, 1], [], []>} : vector<256x72xf32>, vector<72x8xf32>, vector<256x8xf32> -> vector<256x8xf32>
    %cst_107 = arith.constant 0.000000e+00 : f32
    %cst_108 = arith.constant 4.480000e+02 : f32
    %76 = vector.broadcast %cst_107 : f32 to vector<256x8xf32>
    %77 = arith.maximumf %76, %75 : vector<256x8xf32>
    %78 = vector.broadcast %cst_108 : f32 to vector<256x8xf32>
    %79 = arith.minimumf %78, %77 : vector<256x8xf32>
    %c0_109 = arith.constant 0 : index
    %c0_110 = arith.constant 0 : index
    %c0_111 = arith.constant 0 : index
    %80 = vector.load %arg5[%c0_109, %c0_110, %c0_111] : memref<1x256x8xf32, #tpu.memory_space<vmem>>, vector<1x256x8xf32>
    %81 = vector.shape_cast %80 : vector<1x256x8xf32> to vector<256x8xf32>
    %82 = vector.shape_cast %79 : vector<256x8xf32> to vector<1x256x8xf32>
    tpu.vector_store %arg5[%c0_109, %c0_110, %c0_111], %82 {strides = array<i32>} : memref<1x256x8xf32, #tpu.memory_space<vmem>>, vector<1x256x8xf32>,
    return
  }
  func.func @transform_0(%arg0: i32) -> (i32, i32, i32, i32) {
    %c0_i32 = arith.constant 0 : i32
    %c0_i32_0 = arith.constant 0 : i32
    %c0_i32_1 = arith.constant 0 : i32
    %c0_i32_2 = arith.constant 0 : i32
    return %arg0, %c0_i32, %c0_i32_0, %c0_i32_1 : i32, i32, i32, i32
  }
  func.func @transform_1(%arg0: i32) -> (i32, i32) {
    %c0_i32 = arith.constant 0 : i32
    %c0_i32_0 = arith.constant 0 : i32
    %c0_i32_1 = arith.constant 0 : i32
    return %c0_i32, %c0_i32_0 : i32, i32
  }
  func.func @transform_2(%arg0: i32) -> (i32, i32) {
    %c0_i32 = arith.constant 0 : i32
    %c0_i32_0 = arith.constant 0 : i32
    %c0_i32_1 = arith.constant 0 : i32
    return %c0_i32, %c0_i32_0 : i32, i32
  }
  func.func @transform_3(%arg0: i32) -> (i32, i32, i32) {
    %c0_i32 = arith.constant 0 : i32
    %c0_i32_0 = arith.constant 0 : i32
    %c0_i32_1 = arith.constant 0 : i32
    return %arg0, %c0_i32, %c0_i32_0 : i32, i32, i32
  }
  func.func @transform_4(%arg0: i32) -> (i32, i32, i32) {
    %c0_i32 = arith.constant 0 : i32
    %c0_i32_0 = arith.constant 0 : i32
    %c0_i32_1 = arith.constant 0 : i32
    return %arg0, %c0_i32, %c0_i32_0 : i32, i32, i32
  }
}

</mosaic_0001>

<llo_original>
// kernel: basic_block_forward.1
$region0: #{basic_block_forward.1}
  #allocation0 [shape = 'u32[]', space=smem, size = 0x4, offset = 0x4, fixed_abs, tag = 'smem constant byte address 0x4 - core index']
  #allocation1 [shape = 'u32[72,128]{1,0:T(1,128)}', space=vmem, size = 0x9000, scoped, tag = 'internal scratch']
  #allocation2 [shape = 'f32[18,18,4]{2,1,0:T(8,128)}', space=vmem, size = 0x36000, scoped, tag = 'scratch operand']
  #allocation3 [shape = 'f32[18,18,8]{2,1,0:T(8,128)}', space=vmem, size = 0x36000, scoped, tag = 'scratch operand']
  #allocation4 [shape = 'f32[256,36]{1,0:T(8,128)}', space=vmem, size = 0x20000, scoped, tag = 'scratch operand']
  #allocation5 [shape = 'f32[256,72]{1,0:T(8,128)}', space=vmem, size = 0x20000, scoped, tag = 'scratch operand']
  %s0 = inlined_call_operand.vmem [shape: f32[2,16,16,4], index: 0, kind: input, shape index: {}]
  %s1 = inlined_call_operand.vmem [shape: f32[36,8], index: 1, kind: input, shape index: {}]
  %s2 = inlined_call_operand.vmem [shape: f32[72,8], index: 2, kind: input, shape index: {}]
  %s3 = inlined_call_operand.vmem [shape: f32[2,256,8], index: 3, kind: output, shape index: {0}]
  %s4 = inlined_call_operand.vmem [shape: f32[2,256,8], index: 4, kind: output, shape index: {1}]
  %5 = xla_tuple %s3, %s4
  %s6 = sld [smem:[#allocation0]]
  $region53: #{basic_block_forward.1} parent=0
    _
  %s8 = ssub.s32 1, %s6
  %s9 = scalar_select 0, %s8, %s6
  loop: start=0, step=1, limit=4
  $region2: #{basic_block_forward.1} parent=0 // loop_pre_header
    _
  $region3: #{basic_block_forward.1} parent=0 // loop_header
    %s11 = sphi 0, %s15
    %p12 = scmp.ge.s32.totalorder %s11, 4
    %s21 = sphi 0, %s23
    %s24 = sphi 0, %s21
    %s25 = sphi 0, %s24
    %s41 = sphi 0, %s25
    %s45 = sphi 0, %s45
    %s47 = sphi 0, %s45
    %s48 = sphi 0, %s47
    %s62 = sphi 0, %s48
    %s66 = sphi 0, %s66
    %s68 = sphi 0, %s66
    %s69 = sphi 0, %s68
    %s83 = sphi 0, %s69
    %s89 = sphi 0, %s91
    %s92 = sphi 0, %s89
    %s93 = sphi 0, %s92
    %s109 = sphi 0, %s93
    %s115 = sphi 0, %s117
    %s118 = sphi 0, %s115
    %s119 = sphi 0, %s118
    %s135 = sphi 0, %s119
  $region4: #{basic_block_forward.1} parent=0 // loop_header_branch
    %14 = sbr.rel (%p12) target = $region8
  $region5: #{basic_block_forward.1} parent=0 // loop_body
    %s16 = ssub.s32 %s11, 1
    %s17 = ssub.s32 %s11, 2
    %s18 = sadd.s32 %s11, 1
    %s19 = ssub.s32 %s11, %s18
    %p20 = scmp.eq.s32.totalorder %s19, 0
    %s22 = sadd.s32 %s21, 1
    %s23 = scalar_select %p20, %s21, %s22
    %p26 = pneg %p20
    %p27 = scmp.eq.s32.totalorder %s11, 1
    %p28 = por %p26, %p27
    %p29 = scmp.ne.s32.totalorder %s21, %s24
    %p30 = scmp.eq.s32.totalorder %s11, 0
    %p31 = por %p29, %p30
    %p32 = scmp.ne.s32.totalorder %s21, %s24
    %p33 = scmp.eq.s32.totalorder %s16, 1
    %p34 = por %p32, %p33
    %p35 = scmp.ne.s32.totalorder %s24, %s25
    %p36 = scmp.eq.s32.totalorder %s16, 0
    %p37 = por %p35, %p36
    %p38 = scmp.ne.s32.totalorder %s24, %s25
    %p39 = scmp.eq.s32.totalorder %s17, 1
    %p40 = por %p38, %p39
    %p42 = scmp.ne.s32.totalorder %s25, %s41
    %p43 = scmp.eq.s32.totalorder %s17, 0
    %p44 = por %p42, %p43
    %s46 = sadd.s32 %s45, 1
    %p49 = scmp.eq.s32.totalorder %s11, 1
    %p50 = scmp.ne.s32.totalorder %s45, %s47
    %p51 = scmp.eq.s32.totalorder %s11, 0
    %p52 = por %p50, %p51
    %p53 = scmp.ne.s32.totalorder %s45, %s47
    %p54 = scmp.eq.s32.totalorder %s16, 1
    %p55 = por %p53, %p54
    %p56 = scmp.ne.s32.totalorder %s47, %s48
    %p57 = scmp.eq.s32.totalorder %s16, 0
    %p58 = por %p56, %p57
    %p59 = scmp.ne.s32.totalorder %s47, %s48
    %p60 = scmp.eq.s32.totalorder %s17, 1
    %p61 = por %p59, %p60
    %p63 = scmp.ne.s32.totalorder %s48, %s62
    %p64 = scmp.eq.s32.totalorder %s17, 0
    %p65 = por %p63, %p64
    %s67 = sadd.s32 %s66, 1
    %p70 = scmp.eq.s32.totalorder %s11, 1
    %p71 = scmp.ne.s32.totalorder %s66, %s68
    %p72 = scmp.eq.s32.totalorder %s11, 0
    %p73 = por %p71, %p72
    %p74 = scmp.ne.s32.totalorder %s66, %s68
    %p75 = scmp.eq.s32.totalorder %s16, 1
    %p76 = por %p74, %p75
    %p77 = scmp.ne.s32.totalorder %s68, %s69
    %p78 = scmp.eq.s32.totalorder %s16, 0
    %p79 = por %p77, %p78
    %p80 = scmp.ne.s32.totalorder %s68, %s69
    %p81 = scmp.eq.s32.totalorder %s17, 1
    %p82 = por %p80, %p81
    %p84 = scmp.ne.s32.totalorder %s69, %s83
    %p85 = scmp.eq.s32.totalorder %s17, 0
    %p86 = por %p84, %p85
    %s87 = ssub.s32 %s11, %s18
    %p88 = scmp.eq.s32.totalorder %s87, 0
    %s90 = sadd.s32 %s89, 1
    %s91 = scalar_select %p88, %s89, %s90
    %p94 = pneg %p88
    %p95 = scmp.eq.s32.totalorder %s11, 1
    %p96 = por %p94, %p95
    %p97 = scmp.ne.s32.totalorder %s89, %s92
    %p98 = scmp.eq.s32.totalorder %s11, 0
    %p99 = por %p97, %p98
    %p100 = scmp.ne.s32.totalorder %s89, %s92
    %p101 = scmp.eq.s32.totalorder %s16, 1
    %p102 = por %p100, %p101
    %p103 = scmp.ne.s32.totalorder %s92, %s93
    %p104 = scmp.eq.s32.totalorder %s16, 0
    %p105 = por %p103, %p104
    %p106 = scmp.ne.s32.totalorder %s92, %s93
    %p107 = scmp.eq.s32.totalorder %s17, 1
    %p108 = por %p106, %p107
    %p110 = scmp.ne.s32.totalorder %s93, %s109
    %p111 = scmp.eq.s32.totalorder %s17, 0
    %p112 = por %p110, %p111
    %s113 = ssub.s32 %s11, %s18
    %p114 = scmp.eq.s32.totalorder %s113, 0
    %s116 = sadd.s32 %s115, 1
    %s117 = scalar_select %p114, %s115, %s116
    %p120 = pneg %p114
    %p121 = scmp.eq.s32.totalorder %s11, 1
    %p122 = por %p120, %p121
    %p123 = scmp.ne.s32.totalorder %s115, %s118
    %p124 = scmp.eq.s32.totalorder %s11, 0
    %p125 = por %p123, %p124
    %p126 = scmp.ne.s32.totalorder %s115, %s118
    %p127 = scmp.eq.s32.totalorder %s16, 1
    %p128 = por %p126, %p127
    %p129 = scmp.ne.s32.totalorder %s118, %s119
    %p130 = scmp.eq.s32.totalorder %s16, 0
    %p131 = por %p129, %p130
    %p132 = scmp.ne.s32.totalorder %s118, %s119
    %p133 = scmp.eq.s32.totalorder %s17, 1
    %p134 = por %p132, %p133
    %p136 = scmp.ne.s32.totalorder %s119, %s135
    %p137 = scmp.eq.s32.totalorder %s17, 0
    %p138 = por %p136, %p137
    %p139 = scmp.le.s32.totalorder 1, %s11
    %p140 = scmp.lt.s32.totalorder %s11, 3
    %p141 = pnand %p139, %p140
    %p142 = pneg %p141
    // Predicated region
    $region9: #{basic_block_forward.1} parent=5 // pred_check
      _
    $region10: #{basic_block_forward.1} parent=5 // pred_check_branch
      %144 = sbr.rel (%p141) target = $region12
    $region11: #{basic_block_forward.1} parent=5 // pred_region
      %s145 = ssub.s32 %s11, 1
      // Predicated region
      $region13: #{basic_block_forward.1} parent=11 // pred_check
        %p146 = pneg %p58
      $region14: #{basic_block_forward.1} parent=11 // pred_check_branch
        %148 = sbr.rel (%p146) target = $region16
      $region15: #{basic_block_forward.1} parent=11 // pred_region
        _
      $region16: #{basic_block_forward.1} parent=11 // pred_fallthru
        _
      // Predicated region
      $region17: #{basic_block_forward.1} parent=11 // pred_check
        %p149 = pneg %p79
      $region18: #{basic_block_forward.1} parent=11 // pred_check_branch
        %151 = sbr.rel (%p149) target = $region20
      $region19: #{basic_block_forward.1} parent=11 // pred_region
        _
      $region20: #{basic_block_forward.1} parent=11 // pred_fallthru
        _
    $region12: #{basic_block_forward.1} parent=5 // pred_fallthru
      _
    %p152 = scmp.lt.s32.totalorder %s11, 2
    // Predicated region
    $region21: #{basic_block_forward.1} parent=5 // pred_check
      %p153 = pneg %p152
    $region22: #{basic_block_forward.1} parent=5 // pred_check_branch
      %155 = sbr.rel (%p153) target = $region24
    $region23: #{basic_block_forward.1} parent=5 // pred_region
      // Predicated region
      $region25: #{basic_block_forward.1} parent=23 // pred_check
        %p156 = pneg %p31
      $region26: #{basic_block_forward.1} parent=23 // pred_check_branch
        %158 = sbr.rel (%p156) target = $region28
      $region27: #{basic_block_forward.1} parent=23 // pred_region
        %p159 = scmp.lt.s32.totalorder %s11, 1
        %s160 = scalar_select %p159, %s11, 1
        %s161 = smul.addr %s160, 32
        %s162 = smul.addr %s161, 8
        %s163 = scalar_lea.vmem %s0, %s162
      $region28: #{basic_block_forward.1} parent=23 // pred_fallthru
        _
    $region24: #{basic_block_forward.1} parent=5 // pred_fallthru
      _
    %p164 = scmp.le.s32.totalorder 1, %s11
    %p165 = scmp.lt.s32.totalorder %s11, 3
    %p166 = pnand %p164, %p165
    %p167 = pneg %p166
    // Predicated region
    $region29: #{basic_block_forward.1} parent=5 // pred_check
      _
    $region30: #{basic_block_forward.1} parent=5 // pred_check_branch
      %169 = sbr.rel (%p166) target = $region32
    $region31: #{basic_block_forward.1} parent=5 // pred_region
      %s170 = ssub.s32 %s11, 1
      %p171 = scmp.lt.s32.totalorder %s16, 1
      %s172 = scalar_select %p171, %s16, 1
      %s173 = smul.addr %s172, 32
      %s174 = smul.addr %s173, 8
      %s175 = scalar_lea.vmem %s0, %s174
      %p176 = pneg %p37
      %p177 = pneg %p34
      %p178 = pneg %p58
      %p179 = pneg %p55
      %p180 = pneg %p79
      %p181 = pneg %p76
      %p182 = pneg %p105
      %p183 = pneg %p102
      %p184 = scmp.lt.s32.totalorder %s16, 1
      %s185 = scalar_select %p184, %s16, 1
      %s186 = smul.addr %s185, 32
      %s187 = smul.addr %s186, 8
      %s188 = scalar_lea.vmem %s3, %s187
      %p189 = pneg %p131
      %p190 = pneg %p128
      %p191 = scmp.lt.s32.totalorder %s16, 1
      %s192 = scalar_select %p191, %s16, 1
      %s193 = smul.addr %s192, 32
      %s194 = smul.addr %s193, 8
      %s195 = scalar_lea.vmem %s4, %s194
      %p196 = scmp.lt.s32.totalorder %s16, 1
      %s197 = scalar_select %p196, %s16, 1
      %s198 = smul.addr %s197, 32
      %s199 = smul.addr %s198, 8
      %s200 = scalar_lea.vmem %s0, %s199
      %p201 = scmp.lt.s32.totalorder %s16, 1
      %s202 = scalar_select %p201, %s16, 1
      %s203 = smul.addr %s202, 32
      %s204 = smul.addr %s203, 8
      %s205 = scalar_lea.vmem %s3, %s204
      %p206 = scmp.lt.s32.totalorder %s16, 1
      %s207 = scalar_select %p206, %s16, 1
      %s208 = smul.addr %s207, 32
      %s209 = smul.addr %s208, 8
      %s210 = scalar_lea.vmem %s4, %s209
      %vm211 = vcmask 31744
      %212 = vst.msk [vmem:[#allocation2] sm:$0xff] %vm211, 0.0
      %213 = vst.msk [vmem:[#allocation2 + $0x8] sm:$0xff] %vm211, 0.0
      %vm214 = vcmask 25600
      %215 = vst.msk [vmem:[#allocation2 + $0x10] sm:$0x3] %vm214, 0.0
      %216 = vst.msk [vmem:[#allocation2 + $0x18] sm:$0xff] %vm211, 0.0
      %217 = vst.msk [vmem:[#allocation2 + $0x20] sm:$0xff] %vm211, 0.0
      %218 = vst.msk [vmem:[#allocation2 + $0x28] sm:$0x3] %vm214, 0.0
      %219 = vst.msk [vmem:[#allocation2 + $0x30] sm:$0xff] %vm211, 0.0
      %220 = vst.msk [vmem:[#allocation2 + $0x38] sm:$0xff] %vm211, 0.0
      %221 = vst.msk [vmem:[#allocation2 + $0x40] sm:$0x3] %vm214, 0.0
      %222 = vst.msk [vmem:[#allocation2 + $0x48] sm:$0xff] %vm211, 0.0
      %223 = vst.msk [vmem:[#allocation2 + $0x50] sm:$0xff] %vm211, 0.0
      %224 = vst.msk [vmem:[#allocation2 + $0x58] sm:$0x3] %vm214, 0.0
      %225 = vst.msk [vmem:[#allocation2 + $0x60] sm:$0xff] %vm211, 0.0
      %226 = vst.msk [vmem:[#allocation2 + $0x68] sm:$0xff] %vm211, 0.0
      %227 = vst.msk [vmem:[#allocation2 + $0x70] sm:$0x3] %vm214, 0.0
      %228 = vst.msk [vmem:[#allocation2 + $0x78] sm:$0xff] %vm211, 0.0
      %229 = vst.msk [vmem:[#allocation2 + $0x80] sm:$0xff] %vm211, 0.0
      %230 = vst.msk [vmem:[#allocation2 + $0x88] sm:$0x3] %vm214, 0.0
      %231 = vst.msk [vmem:[#allocation2 + $0x90] sm:$0xff] %vm211, 0.0
      %232 = vst.msk [vmem:[#allocation2 + $0x98] sm:$0xff] %vm211, 0.0
      %233 = vst.msk [vmem:[#allocation2 + $0xa0] sm:$0x3] %vm214, 0.0
      %234 = vst.msk [vmem:[#allocation2 + $0xa8] sm:$0xff] %vm211, 0.0
      %235 = vst.msk [vmem:[#allocation2 + $0xb0] sm:$0xff] %vm211, 0.0
      %236 = vst.msk [vmem:[#allocation2 + $0xb8] sm:$0x3] %vm214, 0.0
      %237 = vst.msk [vmem:[#allocation2 + $0xc0] sm:$0xff] %vm211, 0.0
      %238 = vst.msk [vmem:[#allocation2 + $0xc8] sm:$0xff] %vm211, 0.0
      %239 = vst.msk [vmem:[#allocation2 + $0xd0] sm:$0x3] %vm214, 0.0
      %240 = vst.msk [vmem:[#allocation2 + $0xd8] sm:$0xff] %vm211, 0.0
      %241 = vst.msk [vmem:[#allocation2 + $0xe0] sm:$0xff] %vm211, 0.0
      %242 = vst.msk [vmem:[#allocation2 + $0xe8] sm:$0x3] %vm214, 0.0
      %243 = vst.msk [vmem:[#allocation2 + $0xf0] sm:$0xff] %vm211, 0.0
      %244 = vst.msk [vmem:[#allocation2 + $0xf8] sm:$0xff] %vm211, 0.0
      %245 = vst.msk [vmem:[#allocation2 + $0x100] sm:$0x3] %vm214, 0.0
      %246 = vst.msk [vmem:[#allocation2 + $0x108] sm:$0xff] %vm211, 0.0
      %247 = vst.msk [vmem:[#allocation2 + $0x110] sm:$0xff] %vm211, 0.0
      %248 = vst.msk [vmem:[#allocation2 + $0x118] sm:$0x3] %vm214, 0.0
      %249 = vst.msk [vmem:[#allocation2 + $0x120] sm:$0xff] %vm211, 0.0
      %250 = vst.msk [vmem:[#allocation2 + $0x128] sm:$0xff] %vm211, 0.0
      %251 = vst.msk [vmem:[#allocation2 + $0x130] sm:$0x3] %vm214, 0.0
      %252 = vst.msk [vmem:[#allocation2 + $0x138] sm:$0xff] %vm211, 0.0
      %253 = vst.msk [vmem:[#allocation2 + $0x140] sm:$0xff] %vm211, 0.0
      %254 = vst.msk [vmem:[#allocation2 + $0x148] sm:$0x3] %vm214, 0.0
      %255 = vst.msk [vmem:[#allocation2 + $0x150] sm:$0xff] %vm211, 0.0
      %256 = vst.msk [vmem:[#allocation2 + $0x158] sm:$0xff] %vm211, 0.0
      %257 = vst.msk [vmem:[#allocation2 + $0x160] sm:$0x3] %vm214, 0.0
      %258 = vst.msk [vmem:[#allocation2 + $0x168] sm:$0xff] %vm211, 0.0
      %259 = vst.msk [vmem:[#allocation2 + $0x170] sm:$0xff] %vm211, 0.0
      %260 = vst.msk [vmem:[#allocation2 + $0x178] sm:$0x3] %vm214, 0.0
      %261 = vst.msk [vmem:[#allocation2 + $0x180] sm:$0xff] %vm211, 0.0
      %262 = vst.msk [vmem:[#allocation2 + $0x188] sm:$0xff] %vm211, 0.0
      %263 = vst.msk [vmem:[#allocation2 + $0x190] sm:$0x3] %vm214, 0.0
      %264 = vst.msk [vmem:[#allocation2 + $0x198] sm:$0xff] %vm211, 0.0
      %265 = vst.msk [vmem:[#allocation2 + $0x1a0] sm:$0xff] %vm211, 0.0
      %266 = vst.msk [vmem:[#allocation2 + $0x1a8] sm:$0x3] %vm214, 0.0
      %v267 = vld [vmem:[%s200] sm:$0xff]
      %v268 = vld [vmem:[%s200 + $0x8] sm:$0xff]
      %v269 = vld [vmem:[%s200 + $0x10] sm:$0xff]
      %v270 = vld [vmem:[%s200 + $0x18] sm:$0xff]
      %v271 = vld [vmem:[%s200 + $0x20] sm:$0xff]
      %v272 = vld [vmem:[%s200 + $0x28] sm:$0xff]
      %v273 = vld [vmem:[%s200 + $0x30] sm:$0xff]
      %v274 = vld [vmem:[%s200 + $0x38] sm:$0xff]
      %v275 = vld [vmem:[%s200 + $0x40] sm:$0xff]
      %v276 = vld [vmem:[%s200 + $0x48] sm:$0xff]
      %v277 = vld [vmem:[%s200 + $0x50] sm:$0xff]
      %v278 = vld [vmem:[%s200 + $0x58] sm:$0xff]
      %v279 = vld [vmem:[%s200 + $0x60] sm:$0xff]
      %v280 = vld [vmem:[%s200 + $0x68] sm:$0xff]
      %v281 = vld [vmem:[%s200 + $0x70] sm:$0xff]
      %v282 = vld [vmem:[%s200 + $0x78] sm:$0xff]
      %v283 = vld [vmem:[%s200 + $0x80] sm:$0xff]
      %v284 = vld [vmem:[%s200 + $0x88] sm:$0xff]
      %v285 = vld [vmem:[%s200 + $0x90] sm:$0xff]
      %v286 = vld [vmem:[%s200 + $0x98] sm:$0xff]
      %v287 = vld [vmem:[%s200 + $0xa0] sm:$0xff]
      %v288 = vld [vmem:[%s200 + $0xa8] sm:$0xff]
      %v289 = vld [vmem:[%s200 + $0xb0] sm:$0xff]
      %v290 = vld [vmem:[%s200 + $0xb8] sm:$0xff]
      %v291 = vld [vmem:[%s200 + $0xc0] sm:$0xff]
      %v292 = vld [vmem:[%s200 + $0xc8] sm:$0xff]
      %v293 = vld [vmem:[%s200 + $0xd0] sm:$0xff]
      %v294 = vld [vmem:[%s200 + $0xd8] sm:$0xff]
      %v295 = vld [vmem:[%s200 + $0xe0] sm:$0xff]
      %v296 = vld [vmem:[%s200 + $0xe8] sm:$0xff]
      %v297 = vld [vmem:[%s200 + $0xf0] sm:$0xff]
      %v298 = vld [vmem:[%s200 + $0xf8] sm:$0xff]
      %s299 = scalar_lea.vmem [#allocation2], 24
      %300 = vst.msk [vmem:[%s299 + $0x1] sm:$0xff] %vm211, %v267
      %301 = vst.msk [vmem:[%s299 + $0x9] sm:$0xff] %vm211, %v268
      %302 = vst.msk [vmem:[%s299 + $0x19] sm:$0xff] %vm211, %v269
      %303 = vst.msk [vmem:[%s299 + $0x21] sm:$0xff] %vm211, %v270
      %304 = vst.msk [vmem:[%s299 + $0x31] sm:$0xff] %vm211, %v271
      %305 = vst.msk [vmem:[%s299 + $0x39] sm:$0xff] %vm211, %v272
      %306 = vst.msk [vmem:[%s299 + $0x49] sm:$0xff] %vm211, %v273
      %307 = vst.msk [vmem:[%s299 + $0x51] sm:$0xff] %vm211, %v274
      %308 = vst.msk [vmem:[%s299 + $0x61] sm:$0xff] %vm211, %v275
      %309 = vst.msk [vmem:[%s299 + $0x69] sm:$0xff] %vm211, %v276
      %310 = vst.msk [vmem:[%s299 + $0x79] sm:$0xff] %vm211, %v277
      %311 = vst.msk [vmem:[%s299 + $0x81] sm:$0xff] %vm211, %v278
      %312 = vst.msk [vmem:[%s299 + $0x91] sm:$0xff] %vm211, %v279
      %313 = vst.msk [vmem:[%s299 + $0x99] sm:$0xff] %vm211, %v280
      %314 = vst.msk [vmem:[%s299 + $0xa9] sm:$0xff] %vm211, %v281
      %315 = vst.msk [vmem:[%s299 + $0xb1] sm:$0xff] %vm211, %v282
      %316 = vst.msk [vmem:[%s299 + $0xc1] sm:$0xff] %vm211, %v283
      %317 = vst.msk [vmem:[%s299 + $0xc9] sm:$0xff] %vm211, %v284
      %318 = vst.msk [vmem:[%s299 + $0xd9] sm:$0xff] %vm211, %v285
      %319 = vst.msk [vmem:[%s299 + $0xe1] sm:$0xff] %vm211, %v286
      %320 = vst.msk [vmem:[%s299 + $0xf1] sm:$0xff] %vm211, %v287
      %321 = vst.msk [vmem:[%s299 + $0xf9] sm:$0xff] %vm211, %v288
      %322 = vst.msk [vmem:[%s299 + $0x109] sm:$0xff] %vm211, %v289
      %323 = vst.msk [vmem:[%s299 + $0x111] sm:$0xff] %vm211, %v290
      %324 = vst.msk [vmem:[%s299 + $0x121] sm:$0xff] %vm211, %v291
      %325 = vst.msk [vmem:[%s299 + $0x129] sm:$0xff] %vm211, %v292
      %326 = vst.msk [vmem:[%s299 + $0x139] sm:$0xff] %vm211, %v293
      %327 = vst.msk [vmem:[%s299 + $0x141] sm:$0xff] %vm211, %v294
      %328 = vst.msk [vmem:[%s299 + $0x151] sm:$0xff] %vm211, %v295
      %329 = vst.msk [vmem:[%s299 + $0x159] sm:$0xff] %vm211, %v296
      %330 = vst.msk [vmem:[%s299 + $0x169] sm:$0xff] %vm211, %v297
      %331 = vst.msk [vmem:[%s299 + $0x171] sm:$0xff] %vm211, %v298
      %v332 = vld [vmem:[#allocation2] sm:$0xff]
      %v333 = vld [vmem:[#allocation2 + $0x8] sm:$0xff]
      %v334 = vld [vmem:[#allocation2 + $0x18] sm:$0xff]
      %v335 = vld [vmem:[#allocation2 + $0x20] sm:$0xff]
      %v336 = vld [vmem:[#allocation2 + $0x30] sm:$0xff]
      %v337 = vld [vmem:[#allocation2 + $0x38] sm:$0xff]
      %v338 = vld [vmem:[#allocation2 + $0x48] sm:$0xff]
      %v339 = vld [vmem:[#allocation2 + $0x50] sm:$0xff]
      %v340 = vld [vmem:[#allocation2 + $0x60] sm:$0xff]
      %v341 = vld [vmem:[#allocation2 + $0x68] sm:$0xff]
      %v342 = vld [vmem:[#allocation2 + $0x78] sm:$0xff]
      %v343 = vld [vmem:[#allocation2 + $0x80] sm:$0xff]
      %v344 = vld [vmem:[#allocation2 + $0x90] sm:$0xff]
      %v345 = vld [vmem:[#allocation2 + $0x98] sm:$0xff]
      %v346 = vld [vmem:[#allocation2 + $0xa8] sm:$0xff]
      %v347 = vld [vmem:[#allocation2 + $0xb0] sm:$0xff]
      %v348 = vld [vmem:[#allocation2 + $0xc0] sm:$0xff]
      %v349 = vld [vmem:[#allocation2 + $0xc8] sm:$0xff]
      %v350 = vld [vmem:[#allocation2 + $0xd8] sm:$0xff]
      %v351 = vld [vmem:[#allocation2 + $0xe0] sm:$0xff]
      %v352 = vld [vmem:[#allocation2 + $0xf0] sm:$0xff]
      %v353 = vld [vmem:[#allocation2 + $0xf8] sm:$0xff]
      %v354 = vld [vmem:[#allocation2 + $0x108] sm:$0xff]
      %v355 = vld [vmem:[#allocation2 + $0x110] sm:$0xff]
      %v356 = vld [vmem:[#allocation2 + $0x120] sm:$0xff]
      %v357 = vld [vmem:[#allocation2 + $0x128] sm:$0xff]
      %v358 = vld [vmem:[#allocation2 + $0x138] sm:$0xff]
      %v359 = vld [vmem:[#allocation2 + $0x140] sm:$0xff]
      %v360 = vld [vmem:[#allocation2 + $0x150] sm:$0xff]
      %v361 = vld [vmem:[#allocation2 + $0x158] sm:$0xff]
      %v362 = vld [vmem:[#allocation2 + $0x168] sm:$0xff]
      %v363 = vld [vmem:[#allocation2 + $0x170] sm:$0xff]
      %364 = vst.msk [vmem:[#allocation4] sm:$0xff] %vm211, %v332
      %365 = vst.msk [vmem:[#allocation4 + $0x8] sm:$0xff] %vm211, %v333
      %366 = vst.msk [vmem:[#allocation4 + $0x10] sm:$0xff] %vm211, %v334
      %367 = vst.msk [vmem:[#allocation4 + $0x18] sm:$0xff] %vm211, %v335
      %368 = vst.msk [vmem:[#allocation4 + $0x20] sm:$0xff] %vm211, %v336
      %369 = vst.msk [vmem:[#allocation4 + $0x28] sm:$0xff] %vm211, %v337
      %370 = vst.msk [vmem:[#allocation4 + $0x30] sm:$0xff] %vm211, %v338
      %371 = vst.msk [vmem:[#allocation4 + $0x38] sm:$0xff] %vm211, %v339
      %372 = vst.msk [vmem:[#allocation4 + $0x40] sm:$0xff] %vm211, %v340
      %373 = vst.msk [vmem:[#allocation4 + $0x48] sm:$0xff] %vm211, %v341
      %374 = vst.msk [vmem:[#allocation4 + $0x50] sm:$0xff] %vm211, %v342
      %375 = vst.msk [vmem:[#allocation4 + $0x58] sm:$0xff] %vm211, %v343
      %376 = vst.msk [vmem:[#allocation4 + $0x60] sm:$0xff] %vm211, %v344
      %377 = vst.msk [vmem:[#allocation4 + $0x68] sm:$0xff] %vm211, %v345
      %378 = vst.msk [vmem:[#allocation4 + $0x70] sm:$0xff] %vm211, %v346
      %379 = vst.msk [vmem:[#allocation4 + $0x78] sm:$0xff] %vm211, %v347
      %380 = vst.msk [vmem:[#allocation4 + $0x80] sm:$0xff] %vm211, %v348
      %381 = vst.msk [vmem:[#allocation4 + $0x88] sm:$0xff] %vm211, %v349
      %382 = vst.msk [vmem:[#allocation4 + $0x90] sm:$0xff] %vm211, %v350
      %383 = vst.msk [vmem:[#allocation4 + $0x98] sm:$0xff] %vm211, %v351
      %384 = vst.msk [vmem:[#allocation4 + $0xa0] sm:$0xff] %vm211, %v352
      %385 = vst.msk [vmem:[#allocation4 + $0xa8] sm:$0xff] %vm211, %v353
      %386 = vst.msk [vmem:[#allocation4 + $0xb0] sm:$0xff] %vm211, %v354
      %387 = vst.msk [vmem:[#allocation4 + $0xb8] sm:$0xff] %vm211, %v355
      %388 = vst.msk [vmem:[#allocation4 + $0xc0] sm:$0xff] %vm211, %v356
      %389 = vst.msk [vmem:[#allocation4 + $0xc8] sm:$0xff] %vm211, %v357
      %390 = vst.msk [vmem:[#allocation4 + $0xd0] sm:$0xff] %vm211, %v358
      %391 = vst.msk [vmem:[#allocation4 + $0xd8] sm:$0xff] %vm211, %v359
      %392 = vst.msk [vmem:[#allocation4 + $0xe0] sm:$0xff] %vm211, %v360
      %393 = vst.msk [vmem:[#allocation4 + $0xe8] sm:$0xff] %vm211, %v361
      %394 = vst.msk [vmem:[#allocation4 + $0xf0] sm:$0xff] %vm211, %v362
      %395 = vst.msk [vmem:[#allocation4 + $0xf8] sm:$0xff] %vm211, %v363
      %v396 = vld [vmem:[#allocation2 + $0x1] sm:$0xff]
      %v397 = vld [vmem:[#allocation2 + $0x9] sm:$0xff]
      %v398 = vld [vmem:[#allocation2 + $0x19] sm:$0xff]
      %v399 = vld [vmem:[#allocation2 + $0x21] sm:$0xff]
      %v400 = vld [vmem:[#allocation2 + $0x31] sm:$0xff]
      %v401 = vld [vmem:[#allocation2 + $0x39] sm:$0xff]
      %v402 = vld [vmem:[#allocation2 + $0x49] sm:$0xff]
      %v403 = vld [vmem:[#allocation2 + $0x51] sm:$0xff]
      %v404 = vld [vmem:[#allocation2 + $0x61] sm:$0xff]
      %v405 = vld [vmem:[#allocation2 + $0x69] sm:$0xff]
      %v406 = vld [vmem:[#allocation2 + $0x79] sm:$0xff]
      %v407 = vld [vmem:[#allocation2 + $0x81] sm:$0xff]
      %v408 = vld [vmem:[#allocation2 + $0x91] sm:$0xff]
      %v409 = vld [vmem:[#allocation2 + $0x99] sm:$0xff]
      %v410 = vld [vmem:[#allocation2 + $0xa9] sm:$0xff]
      %v411 = vld [vmem:[#allocation2 + $0xb1] sm:$0xff]
      %v412 = vld [vmem:[#allocation2 + $0xc1] sm:$0xff]
      %v413 = vld [vmem:[#allocation2 + $0xc9] sm:$0xff]
      %v414 = vld [vmem:[#allocation2 + $0xd9] sm:$0xff]
      %v415 = vld [vmem:[#allocation2 + $0xe1] sm:$0xff]
      %v416 = vld [vmem:[#allocation2 + $0xf1] sm:$0xff]
      %v417 = vld [vmem:[#allocation2 + $0xf9] sm:$0xff]
      %v418 = vld [vmem:[#allocation2 + $0x109] sm:$0xff]
      %v419 = vld [vmem:[#allocation2 + $0x111] sm:$0xff]
      %v420 = vld [vmem:[#allocation2 + $0x121] sm:$0xff]
      %v421 = vld [vmem:[#allocation2 + $0x129] sm:$0xff]
      %v422 = vld [vmem:[#allocation2 + $0x139] sm:$0xff]
      %v423 = vld [vmem:[#allocation2 + $0x141] sm:$0xff]
      %v424 = vld [vmem:[#allocation2 + $0x151] sm:$0xff]
      %v425 = vld [vmem:[#allocation2 + $0x159] sm:$0xff]
      %v426 = vld [vmem:[#allocation2 + $0x169] sm:$0xff]
      %v427 = vld [vmem:[#allocation2 + $0x171] sm:$0xff]
      %460 = vrot.lane.b32.xlu0 %v396, 4
      %v461 = vpop.permute.xlu0 %460
      %462 = vrot.lane.b32.xlu0 %v397, 4
      %v463 = vpop.permute.xlu0 %462
      %464 = vrot.lane.b32.xlu0 %v398, 4
      %v465 = vpop.permute.xlu0 %464
      %466 = vrot.lane.b32.xlu0 %v399, 4
      %v467 = vpop.permute.xlu0 %466
      %468 = vrot.lane.b32.xlu0 %v400, 4
      %v469 = vpop.permute.xlu0 %468
      %470 = vrot.lane.b32.xlu0 %v401, 4
      %v471 = vpop.permute.xlu0 %470
      %472 = vrot.lane.b32.xlu0 %v402, 4
      %v473 = vpop.permute.xlu0 %472
      %474 = vrot.lane.b32.xlu0 %v403, 4
      %v475 = vpop.permute.xlu0 %474
      %476 = vrot.lane.b32.xlu0 %v404, 4
      %v477 = vpop.permute.xlu0 %476
      %478 = vrot.lane.b32.xlu0 %v405, 4
      %v479 = vpop.permute.xlu0 %478
      %480 = vrot.lane.b32.xlu0 %v406, 4
      %v481 = vpop.permute.xlu0 %480
      %482 = vrot.lane.b32.xlu0 %v407, 4
      %v483 = vpop.permute.xlu0 %482
      %484 = vrot.lane.b32.xlu0 %v408, 4
      %v485 = vpop.permute.xlu0 %484
      %486 = vrot.lane.b32.xlu0 %v409, 4
      %v487 = vpop.permute.xlu0 %486
      %488 = vrot.lane.b32.xlu0 %v410, 4
      %v489 = vpop.permute.xlu0 %488
      %490 = vrot.lane.b32.xlu0 %v411, 4
      %v491 = vpop.permute.xlu0 %490
      %492 = vrot.lane.b32.xlu0 %v412, 4
      %v493 = vpop.permute.xlu0 %492
      %494 = vrot.lane.b32.xlu0 %v413, 4
      %v495 = vpop.permute.xlu0 %494
      %496 = vrot.lane.b32.xlu0 %v414, 4
      %v497 = vpop.permute.xlu0 %496
      %498 = vrot.lane.b32.xlu0 %v415, 4
      %v499 = vpop.permute.xlu0 %498
      %500 = vrot.lane.b32.xlu0 %v416, 4
      %v501 = vpop.permute.xlu0 %500
      %502 = vrot.lane.b32.xlu0 %v417, 4
      %v503 = vpop.permute.xlu0 %502
      %504 = vrot.lane.b32.xlu0 %v418, 4
      %v505 = vpop.permute.xlu0 %504
      %506 = vrot.lane.b32.xlu0 %v419, 4
      %v507 = vpop.permute.xlu0 %506
      %508 = vrot.lane.b32.xlu0 %v420, 4
      %v509 = vpop.permute.xlu0 %508
      %510 = vrot.lane.b32.xlu0 %v421, 4
      %v511 = vpop.permute.xlu0 %510
      %512 = vrot.lane.b32.xlu0 %v422, 4
      %v513 = vpop.permute.xlu0 %512
      %514 = vrot.lane.b32.xlu0 %v423, 4
      %v515 = vpop.permute.xlu0 %514
      %516 = vrot.lane.b32.xlu0 %v424, 4
      %v517 = vpop.permute.xlu0 %516
      %518 = vrot.lane.b32.xlu0 %v425, 4
      %v519 = vpop.permute.xlu0 %518
      %520 = vrot.lane.b32.xlu0 %v426, 4
      %v521 = vpop.permute.xlu0 %520
      %522 = vrot.lane.b32.xlu0 %v427, 4
      %v523 = vpop.permute.xlu0 %522
      %vm556 = vcmask 64544
      %557 = vst.msk [vmem:[#allocation4] sm:$0xff] %vm556, %v461
      %558 = vst.msk [vmem:[#allocation4 + $0x8] sm:$0xff] %vm556, %v463
      %559 = vst.msk [vmem:[#allocation4 + $0x10] sm:$0xff] %vm556, %v465
      %560 = vst.msk [vmem:[#allocation4 + $0x18] sm:$0xff] %vm556, %v467
      %561 = vst.msk [vmem:[#allocation4 + $0x20] sm:$0xff] %vm556, %v469
      %562 = vst.msk [vmem:[#allocation4 + $0x28] sm:$0xff] %vm556, %v471
      %563 = vst.msk [vmem:[#allocation4 + $0x30] sm:$0xff] %vm556, %v473
      %564 = vst.msk [vmem:[#allocation4 + $0x38] sm:$0xff] %vm556, %v475
      %565 = vst.msk [vmem:[#allocation4 + $0x40] sm:$0xff] %vm556, %v477
      %566 = vst.msk [vmem:[#allocation4 + $0x48] sm:$0xff] %vm556, %v479
      %567 = vst.msk [vmem:[#allocation4 + $0x50] sm:$0xff] %vm556, %v481
      %568 = vst.msk [vmem:[#allocation4 + $0x58] sm:$0xff] %vm556, %v483
      %569 = vst.msk [vmem:[#allocation4 + $0x60] sm:$0xff] %vm556, %v485
      %570 = vst.msk [vmem:[#allocation4 + $0x68] sm:$0xff] %vm556, %v487
      %571 = vst.msk [vmem:[#allocation4 + $0x70] sm:$0xff] %vm556, %v489
      %572 = vst.msk [vmem:[#allocation4 + $0x78] sm:$0xff] %vm556, %v491
      %573 = vst.msk [vmem:[#allocation4 + $0x80] sm:$0xff] %vm556, %v493
      %574 = vst.msk [vmem:[#allocation4 + $0x88] sm:$0xff] %vm556, %v495
      %575 = vst.msk [vmem:[#allocation4 + $0x90] sm:$0xff] %vm556, %v497
      %576 = vst.msk [vmem:[#allocation4 + $0x98] sm:$0xff] %vm556, %v499
      %577 = vst.msk [vmem:[#allocation4 + $0xa0] sm:$0xff] %vm556, %v501
      %578 = vst.msk [vmem:[#allocation4 + $0xa8] sm:$0xff] %vm556, %v503
      %579 = vst.msk [vmem:[#allocation4 + $0xb0] sm:$0xff] %vm556, %v505
      %580 = vst.msk [vmem:[#allocation4 + $0xb8] sm:$0xff] %vm556, %v507
      %581 = vst.msk [vmem:[#allocation4 + $0xc0] sm:$0xff] %vm556, %v509
      %582 = vst.msk [vmem:[#allocation4 + $0xc8] sm:$0xff] %vm556, %v511
      %583 = vst.msk [vmem:[#allocation4 + $0xd0] sm:$0xff] %vm556, %v513
      %584 = vst.msk [vmem:[#allocation4 + $0xd8] sm:$0xff] %vm556, %v515
      %585 = vst.msk [vmem:[#allocation4 + $0xe0] sm:$0xff] %vm556, %v517
      %586 = vst.msk [vmem:[#allocation4 + $0xe8] sm:$0xff] %vm556, %v519
      %587 = vst.msk [vmem:[#allocation4 + $0xf0] sm:$0xff] %vm556, %v521
      %588 = vst.msk [vmem:[#allocation4 + $0xf8] sm:$0xff] %vm556, %v523
      %v589 = vld [vmem:[#allocation2 + $0x2] sm:$0xff]
      %v590 = vld [vmem:[#allocation2 + $0xa] sm:$0xff]
      %v591 = vld [vmem:[#allocation2 + $0x1a] sm:$0xff]
      %v592 = vld [vmem:[#allocation2 + $0x22] sm:$0xff]
      %v593 = vld [vmem:[#allocation2 + $0x32] sm:$0xff]
      %v594 = vld [vmem:[#allocation2 + $0x3a] sm:$0xff]
      %v595 = vld [vmem:[#allocation2 + $0x4a] sm:$0xff]
      %v596 = vld [vmem:[#allocation2 + $0x52] sm:$0xff]
      %v597 = vld [vmem:[#allocation2 + $0x62] sm:$0xff]
      %v598 = vld [vmem:[#allocation2 + $0x6a] sm:$0xff]
      %v599 = vld [vmem:[#allocation2 + $0x7a] sm:$0xff]
      %v600 = vld [vmem:[#allocation2 + $0x82] sm:$0xff]
      %v601 = vld [vmem:[#allocation2 + $0x92] sm:$0xff]
      %v602 = vld [vmem:[#allocation2 + $0x9a] sm:$0xff]
      %v603 = vld [vmem:[#allocation2 + $0xaa] sm:$0xff]
      %v604 = vld [vmem:[#allocation2 + $0xb2] sm:$0xff]
      %v605 = vld [vmem:[#allocation2 + $0xc2] sm:$0xff]
      %v606 = vld [vmem:[#allocation2 + $0xca] sm:$0xff]
      %v607 = vld [vmem:[#allocation2 + $0xda] sm:$0xff]
      %v608 = vld [vmem:[#allocation2 + $0xe2] sm:$0xff]
      %v609 = vld [vmem:[#allocation2 + $0xf2] sm:$0xff]
      %v610 = vld [vmem:[#allocation2 + $0xfa] sm:$0xff]
      %v611 = vld [vmem:[#allocation2 + $0x10a] sm:$0xff]
      %v612 = vld [vmem:[#allocation2 + $0x112] sm:$0xff]
      %v613 = vld [vmem:[#allocation2 + $0x122] sm:$0xff]
      %v614 = vld [vmem:[#allocation2 + $0x12a] sm:$0xff]
      %v615 = vld [vmem:[#allocation2 + $0x13a] sm:$0xff]
      %v616 = vld [vmem:[#allocation2 + $0x142] sm:$0xff]
      %v617 = vld [vmem:[#allocation2 + $0x152] sm:$0xff]
      %v618 = vld [vmem:[#allocation2 + $0x15a] sm:$0xff]
      %v619 = vld [vmem:[#allocation2 + $0x16a] sm:$0xff]
      %v620 = vld [vmem:[#allocation2 + $0x172] sm:$0xff]
      %653 = vrot.lane.b32.xlu0 %v589, 8
      %v654 = vpop.permute.xlu0 %653
      %655 = vrot.lane.b32.xlu0 %v590, 8
      %v656 = vpop.permute.xlu0 %655
      %657 = vrot.lane.b32.xlu0 %v591, 8
      %v658 = vpop.permute.xlu0 %657
      %659 = vrot.lane.b32.xlu0 %v592, 8
      %v660 = vpop.permute.xlu0 %659
      %661 = vrot.lane.b32.xlu0 %v593, 8
      %v662 = vpop.permute.xlu0 %661
      %663 = vrot.lane.b32.xlu0 %v594, 8
      %v664 = vpop.permute.xlu0 %663
      %665 = vrot.lane.b32.xlu0 %v595, 8
      %v666 = vpop.permute.xlu0 %665
      %667 = vrot.lane.b32.xlu0 %v596, 8
      %v668 = vpop.permute.xlu0 %667
      %669 = vrot.lane.b32.xlu0 %v597, 8
      %v670 = vpop.permute.xlu0 %669
      %671 = vrot.lane.b32.xlu0 %v598, 8
      %v672 = vpop.permute.xlu0 %671
      %673 = vrot.lane.b32.xlu0 %v599, 8
      %v674 = vpop.permute.xlu0 %673
      %675 = vrot.lane.b32.xlu0 %v600, 8
      %v676 = vpop.permute.xlu0 %675
      %677 = vrot.lane.b32.xlu0 %v601, 8
      %v678 = vpop.permute.xlu0 %677
      %679 = vrot.lane.b32.xlu0 %v602, 8
      %v680 = vpop.permute.xlu0 %679
      %681 = vrot.lane.b32.xlu0 %v603, 8
      %v682 = vpop.permute.xlu0 %681
      %683 = vrot.lane.b32.xlu0 %v604, 8
      %v684 = vpop.permute.xlu0 %683
      %685 = vrot.lane.b32.xlu0 %v605, 8
      %v686 = vpop.permute.xlu0 %685
      %687 = vrot.lane.b32.xlu0 %v606, 8
      %v688 = vpop.permute.xlu0 %687
      %689 = vrot.lane.b32.xlu0 %v607, 8
      %v690 = vpop.permute.xlu0 %689
      %691 = vrot.lane.b32.xlu0 %v608, 8
      %v692 = vpop.permute.xlu0 %691
      %693 = vrot.lane.b32.xlu0 %v609, 8
      %v694 = vpop.permute.xlu0 %693
      %695 = vrot.lane.b32.xlu0 %v610, 8
      %v696 = vpop.permute.xlu0 %695
      %697 = vrot.lane.b32.xlu0 %v611, 8
      %v698 = vpop.permute.xlu0 %697
      %699 = vrot.lane.b32.xlu0 %v612, 8
      %v700 = vpop.permute.xlu0 %699
      %701 = vrot.lane.b32.xlu0 %v613, 8
      %v702 = vpop.permute.xlu0 %701
      %703 = vrot.lane.b32.xlu0 %v614, 8
      %v704 = vpop.permute.xlu0 %703
      %705 = vrot.lane.b32.xlu0 %v615, 8
      %v706 = vpop.permute.xlu0 %705
      %707 = vrot.lane.b32.xlu0 %v616, 8
      %v708 = vpop.permute.xlu0 %707
      %709 = vrot.lane.b32.xlu0 %v617, 8
      %v710 = vpop.permute.xlu0 %709
      %711 = vrot.lane.b32.xlu0 %v618, 8
      %v712 = vpop.permute.xlu0 %711
      %713 = vrot.lane.b32.xlu0 %v619, 8
      %v714 = vpop.permute.xlu0 %713
      %715 = vrot.lane.b32.xlu0 %v620, 8
      %v716 = vpop.permute.xlu0 %715
      %vm749 = vcmask 97344
      %750 = vst.msk [vmem:[#allocation4] sm:$0xff] %vm749, %v654
      %751 = vst.msk [vmem:[#allocation4 + $0x8] sm:$0xff] %vm749, %v656
      %752 = vst.msk [vmem:[#allocation4 + $0x10] sm:$0xff] %vm749, %v658
      %753 = vst.msk [vmem:[#allocation4 + $0x18] sm:$0xff] %vm749, %v660
      %754 = vst.msk [vmem:[#allocation4 + $0x20] sm:$0xff] %vm749, %v662
      %755 = vst.msk [vmem:[#allocation4 + $0x28] sm:$0xff] %vm749, %v664
      %756 = vst.msk [vmem:[#allocation4 + $0x30] sm:$0xff] %vm749, %v666
      %757 = vst.msk [vmem:[#allocation4 + $0x38] sm:$0xff] %vm749, %v668
      %758 = vst.msk [vmem:[#allocation4 + $0x40] sm:$0xff] %vm749, %v670
      %759 = vst.msk [vmem:[#allocation4 + $0x48] sm:$0xff] %vm749, %v672
      %760 = vst.msk [vmem:[#allocation4 + $0x50] sm:$0xff] %vm749, %v674
      %761 = vst.msk [vmem:[#allocation4 + $0x58] sm:$0xff] %vm749, %v676
      %762 = vst.msk [vmem:[#allocation4 + $0x60] sm:$0xff] %vm749, %v678
      %763 = vst.msk [vmem:[#allocation4 + $0x68] sm:$0xff] %vm749, %v680
      %764 = vst.msk [vmem:[#allocation4 + $0x70] sm:$0xff] %vm749, %v682
      %765 = vst.msk [vmem:[#allocation4 + $0x78] sm:$0xff] %vm749, %v684
      %766 = vst.msk [vmem:[#allocation4 + $0x80] sm:$0xff] %vm749, %v686
      %767 = vst.msk [vmem:[#allocation4 + $0x88] sm:$0xff] %vm749, %v688
      %768 = vst.msk [vmem:[#allocation4 + $0x90] sm:$0xff] %vm749, %v690
      %769 = vst.msk [vmem:[#allocation4 + $0x98] sm:$0xff] %vm749, %v692
      %770 = vst.msk [vmem:[#allocation4 + $0xa0] sm:$0xff] %vm749, %v694
      %771 = vst.msk [vmem:[#allocation4 + $0xa8] sm:$0xff] %vm749, %v696
      %772 = vst.msk [vmem:[#allocation4 + $0xb0] sm:$0xff] %vm749, %v698
      %773 = vst.msk [vmem:[#allocation4 + $0xb8] sm:$0xff] %vm749, %v700
      %774 = vst.msk [vmem:[#allocation4 + $0xc0] sm:$0xff] %vm749, %v702
      %775 = vst.msk [vmem:[#allocation4 + $0xc8] sm:$0xff] %vm749, %v704
      %776 = vst.msk [vmem:[#allocation4 + $0xd0] sm:$0xff] %vm749, %v706
      %777 = vst.msk [vmem:[#allocation4 + $0xd8] sm:$0xff] %vm749, %v708
      %778 = vst.msk [vmem:[#allocation4 + $0xe0] sm:$0xff] %vm749, %v710
      %779 = vst.msk [vmem:[#allocation4 + $0xe8] sm:$0xff] %vm749, %v712
      %780 = vst.msk [vmem:[#allocation4 + $0xf0] sm:$0xff] %vm749, %v714
      %781 = vst.msk [vmem:[#allocation4 + $0xf8] sm:$0xff] %vm749, %v716
      %v782 = vld [vmem:[%s299] sm:$0xff]
      %v783 = vld [vmem:[%s299 + $0x8] sm:$0xff]
      %v784 = vld [vmem:[%s299 + $0x18] sm:$0xff]
      %v785 = vld [vmem:[%s299 + $0x20] sm:$0xff]
      %v786 = vld [vmem:[%s299 + $0x30] sm:$0xff]
      %v787 = vld [vmem:[%s299 + $0x38] sm:$0xff]
      %v788 = vld [vmem:[%s299 + $0x48] sm:$0xff]
      %v789 = vld [vmem:[%s299 + $0x50] sm:$0xff]
      %v790 = vld [vmem:[%s299 + $0x60] sm:$0xff]
      %v791 = vld [vmem:[%s299 + $0x68] sm:$0xff]
      %v792 = vld [vmem:[%s299 + $0x78] sm:$0xff]
      %v793 = vld [vmem:[%s299 + $0x80] sm:$0xff]
      %v794 = vld [vmem:[%s299 + $0x90] sm:$0xff]
      %v795 = vld [vmem:[%s299 + $0x98] sm:$0xff]
      %v796 = vld [vmem:[%s299 + $0xa8] sm:$0xff]
      %v797 = vld [vmem:[%s299 + $0xb0] sm:$0xff]
      %v798 = vld [vmem:[%s299 + $0xc0] sm:$0xff]
      %v799 = vld [vmem:[%s299 + $0xc8] sm:$0xff]
      %v800 = vld [vmem:[%s299 + $0xd8] sm:$0xff]
      %v801 = vld [vmem:[%s299 + $0xe0] sm:$0xff]
      %v802 = vld [vmem:[%s299 + $0xf0] sm:$0xff]
      %v803 = vld [vmem:[%s299 + $0xf8] sm:$0xff]
      %v804 = vld [vmem:[%s299 + $0x108] sm:$0xff]
      %v805 = vld [vmem:[%s299 + $0x110] sm:$0xff]
      %v806 = vld [vmem:[%s299 + $0x120] sm:$0xff]
      %v807 = vld [vmem:[%s299 + $0x128] sm:$0xff]
      %v808 = vld [vmem:[%s299 + $0x138] sm:$0xff]
      %v809 = vld [vmem:[%s299 + $0x140] sm:$0xff]
      %v810 = vld [vmem:[%s299 + $0x150] sm:$0xff]
      %v811 = vld [vmem:[%s299 + $0x158] sm:$0xff]
      %v812 = vld [vmem:[%s299 + $0x168] sm:$0xff]
      %v813 = vld [vmem:[%s299 + $0x170] sm:$0xff]
      %846 = vrot.lane.b32.xlu0 %v782, 12
      %v847 = vpop.permute.xlu0 %846
      %848 = vrot.lane.b32.xlu0 %v783, 12
      %v849 = vpop.permute.xlu0 %848
      %850 = vrot.lane.b32.xlu0 %v784, 12
      %v851 = vpop.permute.xlu0 %850
      %852 = vrot.lane.b32.xlu0 %v785, 12
      %v853 = vpop.permute.xlu0 %852
      %854 = vrot.lane.b32.xlu0 %v786, 12
      %v855 = vpop.permute.xlu0 %854
      %856 = vrot.lane.b32.xlu0 %v787, 12
      %v857 = vpop.permute.xlu0 %856
      %858 = vrot.lane.b32.xlu0 %v788, 12
      %v859 = vpop.permute.xlu0 %858
      %860 = vrot.lane.b32.xlu0 %v789, 12
      %v861 = vpop.permute.xlu0 %860
      %862 = vrot.lane.b32.xlu0 %v790, 12
      %v863 = vpop.permute.xlu0 %862
      %864 = vrot.lane.b32.xlu0 %v791, 12
      %v865 = vpop.permute.xlu0 %864
      %866 = vrot.lane.b32.xlu0 %v792, 12
      %v867 = vpop.permute.xlu0 %866
      %868 = vrot.lane.b32.xlu0 %v793, 12
      %v869 = vpop.permute.xlu0 %868
      %870 = vrot.lane.b32.xlu0 %v794, 12
      %v871 = vpop.permute.xlu0 %870
      %872 = vrot.lane.b32.xlu0 %v795, 12
      %v873 = vpop.permute.xlu0 %872
      %874 = vrot.lane.b32.xlu0 %v796, 12
      %v875 = vpop.permute.xlu0 %874
      %876 = vrot.lane.b32.xlu0 %v797, 12
      %v877 = vpop.permute.xlu0 %876
      %878 = vrot.lane.b32.xlu0 %v798, 12
      %v879 = vpop.permute.xlu0 %878
      %880 = vrot.lane.b32.xlu0 %v799, 12
      %v881 = vpop.permute.xlu0 %880
      %882 = vrot.lane.b32.xlu0 %v800, 12
      %v883 = vpop.permute.xlu0 %882
      %884 = vrot.lane.b32.xlu0 %v801, 12
      %v885 = vpop.permute.xlu0 %884
      %886 = vrot.lane.b32.xlu0 %v802, 12
      %v887 = vpop.permute.xlu0 %886
      %888 = vrot.lane.b32.xlu0 %v803, 12
      %v889 = vpop.permute.xlu0 %888
      %890 = vrot.lane.b32.xlu0 %v804, 12
      %v891 = vpop.permute.xlu0 %890
      %892 = vrot.lane.b32.xlu0 %v805, 12
      %v893 = vpop.permute.xlu0 %892
      %894 = vrot.lane.b32.xlu0 %v806, 12
      %v895 = vpop.permute.xlu0 %894
      %896 = vrot.lane.b32.xlu0 %v807, 12
      %v897 = vpop.permute.xlu0 %896
      %898 = vrot.lane.b32.xlu0 %v808, 12
      %v899 = vpop.permute.xlu0 %898
      %900 = vrot.lane.b32.xlu0 %v809, 12
      %v901 = vpop.permute.xlu0 %900
      %902 = vrot.lane.b32.xlu0 %v810, 12
      %v903 = vpop.permute.xlu0 %902
      %904 = vrot.lane.b32.xlu0 %v811, 12
      %v905 = vpop.permute.xlu0 %904
      %906 = vrot.lane.b32.xlu0 %v812, 12
      %v907 = vpop.permute.xlu0 %906
      %908 = vrot.lane.b32.xlu0 %v813, 12
      %v909 = vpop.permute.xlu0 %908
      %vm942 = vcmask 130144
      %943 = vst.msk [vmem:[#allocation4] sm:$0xff] %vm942, %v847
      %944 = vst.msk [vmem:[#allocation4 + $0x8] sm:$0xff] %vm942, %v849
      %945 = vst.msk [vmem:[#allocation4 + $0x10] sm:$0xff] %vm942, %v851
      %946 = vst.msk [vmem:[#allocation4 + $0x18] sm:$0xff] %vm942, %v853
      %947 = vst.msk [vmem:[#allocation4 + $0x20] sm:$0xff] %vm942, %v855
      %948 = vst.msk [vmem:[#allocation4 + $0x28] sm:$0xff] %vm942, %v857
      %949 = vst.msk [vmem:[#allocation4 + $0x30] sm:$0xff] %vm942, %v859
      %950 = vst.msk [vmem:[#allocation4 + $0x38] sm:$0xff] %vm942, %v861
      %951 = vst.msk [vmem:[#allocation4 + $0x40] sm:$0xff] %vm942, %v863
      %952 = vst.msk [vmem:[#allocation4 + $0x48] sm:$0xff] %vm942, %v865
      %953 = vst.msk [vmem:[#allocation4 + $0x50] sm:$0xff] %vm942, %v867
      %954 = vst.msk [vmem:[#allocation4 + $0x58] sm:$0xff] %vm942, %v869
      %955 = vst.msk [vmem:[#allocation4 + $0x60] sm:$0xff] %vm942, %v871
      %956 = vst.msk [vmem:[#allocation4 + $0x68] sm:$0xff] %vm942, %v873
      %957 = vst.msk [vmem:[#allocation4 + $0x70] sm:$0xff] %vm942, %v875
      %958 = vst.msk [vmem:[#allocation4 + $0x78] sm:$0xff] %vm942, %v877
      %959 = vst.msk [vmem:[#allocation4 + $0x80] sm:$0xff] %vm942, %v879
      %960 = vst.msk [vmem:[#allocation4 + $0x88] sm:$0xff] %vm942, %v881
      %961 = vst.msk [vmem:[#allocation4 + $0x90] sm:$0xff] %vm942, %v883
      %962 = vst.msk [vmem:[#allocation4 + $0x98] sm:$0xff] %vm942, %v885
      %963 = vst.msk [vmem:[#allocation4 + $0xa0] sm:$0xff] %vm942, %v887
      %964 = vst.msk [vmem:[#allocation4 + $0xa8] sm:$0xff] %vm942, %v889
      %965 = vst.msk [vmem:[#allocation4 + $0xb0] sm:$0xff] %vm942, %v891
      %966 = vst.msk [vmem:[#allocation4 + $0xb8] sm:$0xff] %vm942, %v893
      %967 = vst.msk [vmem:[#allocation4 + $0xc0] sm:$0xff] %vm942, %v895
      %968 = vst.msk [vmem:[#allocation4 + $0xc8] sm:$0xff] %vm942, %v897
      %969 = vst.msk [vmem:[#allocation4 + $0xd0] sm:$0xff] %vm942, %v899
      %970 = vst.msk [vmem:[#allocation4 + $0xd8] sm:$0xff] %vm942, %v901
      %971 = vst.msk [vmem:[#allocation4 + $0xe0] sm:$0xff] %vm942, %v903
      %972 = vst.msk [vmem:[#allocation4 + $0xe8] sm:$0xff] %vm942, %v905
      %973 = vst.msk [vmem:[#allocation4 + $0xf0] sm:$0xff] %vm942, %v907
      %974 = vst.msk [vmem:[#allocation4 + $0xf8] sm:$0xff] %vm942, %v909
      %v975 = vld [vmem:[%s299 + $0x1] sm:$0xff]
      %v976 = vld [vmem:[%s299 + $0x9] sm:$0xff]
      %v977 = vld [vmem:[%s299 + $0x19] sm:$0xff]
      %v978 = vld [vmem:[%s299 + $0x21] sm:$0xff]
      %v979 = vld [vmem:[%s299 + $0x31] sm:$0xff]
      %v980 = vld [vmem:[%s299 + $0x39] sm:$0xff]
      %v981 = vld [vmem:[%s299 + $0x49] sm:$0xff]
      %v982 = vld [vmem:[%s299 + $0x51] sm:$0xff]
      %v983 = vld [vmem:[%s299 + $0x61] sm:$0xff]
      %v984 = vld [vmem:[%s299 + $0x69] sm:$0xff]
      %v985 = vld [vmem:[%s299 + $0x79] sm:$0xff]
      %v986 = vld [vmem:[%s299 + $0x81] sm:$0xff]
      %v987 = vld [vmem:[%s299 + $0x91] sm:$0xff]
      %v988 = vld [vmem:[%s299 + $0x99] sm:$0xff]
      %v989 = vld [vmem:[%s299 + $0xa9] sm:$0xff]
      %v990 = vld [vmem:[%s299 + $0xb1] sm:$0xff]
      %v991 = vld [vmem:[%s299 + $0xc1] sm:$0xff]
      %v992 = vld [vmem:[%s299 + $0xc9] sm:$0xff]
      %v993 = vld [vmem:[%s299 + $0xd9] sm:$0xff]
      %v994 = vld [vmem:[%s299 + $0xe1] sm:$0xff]
      %v995 = vld [vmem:[%s299 + $0xf1] sm:$0xff]
      %v996 = vld [vmem:[%s299 + $0xf9] sm:$0xff]
      %v997 = vld [vmem:[%s299 + $0x109] sm:$0xff]
      %v998 = vld [vmem:[%s299 + $0x111] sm:$0xff]
      %v999 = vld [vmem:[%s299 + $0x121] sm:$0xff]
      %v1000 = vld [vmem:[%s299 + $0x129] sm:$0xff]
      %v1001 = vld [vmem:[%s299 + $0x139] sm:$0xff]
      %v1002 = vld [vmem:[%s299 + $0x141] sm:$0xff]
      %v1003 = vld [vmem:[%s299 + $0x151] sm:$0xff]
      %v1004 = vld [vmem:[%s299 + $0x159] sm:$0xff]
      %v1005 = vld [vmem:[%s299 + $0x169] sm:$0xff]
      %v1006 = vld [vmem:[%s299 + $0x171] sm:$0xff]
      %1039 = vrot.lane.b32.xlu0 %v975, 16
      %v1040 = vpop.permute.xlu0 %1039
      %1041 = vrot.lane.b32.xlu0 %v976, 16
      %v1042 = vpop.permute.xlu0 %1041
      %1043 = vrot.lane.b32.xlu0 %v977, 16
      %v1044 = vpop.permute.xlu0 %1043
      %1045 = vrot.lane.b32.xlu0 %v978, 16
      %v1046 = vpop.permute.xlu0 %1045
      %1047 = vrot.lane.b32.xlu0 %v979, 16
      %v1048 = vpop.permute.xlu0 %1047
      %1049 = vrot.lane.b32.xlu0 %v980, 16
      %v1050 = vpop.permute.xlu0 %1049
      %1051 = vrot.lane.b32.xlu0 %v981, 16
      %v1052 = vpop.permute.xlu0 %1051
      %1053 = vrot.lane.b32.xlu0 %v982, 16
      %v1054 = vpop.permute.xlu0 %1053
      %1055 = vrot.lane.b32.xlu0 %v983, 16
      %v1056 = vpop.permute.xlu0 %1055
      %1057 = vrot.lane.b32.xlu0 %v984, 16
      %v1058 = vpop.permute.xlu0 %1057
      %1059 = vrot.lane.b32.xlu0 %v985, 16
      %v1060 = vpop.permute.xlu0 %1059
      %1061 = vrot.lane.b32.xlu0 %v986, 16
      %v1062 = vpop.permute.xlu0 %1061
      %1063 = vrot.lane.b32.xlu0 %v987, 16
      %v1064 = vpop.permute.xlu0 %1063
      %1065 = vrot.lane.b32.xlu0 %v988, 16
      %v1066 = vpop.permute.xlu0 %1065
      %1067 = vrot.lane.b32.xlu0 %v989, 16
      %v1068 = vpop.permute.xlu0 %1067
      %1069 = vrot.lane.b32.xlu0 %v990, 16
      %v1070 = vpop.permute.xlu0 %1069
      %1071 = vrot.lane.b32.xlu0 %v991, 16
      %v1072 = vpop.permute.xlu0 %1071
      %1073 = vrot.lane.b32.xlu0 %v992, 16
      %v1074 = vpop.permute.xlu0 %1073
      %1075 = vrot.lane.b32.xlu0 %v993, 16
      %v1076 = vpop.permute.xlu0 %1075
      %1077 = vrot.lane.b32.xlu0 %v994, 16
      %v1078 = vpop.permute.xlu0 %1077
      %1079 = vrot.lane.b32.xlu0 %v995, 16
      %v1080 = vpop.permute.xlu0 %1079
      %1081 = vrot.lane.b32.xlu0 %v996, 16
      %v1082 = vpop.permute.xlu0 %1081
      %1083 = vrot.lane.b32.xlu0 %v997, 16
      %v1084 = vpop.permute.xlu0 %1083
      %1085 = vrot.lane.b32.xlu0 %v998, 16
      %v1086 = vpop.permute.xlu0 %1085
      %1087 = vrot.lane.b32.xlu0 %v999, 16
      %v1088 = vpop.permute.xlu0 %1087
      %1089 = vrot.lane.b32.xlu0 %v1000, 16
      %v1090 = vpop.permute.xlu0 %1089
      %1091 = vrot.lane.b32.xlu0 %v1001, 16
      %v1092 = vpop.permute.xlu0 %1091
      %1093 = vrot.lane.b32.xlu0 %v1002, 16
      %v1094 = vpop.permute.xlu0 %1093
      %1095 = vrot.lane.b32.xlu0 %v1003, 16
      %v1096 = vpop.permute.xlu0 %1095
      %1097 = vrot.lane.b32.xlu0 %v1004, 16
      %v1098 = vpop.permute.xlu0 %1097
      %1099 = vrot.lane.b32.xlu0 %v1005, 16
      %v1100 = vpop.permute.xlu0 %1099
      %1101 = vrot.lane.b32.xlu0 %v1006, 16
      %v1102 = vpop.permute.xlu0 %1101
      %vm1135 = vcmask 162944
      %1136 = vst.msk [vmem:[#allocation4] sm:$0xff] %vm1135, %v1040
      %1137 = vst.msk [vmem:[#allocation4 + $0x8] sm:$0xff] %vm1135, %v1042
      %1138 = vst.msk [vmem:[#allocation4 + $0x10] sm:$0xff] %vm1135, %v1044
      %1139 = vst.msk [vmem:[#allocation4 + $0x18] sm:$0xff] %vm1135, %v1046
      %1140 = vst.msk [vmem:[#allocation4 + $0x20] sm:$0xff] %vm1135, %v1048
      %1141 = vst.msk [vmem:[#allocation4 + $0x28] sm:$0xff] %vm1135, %v1050
      %1142 = vst.msk [vmem:[#allocation4 + $0x30] sm:$0xff] %vm1135, %v1052
      %1143 = vst.msk [vmem:[#allocation4 + $0x38] sm:$0xff] %vm1135, %v1054
      %1144 = vst.msk [vmem:[#allocation4 + $0x40] sm:$0xff] %vm1135, %v1056
      %1145 = vst.msk [vmem:[#allocation4 + $0x48] sm:$0xff] %vm1135, %v1058
      %1146 = vst.msk [vmem:[#allocation4 + $0x50] sm:$0xff] %vm1135, %v1060
      %1147 = vst.msk [vmem:[#allocation4 + $0x58] sm:$0xff] %vm1135, %v1062
      %1148 = vst.msk [vmem:[#allocation4 + $0x60] sm:$0xff] %vm1135, %v1064
      %1149 = vst.msk [vmem:[#allocation4 + $0x68] sm:$0xff] %vm1135, %v1066
      %1150 = vst.msk [vmem:[#allocation4 + $0x70] sm:$0xff] %vm1135, %v1068
      %1151 = vst.msk [vmem:[#allocation4 + $0x78] sm:$0xff] %vm1135, %v1070
      %1152 = vst.msk [vmem:[#allocation4 + $0x80] sm:$0xff] %vm1135, %v1072
      %1153 = vst.msk [vmem:[#allocation4 + $0x88] sm:$0xff] %vm1135, %v1074
      %1154 = vst.msk [vmem:[#allocation4 + $0x90] sm:$0xff] %vm1135, %v1076
      %1155 = vst.msk [vmem:[#allocation4 + $0x98] sm:$0xff] %vm1135, %v1078
      %1156 = vst.msk [vmem:[#allocation4 + $0xa0] sm:$0xff] %vm1135, %v1080
      %1157 = vst.msk [vmem:[#allocation4 + $0xa8] sm:$0xff] %vm1135, %v1082
      %1158 = vst.msk [vmem:[#allocation4 + $0xb0] sm:$0xff] %vm1135, %v1084
      %1159 = vst.msk [vmem:[#allocation4 + $0xb8] sm:$0xff] %vm1135, %v1086
      %1160 = vst.msk [vmem:[#allocation4 + $0xc0] sm:$0xff] %vm1135, %v1088
      %1161 = vst.msk [vmem:[#allocation4 + $0xc8] sm:$0xff] %vm1135, %v1090
      %1162 = vst.msk [vmem:[#allocation4 + $0xd0] sm:$0xff] %vm1135, %v1092
      %1163 = vst.msk [vmem:[#allocation4 + $0xd8] sm:$0xff] %vm1135, %v1094
      %1164 = vst.msk [vmem:[#allocation4 + $0xe0] sm:$0xff] %vm1135, %v1096
      %1165 = vst.msk [vmem:[#allocation4 + $0xe8] sm:$0xff] %vm1135, %v1098
      %1166 = vst.msk [vmem:[#allocation4 + $0xf0] sm:$0xff] %vm1135, %v1100
      %1167 = vst.msk [vmem:[#allocation4 + $0xf8] sm:$0xff] %vm1135, %v1102
      %v1168 = vld [vmem:[%s299 + $0x2] sm:$0xff]
      %v1169 = vld [vmem:[%s299 + $0xa] sm:$0xff]
      %v1170 = vld [vmem:[%s299 + $0x1a] sm:$0xff]
      %v1171 = vld [vmem:[%s299 + $0x22] sm:$0xff]
      %v1172 = vld [vmem:[%s299 + $0x32] sm:$0xff]
      %v1173 = vld [vmem:[%s299 + $0x3a] sm:$0xff]
      %v1174 = vld [vmem:[%s299 + $0x4a] sm:$0xff]
      %v1175 = vld [vmem:[%s299 + $0x52] sm:$0xff]
      %v1176 = vld [vmem:[%s299 + $0x62] sm:$0xff]
      %v1177 = vld [vmem:[%s299 + $0x6a] sm:$0xff]
      %v1178 = vld [vmem:[%s299 + $0x7a] sm:$0xff]
      %v1179 = vld [vmem:[%s299 + $0x82] sm:$0xff]
      %v1180 = vld [vmem:[%s299 + $0x92] sm:$0xff]
      %v1181 = vld [vmem:[%s299 + $0x9a] sm:$0xff]
      %v1182 = vld [vmem:[%s299 + $0xaa] sm:$0xff]
      %v1183 = vld [vmem:[%s299 + $0xb2] sm:$0xff]
      %v1184 = vld [vmem:[%s299 + $0xc2] sm:$0xff]
      %v1185 = vld [vmem:[%s299 + $0xca] sm:$0xff]
      %v1186 = vld [vmem:[%s299 + $0xda] sm:$0xff]
      %v1187 = vld [vmem:[%s299 + $0xe2] sm:$0xff]
      %v1188 = vld [vmem:[%s299 + $0xf2] sm:$0xff]
      %v1189 = vld [vmem:[%s299 + $0xfa] sm:$0xff]
      %v1190 = vld [vmem:[%s299 + $0x10a] sm:$0xff]
      %v1191 = vld [vmem:[%s299 + $0x112] sm:$0xff]
      %v1192 = vld [vmem:[%s299 + $0x122] sm:$0xff]
      %v1193 = vld [vmem:[%s299 + $0x12a] sm:$0xff]
      %v1194 = vld [vmem:[%s299 + $0x13a] sm:$0xff]
      %v1195 = vld [vmem:[%s299 + $0x142] sm:$0xff]
      %v1196 = vld [vmem:[%s299 + $0x152] sm:$0xff]
      %v1197 = vld [vmem:[%s299 + $0x15a] sm:$0xff]
      %v1198 = vld [vmem:[%s299 + $0x16a] sm:$0xff]
      %v1199 = vld [vmem:[%s299 + $0x172] sm:$0xff]
      %1232 = vrot.lane.b32.xlu0 %v1168, 20
      %v1233 = vpop.permute.xlu0 %1232
      %1234 = vrot.lane.b32.xlu0 %v1169, 20
      %v1235 = vpop.permute.xlu0 %1234
      %1236 = vrot.lane.b32.xlu0 %v1170, 20
      %v1237 = vpop.permute.xlu0 %1236
      %1238 = vrot.lane.b32.xlu0 %v1171, 20
      %v1239 = vpop.permute.xlu0 %1238
      %1240 = vrot.lane.b32.xlu0 %v1172, 20
      %v1241 = vpop.permute.xlu0 %1240
      %1242 = vrot.lane.b32.xlu0 %v1173, 20
      %v1243 = vpop.permute.xlu0 %1242
      %1244 = vrot.lane.b32.xlu0 %v1174, 20
      %v1245 = vpop.permute.xlu0 %1244
      %1246 = vrot.lane.b32.xlu0 %v1175, 20
      %v1247 = vpop.permute.xlu0 %1246
      %1248 = vrot.lane.b32.xlu0 %v1176, 20
      %v1249 = vpop.permute.xlu0 %1248
      %1250 = vrot.lane.b32.xlu0 %v1177, 20
      %v1251 = vpop.permute.xlu0 %1250
      %1252 = vrot.lane.b32.xlu0 %v1178, 20
      %v1253 = vpop.permute.xlu0 %1252
      %1254 = vrot.lane.b32.xlu0 %v1179, 20
      %v1255 = vpop.permute.xlu0 %1254
      %1256 = vrot.lane.b32.xlu0 %v1180, 20
      %v1257 = vpop.permute.xlu0 %1256
      %1258 = vrot.lane.b32.xlu0 %v1181, 20
      %v1259 = vpop.permute.xlu0 %1258
      %1260 = vrot.lane.b32.xlu0 %v1182, 20
      %v1261 = vpop.permute.xlu0 %1260
      %1262 = vrot.lane.b32.xlu0 %v1183, 20
      %v1263 = vpop.permute.xlu0 %1262
      %1264 = vrot.lane.b32.xlu0 %v1184, 20
      %v1265 = vpop.permute.xlu0 %1264
      %1266 = vrot.lane.b32.xlu0 %v1185, 20
      %v1267 = vpop.permute.xlu0 %1266
      %1268 = vrot.lane.b32.xlu0 %v1186, 20
      %v1269 = vpop.permute.xlu0 %1268
      %1270 = vrot.lane.b32.xlu0 %v1187, 20
      %v1271 = vpop.permute.xlu0 %1270
      %1272 = vrot.lane.b32.xlu0 %v1188, 20
      %v1273 = vpop.permute.xlu0 %1272
      %1274 = vrot.lane.b32.xlu0 %v1189, 20
      %v1275 = vpop.permute.xlu0 %1274
      %1276 = vrot.lane.b32.xlu0 %v1190, 20
      %v1277 = vpop.permute.xlu0 %1276
      %1278 = vrot.lane.b32.xlu0 %v1191, 20
      %v1279 = vpop.permute.xlu0 %1278
      %1280 = vrot.lane.b32.xlu0 %v1192, 20
      %v1281 = vpop.permute.xlu0 %1280
      %1282 = vrot.lane.b32.xlu0 %v1193, 20
      %v1283 = vpop.permute.xlu0 %1282
      %1284 = vrot.lane.b32.xlu0 %v1194, 20
      %v1285 = vpop.permute.xlu0 %1284
      %1286 = vrot.lane.b32.xlu0 %v1195, 20
      %v1287 = vpop.permute.xlu0 %1286
      %1288 = vrot.lane.b32.xlu0 %v1196, 20
      %v1289 = vpop.permute.xlu0 %1288
      %1290 = vrot.lane.b32.xlu0 %v1197, 20
      %v1291 = vpop.permute.xlu0 %1290
      %1292 = vrot.lane.b32.xlu0 %v1198, 20
      %v1293 = vpop.permute.xlu0 %1292
      %1294 = vrot.lane.b32.xlu0 %v1199, 20
      %v1295 = vpop.permute.xlu0 %1294
      %vm1328 = vcmask 195744
      %1329 = vst.msk [vmem:[#allocation4] sm:$0xff] %vm1328, %v1233
      %1330 = vst.msk [vmem:[#allocation4 + $0x8] sm:$0xff] %vm1328, %v1235
      %1331 = vst.msk [vmem:[#allocation4 + $0x10] sm:$0xff] %vm1328, %v1237
      %1332 = vst.msk [vmem:[#allocation4 + $0x18] sm:$0xff] %vm1328, %v1239
      %1333 = vst.msk [vmem:[#allocation4 + $0x20] sm:$0xff] %vm1328, %v1241
      %1334 = vst.msk [vmem:[#allocation4 + $0x28] sm:$0xff] %vm1328, %v1243
      %1335 = vst.msk [vmem:[#allocation4 + $0x30] sm:$0xff] %vm1328, %v1245
      %1336 = vst.msk [vmem:[#allocation4 + $0x38] sm:$0xff] %vm1328, %v1247
      %1337 = vst.msk [vmem:[#allocation4 + $0x40] sm:$0xff] %vm1328, %v1249
      %1338 = vst.msk [vmem:[#allocation4 + $0x48] sm:$0xff] %vm1328, %v1251
      %1339 = vst.msk [vmem:[#allocation4 + $0x50] sm:$0xff] %vm1328, %v1253
      %1340 = vst.msk [vmem:[#allocation4 + $0x58] sm:$0xff] %vm1328, %v1255
      %1341 = vst.msk [vmem:[#allocation4 + $0x60] sm:$0xff] %vm1328, %v1257
      %1342 = vst.msk [vmem:[#allocation4 + $0x68] sm:$0xff] %vm1328, %v1259
      %1343 = vst.msk [vmem:[#allocation4 + $0x70] sm:$0xff] %vm1328, %v1261
      %1344 = vst.msk [vmem:[#allocation4 + $0x78] sm:$0xff] %vm1328, %v1263
      %1345 = vst.msk [vmem:[#allocation4 + $0x80] sm:$0xff] %vm1328, %v1265
      %1346 = vst.msk [vmem:[#allocation4 + $0x88] sm:$0xff] %vm1328, %v1267
      %1347 = vst.msk [vmem:[#allocation4 + $0x90] sm:$0xff] %vm1328, %v1269
      %1348 = vst.msk [vmem:[#allocation4 + $0x98] sm:$0xff] %vm1328, %v1271
      %1349 = vst.msk [vmem:[#allocation4 + $0xa0] sm:$0xff] %vm1328, %v1273
      %1350 = vst.msk [vmem:[#allocation4 + $0xa8] sm:$0xff] %vm1328, %v1275
      %1351 = vst.msk [vmem:[#allocation4 + $0xb0] sm:$0xff] %vm1328, %v1277
      %1352 = vst.msk [vmem:[#allocation4 + $0xb8] sm:$0xff] %vm1328, %v1279
      %1353 = vst.msk [vmem:[#allocation4 + $0xc0] sm:$0xff] %vm1328, %v1281
      %1354 = vst.msk [vmem:[#allocation4 + $0xc8] sm:$0xff] %vm1328, %v1283
      %1355 = vst.msk [vmem:[#allocation4 + $0xd0] sm:$0xff] %vm1328, %v1285
      %1356 = vst.msk [vmem:[#allocation4 + $0xd8] sm:$0xff] %vm1328, %v1287
      %1357 = vst.msk [vmem:[#allocation4 + $0xe0] sm:$0xff] %vm1328, %v1289
      %1358 = vst.msk [vmem:[#allocation4 + $0xe8] sm:$0xff] %vm1328, %v1291
      %1359 = vst.msk [vmem:[#allocation4 + $0xf0] sm:$0xff] %vm1328, %v1293
      %1360 = vst.msk [vmem:[#allocation4 + $0xf8] sm:$0xff] %vm1328, %v1295
      %s1361 = scalar_lea.vmem [#allocation2], 48
      %v1362 = vld [vmem:[%s1361] sm:$0xff]
      %v1363 = vld [vmem:[%s1361 + $0x8] sm:$0xff]
      %v1364 = vld [vmem:[%s1361 + $0x18] sm:$0xff]
      %v1365 = vld [vmem:[%s1361 + $0x20] sm:$0xff]
      %v1366 = vld [vmem:[%s1361 + $0x30] sm:$0xff]
      %v1367 = vld [vmem:[%s1361 + $0x38] sm:$0xff]
      %v1368 = vld [vmem:[%s1361 + $0x48] sm:$0xff]
      %v1369 = vld [vmem:[%s1361 + $0x50] sm:$0xff]
      %v1370 = vld [vmem:[%s1361 + $0x60] sm:$0xff]
      %v1371 = vld [vmem:[%s1361 + $0x68] sm:$0xff]
      %v1372 = vld [vmem:[%s1361 + $0x78] sm:$0xff]
      %v1373 = vld [vmem:[%s1361 + $0x80] sm:$0xff]
      %v1374 = vld [vmem:[%s1361 + $0x90] sm:$0xff]
      %v1375 = vld [vmem:[%s1361 + $0x98] sm:$0xff]
      %v1376 = vld [vmem:[%s1361 + $0xa8] sm:$0xff]
      %v1377 = vld [vmem:[%s1361 + $0xb0] sm:$0xff]
      %v1378 = vld [vmem:[%s1361 + $0xc0] sm:$0xff]
      %v1379 = vld [vmem:[%s1361 + $0xc8] sm:$0xff]
      %v1380 = vld [vmem:[%s1361 + $0xd8] sm:$0xff]
      %v1381 = vld [vmem:[%s1361 + $0xe0] sm:$0xff]
      %v1382 = vld [vmem:[%s1361 + $0xf0] sm:$0xff]
      %v1383 = vld [vmem:[%s1361 + $0xf8] sm:$0xff]
      %v1384 = vld [vmem:[%s1361 + $0x108] sm:$0xff]
      %v1385 = vld [vmem:[%s1361 + $0x110] sm:$0xff]
      %v1386 = vld [vmem:[%s1361 + $0x120] sm:$0xff]
      %v1387 = vld [vmem:[%s1361 + $0x128] sm:$0xff]
      %v1388 = vld [vmem:[%s1361 + $0x138] sm:$0xff]
      %v1389 = vld [vmem:[%s1361 + $0x140] sm:$0xff]
      %v1390 = vld [vmem:[%s1361 + $0x150] sm:$0xff]
      %v1391 = vld [vmem:[%s1361 + $0x158] sm:$0xff]
      %v1392 = vld [vmem:[%s1361 + $0x168] sm:$0xff]
      %v1393 = vld [vmem:[%s1361 + $0x170] sm:$0xff]
      %1426 = vrot.lane.b32.xlu0 %v1362, 24
      %v1427 = vpop.permute.xlu0 %1426
      %1428 = vrot.lane.b32.xlu0 %v1363, 24
      %v1429 = vpop.permute.xlu0 %1428
      %1430 = vrot.lane.b32.xlu0 %v1364, 24
      %v1431 = vpop.permute.xlu0 %1430
      %1432 = vrot.lane.b32.xlu0 %v1365, 24
      %v1433 = vpop.permute.xlu0 %1432
      %1434 = vrot.lane.b32.xlu0 %v1366, 24
      %v1435 = vpop.permute.xlu0 %1434
      %1436 = vrot.lane.b32.xlu0 %v1367, 24
      %v1437 = vpop.permute.xlu0 %1436
      %1438 = vrot.lane.b32.xlu0 %v1368, 24
      %v1439 = vpop.permute.xlu0 %1438
      %1440 = vrot.lane.b32.xlu0 %v1369, 24
      %v1441 = vpop.permute.xlu0 %1440
      %1442 = vrot.lane.b32.xlu0 %v1370, 24
      %v1443 = vpop.permute.xlu0 %1442
      %1444 = vrot.lane.b32.xlu0 %v1371, 24
      %v1445 = vpop.permute.xlu0 %1444
      %1446 = vrot.lane.b32.xlu0 %v1372, 24
      %v1447 = vpop.permute.xlu0 %1446
      %1448 = vrot.lane.b32.xlu0 %v1373, 24
      %v1449 = vpop.permute.xlu0 %1448
      %1450 = vrot.lane.b32.xlu0 %v1374, 24
      %v1451 = vpop.permute.xlu0 %1450
      %1452 = vrot.lane.b32.xlu0 %v1375, 24
      %v1453 = vpop.permute.xlu0 %1452
      %1454 = vrot.lane.b32.xlu0 %v1376, 24
      %v1455 = vpop.permute.xlu0 %1454
      %1456 = vrot.lane.b32.xlu0 %v1377, 24
      %v1457 = vpop.permute.xlu0 %1456
      %1458 = vrot.lane.b32.xlu0 %v1378, 24
      %v1459 = vpop.permute.xlu0 %1458
      %1460 = vrot.lane.b32.xlu0 %v1379, 24
      %v1461 = vpop.permute.xlu0 %1460
      %1462 = vrot.lane.b32.xlu0 %v1380, 24
      %v1463 = vpop.permute.xlu0 %1462
      %1464 = vrot.lane.b32.xlu0 %v1381, 24
      %v1465 = vpop.permute.xlu0 %1464
      %1466 = vrot.lane.b32.xlu0 %v1382, 24
      %v1467 = vpop.permute.xlu0 %1466
      %1468 = vrot.lane.b32.xlu0 %v1383, 24
      %v1469 = vpop.permute.xlu0 %1468
      %1470 = vrot.lane.b32.xlu0 %v1384, 24
      %v1471 = vpop.permute.xlu0 %1470
      %1472 = vrot.lane.b32.xlu0 %v1385, 24
      %v1473 = vpop.permute.xlu0 %1472
      %1474 = vrot.lane.b32.xlu0 %v1386, 24
      %v1475 = vpop.permute.xlu0 %1474
      %1476 = vrot.lane.b32.xlu0 %v1387, 24
      %v1477 = vpop.permute.xlu0 %1476
      %1478 = vrot.lane.b32.xlu0 %v1388, 24
      %v1479 = vpop.permute.xlu0 %1478
      %1480 = vrot.lane.b32.xlu0 %v1389, 24
      %v1481 = vpop.permute.xlu0 %1480
      %1482 = vrot.lane.b32.xlu0 %v1390, 24
      %v1483 = vpop.permute.xlu0 %1482
      %1484 = vrot.lane.b32.xlu0 %v1391, 24
      %v1485 = vpop.permute.xlu0 %1484
      %1486 = vrot.lane.b32.xlu0 %v1392, 24
      %v1487 = vpop.permute.xlu0 %1486
      %1488 = vrot.lane.b32.xlu0 %v1393, 24
      %v1489 = vpop.permute.xlu0 %1488
      %vm1522 = vcmask 228544
      %1523 = vst.msk [vmem:[#allocation4] sm:$0xff] %vm1522, %v1427
      %1524 = vst.msk [vmem:[#allocation4 + $0x8] sm:$0xff] %vm1522, %v1429
      %1525 = vst.msk [vmem:[#allocation4 + $0x10] sm:$0xff] %vm1522, %v1431
      %1526 = vst.msk [vmem:[#allocation4 + $0x18] sm:$0xff] %vm1522, %v1433
      %1527 = vst.msk [vmem:[#allocation4 + $0x20] sm:$0xff] %vm1522, %v1435
      %1528 = vst.msk [vmem:[#allocation4 + $0x28] sm:$0xff] %vm1522, %v1437
      %1529 = vst.msk [vmem:[#allocation4 + $0x30] sm:$0xff] %vm1522, %v1439
      %1530 = vst.msk [vmem:[#allocation4 + $0x38] sm:$0xff] %vm1522, %v1441
      %1531 = vst.msk [vmem:[#allocation4 + $0x40] sm:$0xff] %vm1522, %v1443
      %1532 = vst.msk [vmem:[#allocation4 + $0x48] sm:$0xff] %vm1522, %v1445
      %1533 = vst.msk [vmem:[#allocation4 + $0x50] sm:$0xff] %vm1522, %v1447
      %1534 = vst.msk [vmem:[#allocation4 + $0x58] sm:$0xff] %vm1522, %v1449
      %1535 = vst.msk [vmem:[#allocation4 + $0x60] sm:$0xff] %vm1522, %v1451
      %1536 = vst.msk [vmem:[#allocation4 + $0x68] sm:$0xff] %vm1522, %v1453
      %1537 = vst.msk [vmem:[#allocation4 + $0x70] sm:$0xff] %vm1522, %v1455
      %1538 = vst.msk [vmem:[#allocation4 + $0x78] sm:$0xff] %vm1522, %v1457
      %1539 = vst.msk [vmem:[#allocation4 + $0x80] sm:$0xff] %vm1522, %v1459
      %1540 = vst.msk [vmem:[#allocation4 + $0x88] sm:$0xff] %vm1522, %v1461
      %1541 = vst.msk [vmem:[#allocation4 + $0x90] sm:$0xff] %vm1522, %v1463
      %1542 = vst.msk [vmem:[#allocation4 + $0x98] sm:$0xff] %vm1522, %v1465
      %1543 = vst.msk [vmem:[#allocation4 + $0xa0] sm:$0xff] %vm1522, %v1467
      %1544 = vst.msk [vmem:[#allocation4 + $0xa8] sm:$0xff] %vm1522, %v1469
      %1545 = vst.msk [vmem:[#allocation4 + $0xb0] sm:$0xff] %vm1522, %v1471
      %1546 = vst.msk [vmem:[#allocation4 + $0xb8] sm:$0xff] %vm1522, %v1473
      %1547 = vst.msk [vmem:[#allocation4 + $0xc0] sm:$0xff] %vm1522, %v1475
      %1548 = vst.msk [vmem:[#allocation4 + $0xc8] sm:$0xff] %vm1522, %v1477
      %1549 = vst.msk [vmem:[#allocation4 + $0xd0] sm:$0xff] %vm1522, %v1479
      %1550 = vst.msk [vmem:[#allocation4 + $0xd8] sm:$0xff] %vm1522, %v1481
      %1551 = vst.msk [vmem:[#allocation4 + $0xe0] sm:$0xff] %vm1522, %v1483
      %1552 = vst.msk [vmem:[#allocation4 + $0xe8] sm:$0xff] %vm1522, %v1485
      %1553 = vst.msk [vmem:[#allocation4 + $0xf0] sm:$0xff] %vm1522, %v1487
      %1554 = vst.msk [vmem:[#allocation4 + $0xf8] sm:$0xff] %vm1522, %v1489
      %v1555 = vld [vmem:[%s1361 + $0x1] sm:$0xff]
      %v1556 = vld [vmem:[%s1361 + $0x9] sm:$0xff]
      %v1557 = vld [vmem:[%s1361 + $0x19] sm:$0xff]
      %v1558 = vld [vmem:[%s1361 + $0x21] sm:$0xff]
      %v1559 = vld [vmem:[%s1361 + $0x31] sm:$0xff]
      %v1560 = vld [vmem:[%s1361 + $0x39] sm:$0xff]
      %v1561 = vld [vmem:[%s1361 + $0x49] sm:$0xff]
      %v1562 = vld [vmem:[%s1361 + $0x51] sm:$0xff]
      %v1563 = vld [vmem:[%s1361 + $0x61] sm:$0xff]
      %v1564 = vld [vmem:[%s1361 + $0x69] sm:$0xff]
      %v1565 = vld [vmem:[%s1361 + $0x79] sm:$0xff]
      %v1566 = vld [vmem:[%s1361 + $0x81] sm:$0xff]
      %v1567 = vld [vmem:[%s1361 + $0x91] sm:$0xff]
      %v1568 = vld [vmem:[%s1361 + $0x99] sm:$0xff]
      %v1569 = vld [vmem:[%s1361 + $0xa9] sm:$0xff]
      %v1570 = vld [vmem:[%s1361 + $0xb1] sm:$0xff]
      %v1571 = vld [vmem:[%s1361 + $0xc1] sm:$0xff]
      %v1572 = vld [vmem:[%s1361 + $0xc9] sm:$0xff]
      %v1573 = vld [vmem:[%s1361 + $0xd9] sm:$0xff]
      %v1574 = vld [vmem:[%s1361 + $0xe1] sm:$0xff]
      %v1575 = vld [vmem:[%s1361 + $0xf1] sm:$0xff]
      %v1576 = vld [vmem:[%s1361 + $0xf9] sm:$0xff]
      %v1577 = vld [vmem:[%s1361 + $0x109] sm:$0xff]
      %v1578 = vld [vmem:[%s1361 + $0x111] sm:$0xff]
      %v1579 = vld [vmem:[%s1361 + $0x121] sm:$0xff]
      %v1580 = vld [vmem:[%s1361 + $0x129] sm:$0xff]
      %v1581 = vld [vmem:[%s1361 + $0x139] sm:$0xff]
      %v1582 = vld [vmem:[%s1361 + $0x141] sm:$0xff]
      %v1583 = vld [vmem:[%s1361 + $0x151] sm:$0xff]
      %v1584 = vld [vmem:[%s1361 + $0x159] sm:$0xff]
      %v1585 = vld [vmem:[%s1361 + $0x169] sm:$0xff]
      %v1586 = vld [vmem:[%s1361 + $0x171] sm:$0xff]
      %1619 = vrot.lane.b32.xlu0 %v1555, 28
      %v1620 = vpop.permute.xlu0 %1619
      %1621 = vrot.lane.b32.xlu0 %v1556, 28
      %v1622 = vpop.permute.xlu0 %1621
      %1623 = vrot.lane.b32.xlu0 %v1557, 28
      %v1624 = vpop.permute.xlu0 %1623
      %1625 = vrot.lane.b32.xlu0 %v1558, 28
      %v1626 = vpop.permute.xlu0 %1625
      %1627 = vrot.lane.b32.xlu0 %v1559, 28
      %v1628 = vpop.permute.xlu0 %1627
      %1629 = vrot.lane.b32.xlu0 %v1560, 28
      %v1630 = vpop.permute.xlu0 %1629
      %1631 = vrot.lane.b32.xlu0 %v1561, 28
      %v1632 = vpop.permute.xlu0 %1631
      %1633 = vrot.lane.b32.xlu0 %v1562, 28
      %v1634 = vpop.permute.xlu0 %1633
      %1635 = vrot.lane.b32.xlu0 %v1563, 28
      %v1636 = vpop.permute.xlu0 %1635
      %1637 = vrot.lane.b32.xlu0 %v1564, 28
      %v1638 = vpop.permute.xlu0 %1637
      %1639 = vrot.lane.b32.xlu0 %v1565, 28
      %v1640 = vpop.permute.xlu0 %1639
      %1641 = vrot.lane.b32.xlu0 %v1566, 28
      %v1642 = vpop.permute.xlu0 %1641
      %1643 = vrot.lane.b32.xlu0 %v1567, 28
      %v1644 = vpop.permute.xlu0 %1643
      %1645 = vrot.lane.b32.xlu0 %v1568, 28
      %v1646 = vpop.permute.xlu0 %1645
      %1647 = vrot.lane.b32.xlu0 %v1569, 28
      %v1648 = vpop.permute.xlu0 %1647
      %1649 = vrot.lane.b32.xlu0 %v1570, 28
      %v1650 = vpop.permute.xlu0 %1649
      %1651 = vrot.lane.b32.xlu0 %v1571, 28
      %v1652 = vpop.permute.xlu0 %1651
      %1653 = vrot.lane.b32.xlu0 %v1572, 28
      %v1654 = vpop.permute.xlu0 %1653
      %1655 = vrot.lane.b32.xlu0 %v1573, 28
      %v1656 = vpop.permute.xlu0 %1655
      %1657 = vrot.lane.b32.xlu0 %v1574, 28
      %v1658 = vpop.permute.xlu0 %1657
      %1659 = vrot.lane.b32.xlu0 %v1575, 28
      %v1660 = vpop.permute.xlu0 %1659
      %1661 = vrot.lane.b32.xlu0 %v1576, 28
      %v1662 = vpop.permute.xlu0 %1661
      %1663 = vrot.lane.b32.xlu0 %v1577, 28
      %v1664 = vpop.permute.xlu0 %1663
      %1665 = vrot.lane.b32.xlu0 %v1578, 28
      %v1666 = vpop.permute.xlu0 %1665
      %1667 = vrot.lane.b32.xlu0 %v1579, 28
      %v1668 = vpop.permute.xlu0 %1667
      %1669 = vrot.lane.b32.xlu0 %v1580, 28
      %v1670 = vpop.permute.xlu0 %1669
      %1671 = vrot.lane.b32.xlu0 %v1581, 28
      %v1672 = vpop.permute.xlu0 %1671
      %1673 = vrot.lane.b32.xlu0 %v1582, 28
      %v1674 = vpop.permute.xlu0 %1673
      %1675 = vrot.lane.b32.xlu0 %v1583, 28
      %v1676 = vpop.permute.xlu0 %1675
      %1677 = vrot.lane.b32.xlu0 %v1584, 28
      %v1678 = vpop.permute.xlu0 %1677
      %1679 = vrot.lane.b32.xlu0 %v1585, 28
      %v1680 = vpop.permute.xlu0 %1679
      %1681 = vrot.lane.b32.xlu0 %v1586, 28
      %v1682 = vpop.permute.xlu0 %1681
      %vm1715 = vcmask 261344
      %1716 = vst.msk [vmem:[#allocation4] sm:$0xff] %vm1715, %v1620
      %1717 = vst.msk [vmem:[#allocation4 + $0x8] sm:$0xff] %vm1715, %v1622
      %1718 = vst.msk [vmem:[#allocation4 + $0x10] sm:$0xff] %vm1715, %v1624
      %1719 = vst.msk [vmem:[#allocation4 + $0x18] sm:$0xff] %vm1715, %v1626
      %1720 = vst.msk [vmem:[#allocation4 + $0x20] sm:$0xff] %vm1715, %v1628
      %1721 = vst.msk [vmem:[#allocation4 + $0x28] sm:$0xff] %vm1715, %v1630
      %1722 = vst.msk [vmem:[#allocation4 + $0x30] sm:$0xff] %vm1715, %v1632
      %1723 = vst.msk [vmem:[#allocation4 + $0x38] sm:$0xff] %vm1715, %v1634
      %1724 = vst.msk [vmem:[#allocation4 + $0x40] sm:$0xff] %vm1715, %v1636
      %1725 = vst.msk [vmem:[#allocation4 + $0x48] sm:$0xff] %vm1715, %v1638
      %1726 = vst.msk [vmem:[#allocation4 + $0x50] sm:$0xff] %vm1715, %v1640
      %1727 = vst.msk [vmem:[#allocation4 + $0x58] sm:$0xff] %vm1715, %v1642
      %1728 = vst.msk [vmem:[#allocation4 + $0x60] sm:$0xff] %vm1715, %v1644
      %1729 = vst.msk [vmem:[#allocation4 + $0x68] sm:$0xff] %vm1715, %v1646
      %1730 = vst.msk [vmem:[#allocation4 + $0x70] sm:$0xff] %vm1715, %v1648
      %1731 = vst.msk [vmem:[#allocation4 + $0x78] sm:$0xff] %vm1715, %v1650
      %1732 = vst.msk [vmem:[#allocation4 + $0x80] sm:$0xff] %vm1715, %v1652
      %1733 = vst.msk [vmem:[#allocation4 + $0x88] sm:$0xff] %vm1715, %v1654
      %1734 = vst.msk [vmem:[#allocation4 + $0x90] sm:$0xff] %vm1715, %v1656
      %1735 = vst.msk [vmem:[#allocation4 + $0x98] sm:$0xff] %vm1715, %v1658
      %1736 = vst.msk [vmem:[#allocation4 + $0xa0] sm:$0xff] %vm1715, %v1660
      %1737 = vst.msk [vmem:[#allocation4 + $0xa8] sm:$0xff] %vm1715, %v1662
      %1738 = vst.msk [vmem:[#allocation4 + $0xb0] sm:$0xff] %vm1715, %v1664
      %1739 = vst.msk [vmem:[#allocation4 + $0xb8] sm:$0xff] %vm1715, %v1666
      %1740 = vst.msk [vmem:[#allocation4 + $0xc0] sm:$0xff] %vm1715, %v1668
      %1741 = vst.msk [vmem:[#allocation4 + $0xc8] sm:$0xff] %vm1715, %v1670
      %1742 = vst.msk [vmem:[#allocation4 + $0xd0] sm:$0xff] %vm1715, %v1672
      %1743 = vst.msk [vmem:[#allocation4 + $0xd8] sm:$0xff] %vm1715, %v1674
      %1744 = vst.msk [vmem:[#allocation4 + $0xe0] sm:$0xff] %vm1715, %v1676
      %1745 = vst.msk [vmem:[#allocation4 + $0xe8] sm:$0xff] %vm1715, %v1678
      %1746 = vst.msk [vmem:[#allocation4 + $0xf0] sm:$0xff] %vm1715, %v1680
      %1747 = vst.msk [vmem:[#allocation4 + $0xf8] sm:$0xff] %vm1715, %v1682
      %v1748 = vld [vmem:[%s1361 + $0x2] sm:$0xff]
      %v1749 = vld [vmem:[%s1361 + $0xa] sm:$0xff]
      %v1750 = vld [vmem:[%s1361 + $0x1a] sm:$0xff]
      %v1751 = vld [vmem:[%s1361 + $0x22] sm:$0xff]
      %v1752 = vld [vmem:[%s1361 + $0x32] sm:$0xff]
      %v1753 = vld [vmem:[%s1361 + $0x3a] sm:$0xff]
      %v1754 = vld [vmem:[%s1361 + $0x4a] sm:$0xff]
      %v1755 = vld [vmem:[%s1361 + $0x52] sm:$0xff]
      %v1756 = vld [vmem:[%s1361 + $0x62] sm:$0xff]
      %v1757 = vld [vmem:[%s1361 + $0x6a] sm:$0xff]
      %v1758 = vld [vmem:[%s1361 + $0x7a] sm:$0xff]
      %v1759 = vld [vmem:[%s1361 + $0x82] sm:$0xff]
      %v1760 = vld [vmem:[%s1361 + $0x92] sm:$0xff]
      %v1761 = vld [vmem:[%s1361 + $0x9a] sm:$0xff]
      %v1762 = vld [vmem:[%s1361 + $0xaa] sm:$0xff]
      %v1763 = vld [vmem:[%s1361 + $0xb2] sm:$0xff]
      %v1764 = vld [vmem:[%s1361 + $0xc2] sm:$0xff]
      %v1765 = vld [vmem:[%s1361 + $0xca] sm:$0xff]
      %v1766 = vld [vmem:[%s1361 + $0xda] sm:$0xff]
      %v1767 = vld [vmem:[%s1361 + $0xe2] sm:$0xff]
      %v1768 = vld [vmem:[%s1361 + $0xf2] sm:$0xff]
      %v1769 = vld [vmem:[%s1361 + $0xfa] sm:$0xff]
      %v1770 = vld [vmem:[%s1361 + $0x10a] sm:$0xff]
      %v1771 = vld [vmem:[%s1361 + $0x112] sm:$0xff]
      %v1772 = vld [vmem:[%s1361 + $0x122] sm:$0xff]
      %v1773 = vld [vmem:[%s1361 + $0x12a] sm:$0xff]
      %v1774 = vld [vmem:[%s1361 + $0x13a] sm:$0xff]
      %v1775 = vld [vmem:[%s1361 + $0x142] sm:$0xff]
      %v1776 = vld [vmem:[%s1361 + $0x152] sm:$0xff]
      %v1777 = vld [vmem:[%s1361 + $0x15a] sm:$0xff]
      %v1778 = vld [vmem:[%s1361 + $0x16a] sm:$0xff]
      %v1779 = vld [vmem:[%s1361 + $0x172] sm:$0xff]
      %1812 = vrot.lane.b32.xlu0 %v1748, 32
      %v1813 = vpop.permute.xlu0 %1812
      %1814 = vrot.lane.b32.xlu0 %v1749, 32
      %v1815 = vpop.permute.xlu0 %1814
      %1816 = vrot.lane.b32.xlu0 %v1750, 32
      %v1817 = vpop.permute.xlu0 %1816
      %1818 = vrot.lane.b32.xlu0 %v1751, 32
      %v1819 = vpop.permute.xlu0 %1818
      %1820 = vrot.lane.b32.xlu0 %v1752, 32
      %v1821 = vpop.permute.xlu0 %1820
      %1822 = vrot.lane.b32.xlu0 %v1753, 32
      %v1823 = vpop.permute.xlu0 %1822
      %1824 = vrot.lane.b32.xlu0 %v1754, 32
      %v1825 = vpop.permute.xlu0 %1824
      %1826 = vrot.lane.b32.xlu0 %v1755, 32
      %v1827 = vpop.permute.xlu0 %1826
      %1828 = vrot.lane.b32.xlu0 %v1756, 32
      %v1829 = vpop.permute.xlu0 %1828
      %1830 = vrot.lane.b32.xlu0 %v1757, 32
      %v1831 = vpop.permute.xlu0 %1830
      %1832 = vrot.lane.b32.xlu0 %v1758, 32
      %v1833 = vpop.permute.xlu0 %1832
      %1834 = vrot.lane.b32.xlu0 %v1759, 32
      %v1835 = vpop.permute.xlu0 %1834
      %1836 = vrot.lane.b32.xlu0 %v1760, 32
      %v1837 = vpop.permute.xlu0 %1836
      %1838 = vrot.lane.b32.xlu0 %v1761, 32
      %v1839 = vpop.permute.xlu0 %1838
      %1840 = vrot.lane.b32.xlu0 %v1762, 32
      %v1841 = vpop.permute.xlu0 %1840
      %1842 = vrot.lane.b32.xlu0 %v1763, 32
      %v1843 = vpop.permute.xlu0 %1842
      %1844 = vrot.lane.b32.xlu0 %v1764, 32
      %v1845 = vpop.permute.xlu0 %1844
      %1846 = vrot.lane.b32.xlu0 %v1765, 32
      %v1847 = vpop.permute.xlu0 %1846
      %1848 = vrot.lane.b32.xlu0 %v1766, 32
      %v1849 = vpop.permute.xlu0 %1848
      %1850 = vrot.lane.b32.xlu0 %v1767, 32
      %v1851 = vpop.permute.xlu0 %1850
      %1852 = vrot.lane.b32.xlu0 %v1768, 32
      %v1853 = vpop.permute.xlu0 %1852
      %1854 = vrot.lane.b32.xlu0 %v1769, 32
      %v1855 = vpop.permute.xlu0 %1854
      %1856 = vrot.lane.b32.xlu0 %v1770, 32
      %v1857 = vpop.permute.xlu0 %1856
      %1858 = vrot.lane.b32.xlu0 %v1771, 32
      %v1859 = vpop.permute.xlu0 %1858
      %1860 = vrot.lane.b32.xlu0 %v1772, 32
      %v1861 = vpop.permute.xlu0 %1860
      %1862 = vrot.lane.b32.xlu0 %v1773, 32
      %v1863 = vpop.permute.xlu0 %1862
      %1864 = vrot.lane.b32.xlu0 %v1774, 32
      %v1865 = vpop.permute.xlu0 %1864
      %1866 = vrot.lane.b32.xlu0 %v1775, 32
      %v1867 = vpop.permute.xlu0 %1866
      %1868 = vrot.lane.b32.xlu0 %v1776, 32
      %v1869 = vpop.permute.xlu0 %1868
      %1870 = vrot.lane.b32.xlu0 %v1777, 32
      %v1871 = vpop.permute.xlu0 %1870
      %1872 = vrot.lane.b32.xlu0 %v1778, 32
      %v1873 = vpop.permute.xlu0 %1872
      %1874 = vrot.lane.b32.xlu0 %v1779, 32
      %v1875 = vpop.permute.xlu0 %1874
      %vm1908 = vcmask 294144
      %1909 = vst.msk [vmem:[#allocation4] sm:$0xff] %vm1908, %v1813
      %1910 = vst.msk [vmem:[#allocation4 + $0x8] sm:$0xff] %vm1908, %v1815
      %1911 = vst.msk [vmem:[#allocation4 + $0x10] sm:$0xff] %vm1908, %v1817
      %1912 = vst.msk [vmem:[#allocation4 + $0x18] sm:$0xff] %vm1908, %v1819
      %1913 = vst.msk [vmem:[#allocation4 + $0x20] sm:$0xff] %vm1908, %v1821
      %1914 = vst.msk [vmem:[#allocation4 + $0x28] sm:$0xff] %vm1908, %v1823
      %1915 = vst.msk [vmem:[#allocation4 + $0x30] sm:$0xff] %vm1908, %v1825
      %1916 = vst.msk [vmem:[#allocation4 + $0x38] sm:$0xff] %vm1908, %v1827
      %1917 = vst.msk [vmem:[#allocation4 + $0x40] sm:$0xff] %vm1908, %v1829
      %1918 = vst.msk [vmem:[#allocation4 + $0x48] sm:$0xff] %vm1908, %v1831
      %1919 = vst.msk [vmem:[#allocation4 + $0x50] sm:$0xff] %vm1908, %v1833
      %1920 = vst.msk [vmem:[#allocation4 + $0x58] sm:$0xff] %vm1908, %v1835
      %1921 = vst.msk [vmem:[#allocation4 + $0x60] sm:$0xff] %vm1908, %v1837
      %1922 = vst.msk [vmem:[#allocation4 + $0x68] sm:$0xff] %vm1908, %v1839
      %1923 = vst.msk [vmem:[#allocation4 + $0x70] sm:$0xff] %vm1908, %v1841
      %1924 = vst.msk [vmem:[#allocation4 + $0x78] sm:$0xff] %vm1908, %v1843
      %1925 = vst.msk [vmem:[#allocation4 + $0x80] sm:$0xff] %vm1908, %v1845
      %1926 = vst.msk [vmem:[#allocation4 + $0x88] sm:$0xff] %vm1908, %v1847
      %1927 = vst.msk [vmem:[#allocation4 + $0x90] sm:$0xff] %vm1908, %v1849
      %1928 = vst.msk [vmem:[#allocation4 + $0x98] sm:$0xff] %vm1908, %v1851
      %1929 = vst.msk [vmem:[#allocation4 + $0xa0] sm:$0xff] %vm1908, %v1853
      %1930 = vst.msk [vmem:[#allocation4 + $0xa8] sm:$0xff] %vm1908, %v1855
      %1931 = vst.msk [vmem:[#allocation4 + $0xb0] sm:$0xff] %vm1908, %v1857
      %1932 = vst.msk [vmem:[#allocation4 + $0xb8] sm:$0xff] %vm1908, %v1859
      %1933 = vst.msk [vmem:[#allocation4 + $0xc0] sm:$0xff] %vm1908, %v1861
      %1934 = vst.msk [vmem:[#allocation4 + $0xc8] sm:$0xff] %vm1908, %v1863
      %1935 = vst.msk [vmem:[#allocation4 + $0xd0] sm:$0xff] %vm1908, %v1865
      %1936 = vst.msk [vmem:[#allocation4 + $0xd8] sm:$0xff] %vm1908, %v1867
      %1937 = vst.msk [vmem:[#allocation4 + $0xe0] sm:$0xff] %vm1908, %v1869
      %1938 = vst.msk [vmem:[#allocation4 + $0xe8] sm:$0xff] %vm1908, %v1871
      %1939 = vst.msk [vmem:[#allocation4 + $0xf0] sm:$0xff] %vm1908, %v1873
      %1940 = vst.msk [vmem:[#allocation4 + $0xf8] sm:$0xff] %vm1908, %v1875
      %v1941 = vld [vmem:[#allocation4] sm:$0xff]
      %v1942 = vld [vmem:[#allocation4 + $0x8] sm:$0xff]
      %v1943 = vld [vmem:[#allocation4 + $0x10] sm:$0xff]
      %v1944 = vld [vmem:[#allocation4 + $0x18] sm:$0xff]
      %v1945 = vld [vmem:[#allocation4 + $0x20] sm:$0xff]
      %v1946 = vld [vmem:[#allocation4 + $0x28] sm:$0xff]
      %v1947 = vld [vmem:[#allocation4 + $0x30] sm:$0xff]
      %v1948 = vld [vmem:[#allocation4 + $0x38] sm:$0xff]
      %v1949 = vld [vmem:[#allocation4 + $0x40] sm:$0xff]
      %v1950 = vld [vmem:[#allocation4 + $0x48] sm:$0xff]
      %v1951 = vld [vmem:[#allocation4 + $0x50] sm:$0xff]
      %v1952 = vld [vmem:[#allocation4 + $0x58] sm:$0xff]
      %v1953 = vld [vmem:[#allocation4 + $0x60] sm:$0xff]
      %v1954 = vld [vmem:[#allocation4 + $0x68] sm:$0xff]
      %v1955 = vld [vmem:[#allocation4 + $0x70] sm:$0xff]
      %v1956 = vld [vmem:[#allocation4 + $0x78] sm:$0xff]
      %v1957 = vld [vmem:[#allocation4 + $0x80] sm:$0xff]
      %v1958 = vld [vmem:[#allocation4 + $0x88] sm:$0xff]
      %v1959 = vld [vmem:[#allocation4 + $0x90] sm:$0xff]
      %v1960 = vld [vmem:[#allocation4 + $0x98] sm:$0xff]
      %v1961 = vld [vmem:[#allocation4 + $0xa0] sm:$0xff]
      %v1962 = vld [vmem:[#allocation4 + $0xa8] sm:$0xff]
      %v1963 = vld [vmem:[#allocation4 + $0xb0] sm:$0xff]
      %v1964 = vld [vmem:[#allocation4 + $0xb8] sm:$0xff]
      %v1965 = vld [vmem:[#allocation4 + $0xc0] sm:$0xff]
      %v1966 = vld [vmem:[#allocation4 + $0xc8] sm:$0xff]
      %v1967 = vld [vmem:[#allocation4 + $0xd0] sm:$0xff]
      %v1968 = vld [vmem:[#allocation4 + $0xd8] sm:$0xff]
      %v1969 = vld [vmem:[#allocation4 + $0xe0] sm:$0xff]
      %v1970 = vld [vmem:[#allocation4 + $0xe8] sm:$0xff]
      %v1971 = vld [vmem:[#allocation4 + $0xf0] sm:$0xff]
      %v1972 = vld [vmem:[#allocation4 + $0xf8] sm:$0xff]
      %v1973 = vld [vmem:[%s1] sm:$0xff]
      %v1974 = vld [vmem:[%s1 + $0x8] sm:$0xff]
      %v1975 = vld [vmem:[%s1 + $0x10] sm:$0xff]
      %v1976 = vld [vmem:[%s1 + $0x18] sm:$0xff]
      %v1977 = vld [vmem:[%s1 + $0x20] sm:$0xf]
      %vm1978 = vcmask 293888
      %v1980 = vsel %vm1978, %v1941, 0
      %v1983 = vsel %vm1978, %v1942, 0
      %v1986 = vsel %vm1978, %v1943, 0
      %v1989 = vsel %vm1978, %v1944, 0
      %v1992 = vsel %vm1978, %v1945, 0
      %v1995 = vsel %vm1978, %v1946, 0
      %v1998 = vsel %vm1978, %v1947, 0
      %v2001 = vsel %vm1978, %v1948, 0
      %v2004 = vsel %vm1978, %v1949, 0
      %v2007 = vsel %vm1978, %v1950, 0
      %v2010 = vsel %vm1978, %v1951, 0
      %v2013 = vsel %vm1978, %v1952, 0
      %v2016 = vsel %vm1978, %v1953, 0
      %v2019 = vsel %vm1978, %v1954, 0
      %v2022 = vsel %vm1978, %v1955, 0
      %v2025 = vsel %vm1978, %v1956, 0
      %v2028 = vsel %vm1978, %v1957, 0
      %v2031 = vsel %vm1978, %v1958, 0
      %v2034 = vsel %vm1978, %v1959, 0
      %v2037 = vsel %vm1978, %v1960, 0
      %v2040 = vsel %vm1978, %v1961, 0
      %v2043 = vsel %vm1978, %v1962, 0
      %v2046 = vsel %vm1978, %v1963, 0
      %v2049 = vsel %vm1978, %v1964, 0
      %v2052 = vsel %vm1978, %v1965, 0
      %v2055 = vsel %vm1978, %v1966, 0
      %v2058 = vsel %vm1978, %v1967, 0
      %v2061 = vsel %vm1978, %v1968, 0
      %v2064 = vsel %vm1978, %v1969, 0
      %v2067 = vsel %vm1978, %v1970, 0
      %v2070 = vsel %vm1978, %v1971, 0
      %v2073 = vsel %vm1978, %v1972, 0
      %vm2075 = vcmask 1043456
      %v2077 = vsel %vm2075, %v1977, 0
      %2079 = vmatpush.msra.mxu0 0.0
      %2080 = vmatpush.msra.mxu0 0.0
      %2081 = vmatpush.msra.mxu0 0.0
      %2082 = vmatpush.msra.mxu0 0.0
      %2083 = vmatpush.msra.mxu0 0.0
      %2084 = vmatpush.msra.mxu0 0.0
      %2085 = vmatpush.msra.mxu0 0.0
      %2086 = vmatpush.msra.mxu0 0.0
      %2087 = vmatpush.msra.mxu0 0.0
      %2088 = vmatpush.msra.mxu0 0.0
      %2089 = vmatpush.msra.mxu0 0.0
      %2090 = vmatpush.msra.mxu0 %v2077
      %2091 = vmatpush.msra.mxu0 %v1976
      %2092 = vmatpush.msra.mxu0 %v1975
      %2093 = vmatpush.msra.mxu0 %v1974
      %2094 = vmatpush.msra.mxu0 %v1973
      %2095 = vmatmul.f32.gmra.mxu0 %v1980
      %v2096 = vpop.f32.mrf.mxu0
      %v2097 = vadd.f32 0.0, %v2096
      %2098 = vmatmul.f32.gmra.mxu0 %v1983
      %v2099 = vpop.f32.mrf.mxu0
      %v2100 = vadd.f32 0.0, %v2099
      %2101 = vmatmul.f32.gmra.mxu0 %v1986
      %v2102 = vpop.f32.mrf.mxu0
      %v2103 = vadd.f32 0.0, %v2102
      %2104 = vmatmul.f32.gmra.mxu0 %v1989
      %v2105 = vpop.f32.mrf.mxu0
      %v2106 = vadd.f32 0.0, %v2105
      %2107 = vmatmul.f32.gmra.mxu0 %v1992
      %v2108 = vpop.f32.mrf.mxu0
      %v2109 = vadd.f32 0.0, %v2108
      %2110 = vmatmul.f32.gmra.mxu0 %v1995
      %v2111 = vpop.f32.mrf.mxu0
      %v2112 = vadd.f32 0.0, %v2111
      %2113 = vmatmul.f32.gmra.mxu0 %v1998
      %v2114 = vpop.f32.mrf.mxu0
      %v2115 = vadd.f32 0.0, %v2114
      %2116 = vmatmul.f32.gmra.mxu0 %v2001
      %v2117 = vpop.f32.mrf.mxu0
      %v2118 = vadd.f32 0.0, %v2117
      %2119 = vmatmul.f32.gmra.mxu0 %v2004
      %v2120 = vpop.f32.mrf.mxu0
      %v2121 = vadd.f32 0.0, %v2120
      %2122 = vmatmul.f32.gmra.mxu0 %v2007
      %v2123 = vpop.f32.mrf.mxu0
      %v2124 = vadd.f32 0.0, %v2123
      %2125 = vmatmul.f32.gmra.mxu0 %v2010
      %v2126 = vpop.f32.mrf.mxu0
      %v2127 = vadd.f32 0.0, %v2126
      %2128 = vmatmul.f32.gmra.mxu0 %v2013
      %v2129 = vpop.f32.mrf.mxu0
      %v2130 = vadd.f32 0.0, %v2129
      %2131 = vmatmul.f32.gmra.mxu0 %v2016
      %v2132 = vpop.f32.mrf.mxu0
      %v2133 = vadd.f32 0.0, %v2132
      %2134 = vmatmul.f32.gmra.mxu0 %v2019
      %v2135 = vpop.f32.mrf.mxu0
      %v2136 = vadd.f32 0.0, %v2135
      %2137 = vmatmul.f32.gmra.mxu0 %v2022
      %v2138 = vpop.f32.mrf.mxu0
      %v2139 = vadd.f32 0.0, %v2138
      %2140 = vmatmul.f32.gmra.mxu0 %v2025
      %v2141 = vpop.f32.mrf.mxu0
      %v2142 = vadd.f32 0.0, %v2141
      %2143 = vmatmul.f32.gmra.mxu0 %v2028
      %v2144 = vpop.f32.mrf.mxu0
      %v2145 = vadd.f32 0.0, %v2144
      %2146 = vmatmul.f32.gmra.mxu0 %v2031
      %v2147 = vpop.f32.mrf.mxu0
      %v2148 = vadd.f32 0.0, %v2147
      %2149 = vmatmul.f32.gmra.mxu0 %v2034
      %v2150 = vpop.f32.mrf.mxu0
      %v2151 = vadd.f32 0.0, %v2150
      %2152 = vmatmul.f32.gmra.mxu0 %v2037
      %v2153 = vpop.f32.mrf.mxu0
      %v2154 = vadd.f32 0.0, %v2153
      %2155 = vmatmul.f32.gmra.mxu0 %v2040
      %v2156 = vpop.f32.mrf.mxu0
      %v2157 = vadd.f32 0.0, %v2156
      %2158 = vmatmul.f32.gmra.mxu0 %v2043
      %v2159 = vpop.f32.mrf.mxu0
      %v2160 = vadd.f32 0.0, %v2159
      %2161 = vmatmul.f32.gmra.mxu0 %v2046
      %v2162 = vpop.f32.mrf.mxu0
      %v2163 = vadd.f32 0.0, %v2162
      %2164 = vmatmul.f32.gmra.mxu0 %v2049
      %v2165 = vpop.f32.mrf.mxu0
      %v2166 = vadd.f32 0.0, %v2165
      %2167 = vmatmul.f32.gmra.mxu0 %v2052
      %v2168 = vpop.f32.mrf.mxu0
      %v2169 = vadd.f32 0.0, %v2168
      %2170 = vmatmul.f32.gmra.mxu0 %v2055
      %v2171 = vpop.f32.mrf.mxu0
      %v2172 = vadd.f32 0.0, %v2171
      %2173 = vmatmul.f32.gmra.mxu0 %v2058
      %v2174 = vpop.f32.mrf.mxu0
      %v2175 = vadd.f32 0.0, %v2174
      %2176 = vmatmul.f32.gmra.mxu0 %v2061
      %v2177 = vpop.f32.mrf.mxu0
      %v2178 = vadd.f32 0.0, %v2177
      %2179 = vmatmul.f32.gmra.mxu0 %v2064
      %v2180 = vpop.f32.mrf.mxu0
      %v2181 = vadd.f32 0.0, %v2180
      %2182 = vmatmul.f32.gmra.mxu0 %v2067
      %v2183 = vpop.f32.mrf.mxu0
      %v2184 = vadd.f32 0.0, %v2183
      %2185 = vmatmul.f32.gmra.mxu0 %v2070
      %v2186 = vpop.f32.mrf.mxu0
      %v2187 = vadd.f32 0.0, %v2186
      %2188 = vmatmul.f32.gmra.mxu0 %v2073
      %v2189 = vpop.f32.mrf.mxu0
      %v2190 = vadd.f32 0.0, %v2189
      %2191 = vdwg.mxu0
      %v2192 = vmax.f32 %v2097, 0.0
      %v2193 = vmax.f32 %v2100, 0.0
      %v2194 = vmax.f32 %v2103, 0.0
      %v2195 = vmax.f32 %v2106, 0.0
      %v2196 = vmax.f32 %v2109, 0.0
      %v2197 = vmax.f32 %v2112, 0.0
      %v2198 = vmax.f32 %v2115, 0.0
      %v2199 = vmax.f32 %v2118, 0.0
      %v2200 = vmax.f32 %v2121, 0.0
      %v2201 = vmax.f32 %v2124, 0.0
      %v2202 = vmax.f32 %v2127, 0.0
      %v2203 = vmax.f32 %v2130, 0.0
      %v2204 = vmax.f32 %v2133, 0.0
      %v2205 = vmax.f32 %v2136, 0.0
      %v2206 = vmax.f32 %v2139, 0.0
      %v2207 = vmax.f32 %v2142, 0.0
      %v2208 = vmax.f32 %v2145, 0.0
      %v2209 = vmax.f32 %v2148, 0.0
      %v2210 = vmax.f32 %v2151, 0.0
      %v2211 = vmax.f32 %v2154, 0.0
      %v2212 = vmax.f32 %v2157, 0.0
      %v2213 = vmax.f32 %v2160, 0.0
      %v2214 = vmax.f32 %v2163, 0.0
      %v2215 = vmax.f32 %v2166, 0.0
      %v2216 = vmax.f32 %v2169, 0.0
      %v2217 = vmax.f32 %v2172, 0.0
      %v2218 = vmax.f32 %v2175, 0.0
      %v2219 = vmax.f32 %v2178, 0.0
      %v2220 = vmax.f32 %v2181, 0.0
      %v2221 = vmax.f32 %v2184, 0.0
      %v2222 = vmax.f32 %v2187, 0.0
      %v2223 = vmax.f32 %v2190, 0.0
      %v2224 = vmin.f32 %v2192, 448.0
      %v2225 = vmin.f32 %v2193, 448.0
      %v2226 = vmin.f32 %v2194, 448.0
      %v2227 = vmin.f32 %v2195, 448.0
      %v2228 = vmin.f32 %v2196, 448.0
      %v2229 = vmin.f32 %v2197, 448.0
      %v2230 = vmin.f32 %v2198, 448.0
      %v2231 = vmin.f32 %v2199, 448.0
      %v2232 = vmin.f32 %v2200, 448.0
      %v2233 = vmin.f32 %v2201, 448.0
      %v2234 = vmin.f32 %v2202, 448.0
      %v2235 = vmin.f32 %v2203, 448.0
      %v2236 = vmin.f32 %v2204, 448.0
      %v2237 = vmin.f32 %v2205, 448.0
      %v2238 = vmin.f32 %v2206, 448.0
      %v2239 = vmin.f32 %v2207, 448.0
      %v2240 = vmin.f32 %v2208, 448.0
      %v2241 = vmin.f32 %v2209, 448.0
      %v2242 = vmin.f32 %v2210, 448.0
      %v2243 = vmin.f32 %v2211, 448.0
      %v2244 = vmin.f32 %v2212, 448.0
      %v2245 = vmin.f32 %v2213, 448.0
      %v2246 = vmin.f32 %v2214, 448.0
      %v2247 = vmin.f32 %v2215, 448.0
      %v2248 = vmin.f32 %v2216, 448.0
      %v2249 = vmin.f32 %v2217, 448.0
      %v2250 = vmin.f32 %v2218, 448.0
      %v2251 = vmin.f32 %v2219, 448.0
      %v2252 = vmin.f32 %v2220, 448.0
      %v2253 = vmin.f32 %v2221, 448.0
      %v2254 = vmin.f32 %v2222, 448.0
      %v2255 = vmin.f32 %v2223, 448.0
      %vm2256 = vcmask 64512
      %2257 = vst.msk [vmem:[%s205] sm:$0xff] %vm2256, %v2224
      %2258 = vst.msk [vmem:[%s205 + $0x8] sm:$0xff] %vm2256, %v2225
      %2259 = vst.msk [vmem:[%s205 + $0x10] sm:$0xff] %vm2256, %v2226
      %2260 = vst.msk [vmem:[%s205 + $0x18] sm:$0xff] %vm2256, %v2227
      %2261 = vst.msk [vmem:[%s205 + $0x20] sm:$0xff] %vm2256, %v2228
      %2262 = vst.msk [vmem:[%s205 + $0x28] sm:$0xff] %vm2256, %v2229
      %2263 = vst.msk [vmem:[%s205 + $0x30] sm:$0xff] %vm2256, %v2230
      %2264 = vst.msk [vmem:[%s205 + $0x38] sm:$0xff] %vm2256, %v2231
      %2265 = vst.msk [vmem:[%s205 + $0x40] sm:$0xff] %vm2256, %v2232
      %2266 = vst.msk [vmem:[%s205 + $0x48] sm:$0xff] %vm2256, %v2233
      %2267 = vst.msk [vmem:[%s205 + $0x50] sm:$0xff] %vm2256, %v2234
      %2268 = vst.msk [vmem:[%s205 + $0x58] sm:$0xff] %vm2256, %v2235
      %2269 = vst.msk [vmem:[%s205 + $0x60] sm:$0xff] %vm2256, %v2236
      %2270 = vst.msk [vmem:[%s205 + $0x68] sm:$0xff] %vm2256, %v2237
      %2271 = vst.msk [vmem:[%s205 + $0x70] sm:$0xff] %vm2256, %v2238
      %2272 = vst.msk [vmem:[%s205 + $0x78] sm:$0xff] %vm2256, %v2239
      %2273 = vst.msk [vmem:[%s205 + $0x80] sm:$0xff] %vm2256, %v2240
      %2274 = vst.msk [vmem:[%s205 + $0x88] sm:$0xff] %vm2256, %v2241
      %2275 = vst.msk [vmem:[%s205 + $0x90] sm:$0xff] %vm2256, %v2242
      %2276 = vst.msk [vmem:[%s205 + $0x98] sm:$0xff] %vm2256, %v2243
      %2277 = vst.msk [vmem:[%s205 + $0xa0] sm:$0xff] %vm2256, %v2244
      %2278 = vst.msk [vmem:[%s205 + $0xa8] sm:$0xff] %vm2256, %v2245
      %2279 = vst.msk [vmem:[%s205 + $0xb0] sm:$0xff] %vm2256, %v2246
      %2280 = vst.msk [vmem:[%s205 + $0xb8] sm:$0xff] %vm2256, %v2247
      %2281 = vst.msk [vmem:[%s205 + $0xc0] sm:$0xff] %vm2256, %v2248
      %2282 = vst.msk [vmem:[%s205 + $0xc8] sm:$0xff] %vm2256, %v2249
      %2283 = vst.msk [vmem:[%s205 + $0xd0] sm:$0xff] %vm2256, %v2250
      %2284 = vst.msk [vmem:[%s205 + $0xd8] sm:$0xff] %vm2256, %v2251
      %2285 = vst.msk [vmem:[%s205 + $0xe0] sm:$0xff] %vm2256, %v2252
      %2286 = vst.msk [vmem:[%s205 + $0xe8] sm:$0xff] %vm2256, %v2253
      %2287 = vst.msk [vmem:[%s205 + $0xf0] sm:$0xff] %vm2256, %v2254
      %2288 = vst.msk [vmem:[%s205 + $0xf8] sm:$0xff] %vm2256, %v2255
      %2289 = vst.msk [vmem:[#allocation3] sm:$0xff] %vm2256, 0.0
      %2290 = vst.msk [vmem:[#allocation3 + $0x8] sm:$0xff] %vm2256, 0.0
      %vm2291 = vcmask 58368
      %2292 = vst.msk [vmem:[#allocation3 + $0x10] sm:$0x3] %vm2291, 0.0
      %2293 = vst.msk [vmem:[#allocation3 + $0x18] sm:$0xff] %vm2256, 0.0
      %2294 = vst.msk [vmem:[#allocation3 + $0x20] sm:$0xff] %vm2256, 0.0
      %2295 = vst.msk [vmem:[#allocation3 + $0x28] sm:$0x3] %vm2291, 0.0
      %2296 = vst.msk [vmem:[#allocation3 + $0x30] sm:$0xff] %vm2256, 0.0
      %2297 = vst.msk [vmem:[#allocation3 + $0x38] sm:$0xff] %vm2256, 0.0
      %2298 = vst.msk [vmem:[#allocation3 + $0x40] sm:$0x3] %vm2291, 0.0
      %2299 = vst.msk [vmem:[#allocation3 + $0x48] sm:$0xff] %vm2256, 0.0
      %2300 = vst.msk [vmem:[#allocation3 + $0x50] sm:$0xff] %vm2256, 0.0
      %2301 = vst.msk [vmem:[#allocation3 + $0x58] sm:$0x3] %vm2291, 0.0
      %2302 = vst.msk [vmem:[#allocation3 + $0x60] sm:$0xff] %vm2256, 0.0
      %2303 = vst.msk [vmem:[#allocation3 + $0x68] sm:$0xff] %vm2256, 0.0
      %2304 = vst.msk [vmem:[#allocation3 + $0x70] sm:$0x3] %vm2291, 0.0
      %2305 = vst.msk [vmem:[#allocation3 + $0x78] sm:$0xff] %vm2256, 0.0
      %2306 = vst.msk [vmem:[#allocation3 + $0x80] sm:$0xff] %vm2256, 0.0
      %2307 = vst.msk [vmem:[#allocation3 + $0x88] sm:$0x3] %vm2291, 0.0
      %2308 = vst.msk [vmem:[#allocation3 + $0x90] sm:$0xff] %vm2256, 0.0
      %2309 = vst.msk [vmem:[#allocation3 + $0x98] sm:$0xff] %vm2256, 0.0
      %2310 = vst.msk [vmem:[#allocation3 + $0xa0] sm:$0x3] %vm2291, 0.0
      %2311 = vst.msk [vmem:[#allocation3 + $0xa8] sm:$0xff] %vm2256, 0.0
      %2312 = vst.msk [vmem:[#allocation3 + $0xb0] sm:$0xff] %vm2256, 0.0
      %2313 = vst.msk [vmem:[#allocation3 + $0xb8] sm:$0x3] %vm2291, 0.0
      %2314 = vst.msk [vmem:[#allocation3 + $0xc0] sm:$0xff] %vm2256, 0.0
      %2315 = vst.msk [vmem:[#allocation3 + $0xc8] sm:$0xff] %vm2256, 0.0
      %2316 = vst.msk [vmem:[#allocation3 + $0xd0] sm:$0x3] %vm2291, 0.0
      %2317 = vst.msk [vmem:[#allocation3 + $0xd8] sm:$0xff] %vm2256, 0.0
      %2318 = vst.msk [vmem:[#allocation3 + $0xe0] sm:$0xff] %vm2256, 0.0
      %2319 = vst.msk [vmem:[#allocation3 + $0xe8] sm:$0x3] %vm2291, 0.0
      %2320 = vst.msk [vmem:[#allocation3 + $0xf0] sm:$0xff] %vm2256, 0.0
      %2321 = vst.msk [vmem:[#allocation3 + $0xf8] sm:$0xff] %vm2256, 0.0
      %2322 = vst.msk [vmem:[#allocation3 + $0x100] sm:$0x3] %vm2291, 0.0
      %2323 = vst.msk [vmem:[#allocation3 + $0x108] sm:$0xff] %vm2256, 0.0
      %2324 = vst.msk [vmem:[#allocation3 + $0x110] sm:$0xff] %vm2256, 0.0
      %2325 = vst.msk [vmem:[#allocation3 + $0x118] sm:$0x3] %vm2291, 0.0
      %2326 = vst.msk [vmem:[#allocation3 + $0x120] sm:$0xff] %vm2256, 0.0
      %2327 = vst.msk [vmem:[#allocation3 + $0x128] sm:$0xff] %vm2256, 0.0
      %2328 = vst.msk [vmem:[#allocation3 + $0x130] sm:$0x3] %vm2291, 0.0
      %2329 = vst.msk [vmem:[#allocation3 + $0x138] sm:$0xff] %vm2256, 0.0
      %2330 = vst.msk [vmem:[#allocation3 + $0x140] sm:$0xff] %vm2256, 0.0
      %2331 = vst.msk [vmem:[#allocation3 + $0x148] sm:$0x3] %vm2291, 0.0
      %2332 = vst.msk [vmem:[#allocation3 + $0x150] sm:$0xff] %vm2256, 0.0
      %2333 = vst.msk [vmem:[#allocation3 + $0x158] sm:$0xff] %vm2256, 0.0
      %2334 = vst.msk [vmem:[#allocation3 + $0x160] sm:$0x3] %vm2291, 0.0
      %2335 = vst.msk [vmem:[#allocation3 + $0x168] sm:$0xff] %vm2256, 0.0
      %2336 = vst.msk [vmem:[#allocation3 + $0x170] sm:$0xff] %vm2256, 0.0
      %2337 = vst.msk [vmem:[#allocation3 + $0x178] sm:$0x3] %vm2291, 0.0
      %2338 = vst.msk [vmem:[#allocation3 + $0x180] sm:$0xff] %vm2256, 0.0
      %2339 = vst.msk [vmem:[#allocation3 + $0x188] sm:$0xff] %vm2256, 0.0
      %2340 = vst.msk [vmem:[#allocation3 + $0x190] sm:$0x3] %vm2291, 0.0
      %2341 = vst.msk [vmem:[#allocation3 + $0x198] sm:$0xff] %vm2256, 0.0
      %2342 = vst.msk [vmem:[#allocation3 + $0x1a0] sm:$0xff] %vm2256, 0.0
      %2343 = vst.msk [vmem:[#allocation3 + $0x1a8] sm:$0x3] %vm2291, 0.0
      %s2344 = scalar_lea.vmem [#allocation3], 24
      %2345 = vst.msk [vmem:[%s2344 + $0x1] sm:$0xff] %vm2256, %v2224
      %2346 = vst.msk [vmem:[%s2344 + $0x9] sm:$0xff] %vm2256, %v2225
      %2347 = vst.msk [vmem:[%s2344 + $0x19] sm:$0xff] %vm2256, %v2226
      %2348 = vst.msk [vmem:[%s2344 + $0x21] sm:$0xff] %vm2256, %v2227
      %2349 = vst.msk [vmem:[%s2344 + $0x31] sm:$0xff] %vm2256, %v2228
      %2350 = vst.msk [vmem:[%s2344 + $0x39] sm:$0xff] %vm2256, %v2229
      %2351 = vst.msk [vmem:[%s2344 + $0x49] sm:$0xff] %vm2256, %v2230
      %2352 = vst.msk [vmem:[%s2344 + $0x51] sm:$0xff] %vm2256, %v2231
      %2353 = vst.msk [vmem:[%s2344 + $0x61] sm:$0xff] %vm2256, %v2232
      %2354 = vst.msk [vmem:[%s2344 + $0x69] sm:$0xff] %vm2256, %v2233
      %2355 = vst.msk [vmem:[%s2344 + $0x79] sm:$0xff] %vm2256, %v2234
      %2356 = vst.msk [vmem:[%s2344 + $0x81] sm:$0xff] %vm2256, %v2235
      %2357 = vst.msk [vmem:[%s2344 + $0x91] sm:$0xff] %vm2256, %v2236
      %2358 = vst.msk [vmem:[%s2344 + $0x99] sm:$0xff] %vm2256, %v2237
      %2359 = vst.msk [vmem:[%s2344 + $0xa9] sm:$0xff] %vm2256, %v2238
      %2360 = vst.msk [vmem:[%s2344 + $0xb1] sm:$0xff] %vm2256, %v2239
      %2361 = vst.msk [vmem:[%s2344 + $0xc1] sm:$0xff] %vm2256, %v2240
      %2362 = vst.msk [vmem:[%s2344 + $0xc9] sm:$0xff] %vm2256, %v2241
      %2363 = vst.msk [vmem:[%s2344 + $0xd9] sm:$0xff] %vm2256, %v2242
      %2364 = vst.msk [vmem:[%s2344 + $0xe1] sm:$0xff] %vm2256, %v2243
      %2365 = vst.msk [vmem:[%s2344 + $0xf1] sm:$0xff] %vm2256, %v2244
      %2366 = vst.msk [vmem:[%s2344 + $0xf9] sm:$0xff] %vm2256, %v2245
      %2367 = vst.msk [vmem:[%s2344 + $0x109] sm:$0xff] %vm2256, %v2246
      %2368 = vst.msk [vmem:[%s2344 + $0x111] sm:$0xff] %vm2256, %v2247
      %2369 = vst.msk [vmem:[%s2344 + $0x121] sm:$0xff] %vm2256, %v2248
      %2370 = vst.msk [vmem:[%s2344 + $0x129] sm:$0xff] %vm2256, %v2249
      %2371 = vst.msk [vmem:[%s2344 + $0x139] sm:$0xff] %vm2256, %v2250
      %2372 = vst.msk [vmem:[%s2344 + $0x141] sm:$0xff] %vm2256, %v2251
      %2373 = vst.msk [vmem:[%s2344 + $0x151] sm:$0xff] %vm2256, %v2252
      %2374 = vst.msk [vmem:[%s2344 + $0x159] sm:$0xff] %vm2256, %v2253
      %2375 = vst.msk [vmem:[%s2344 + $0x169] sm:$0xff] %vm2256, %v2254
      %2376 = vst.msk [vmem:[%s2344 + $0x171] sm:$0xff] %vm2256, %v2255
      %v2377 = vld [vmem:[#allocation3] sm:$0xff]
      %v2378 = vld [vmem:[#allocation3 + $0x8] sm:$0xff]
      %v2379 = vld [vmem:[#allocation3 + $0x18] sm:$0xff]
      %v2380 = vld [vmem:[#allocation3 + $0x20] sm:$0xff]
      %v2381 = vld [vmem:[#allocation3 + $0x30] sm:$0xff]
      %v2382 = vld [vmem:[#allocation3 + $0x38] sm:$0xff]
      %v2383 = vld [vmem:[#allocation3 + $0x48] sm:$0xff]
      %v2384 = vld [vmem:[#allocation3 + $0x50] sm:$0xff]
      %v2385 = vld [vmem:[#allocation3 + $0x60] sm:$0xff]
      %v2386 = vld [vmem:[#allocation3 + $0x68] sm:$0xff]
      %v2387 = vld [vmem:[#allocation3 + $0x78] sm:$0xff]
      %v2388 = vld [vmem:[#allocation3 + $0x80] sm:$0xff]
      %v2389 = vld [vmem:[#allocation3 + $0x90] sm:$0xff]
      %v2390 = vld [vmem:[#allocation3 + $0x98] sm:$0xff]
      %v2391 = vld [vmem:[#allocation3 + $0xa8] sm:$0xff]
      %v2392 = vld [vmem:[#allocation3 + $0xb0] sm:$0xff]
      %v2393 = vld [vmem:[#allocation3 + $0xc0] sm:$0xff]
      %v2394 = vld [vmem:[#allocation3 + $0xc8] sm:$0xff]
      %v2395 = vld [vmem:[#allocation3 + $0xd8] sm:$0xff]
      %v2396 = vld [vmem:[#allocation3 + $0xe0] sm:$0xff]
      %v2397 = vld [vmem:[#allocation3 + $0xf0] sm:$0xff]
      %v2398 = vld [vmem:[#allocation3 + $0xf8] sm:$0xff]
      %v2399 = vld [vmem:[#allocation3 + $0x108] sm:$0xff]
      %v2400 = vld [vmem:[#allocation3 + $0x110] sm:$0xff]
      %v2401 = vld [vmem:[#allocation3 + $0x120] sm:$0xff]
      %v2402 = vld [vmem:[#allocation3 + $0x128] sm:$0xff]
      %v2403 = vld [vmem:[#allocation3 + $0x138] sm:$0xff]
      %v2404 = vld [vmem:[#allocation3 + $0x140] sm:$0xff]
      %v2405 = vld [vmem:[#allocation3 + $0x150] sm:$0xff]
      %v2406 = vld [vmem:[#allocation3 + $0x158] sm:$0xff]
      %v2407 = vld [vmem:[#allocation3 + $0x168] sm:$0xff]
      %v2408 = vld [vmem:[#allocation3 + $0x170] sm:$0xff]
      %2409 = vst.msk [vmem:[#allocation5] sm:$0xff] %vm2256, %v2377
      %2410 = vst.msk [vmem:[#allocation5 + $0x8] sm:$0xff] %vm2256, %v2378
      %2411 = vst.msk [vmem:[#allocation5 + $0x10] sm:$0xff] %vm2256, %v2379
      %2412 = vst.msk [vmem:[#allocation5 + $0x18] sm:$0xff] %vm2256, %v2380
      %2413 = vst.msk [vmem:[#allocation5 + $0x20] sm:$0xff] %vm2256, %v2381
      %2414 = vst.msk [vmem:[#allocation5 + $0x28] sm:$0xff] %vm2256, %v2382
      %2415 = vst.msk [vmem:[#allocation5 + $0x30] sm:$0xff] %vm2256, %v2383
      %2416 = vst.msk [vmem:[#allocation5 + $0x38] sm:$0xff] %vm2256, %v2384
      %2417 = vst.msk [vmem:[#allocation5 + $0x40] sm:$0xff] %vm2256, %v2385
      %2418 = vst.msk [vmem:[#allocation5 + $0x48] sm:$0xff] %vm2256, %v2386
      %2419 = vst.msk [vmem:[#allocation5 + $0x50] sm:$0xff] %vm2256, %v2387
      %2420 = vst.msk [vmem:[#allocation5 + $0x58] sm:$0xff] %vm2256, %v2388
      %2421 = vst.msk [vmem:[#allocation5 + $0x60] sm:$0xff] %vm2256, %v2389
      %2422 = vst.msk [vmem:[#allocation5 + $0x68] sm:$0xff] %vm2256, %v2390
      %2423 = vst.msk [vmem:[#allocation5 + $0x70] sm:$0xff] %vm2256, %v2391
      %2424 = vst.msk [vmem:[#allocation5 + $0x78] sm:$0xff] %vm2256, %v2392
      %2425 = vst.msk [vmem:[#allocation5 + $0x80] sm:$0xff] %vm2256, %v2393
      %2426 = vst.msk [vmem:[#allocation5 + $0x88] sm:$0xff] %vm2256, %v2394
      %2427 = vst.msk [vmem:[#allocation5 + $0x90] sm:$0xff] %vm2256, %v2395
      %2428 = vst.msk [vmem:[#allocation5 + $0x98] sm:$0xff] %vm2256, %v2396
      %2429 = vst.msk [vmem:[#allocation5 + $0xa0] sm:$0xff] %vm2256, %v2397
      %2430 = vst.msk [vmem:[#allocation5 + $0xa8] sm:$0xff] %vm2256, %v2398
      %2431 = vst.msk [vmem:[#allocation5 + $0xb0] sm:$0xff] %vm2256, %v2399
      %2432 = vst.msk [vmem:[#allocation5 + $0xb8] sm:$0xff] %vm2256, %v2400
      %2433 = vst.msk [vmem:[#allocation5 + $0xc0] sm:$0xff] %vm2256, %v2401
      %2434 = vst.msk [vmem:[#allocation5 + $0xc8] sm:$0xff] %vm2256, %v2402
      %2435 = vst.msk [vmem:[#allocation5 + $0xd0] sm:$0xff] %vm2256, %v2403
      %2436 = vst.msk [vmem:[#allocation5 + $0xd8] sm:$0xff] %vm2256, %v2404
      %2437 = vst.msk [vmem:[#allocation5 + $0xe0] sm:$0xff] %vm2256, %v2405
      %2438 = vst.msk [vmem:[#allocation5 + $0xe8] sm:$0xff] %vm2256, %v2406
      %2439 = vst.msk [vmem:[#allocation5 + $0xf0] sm:$0xff] %vm2256, %v2407
      %2440 = vst.msk [vmem:[#allocation5 + $0xf8] sm:$0xff] %vm2256, %v2408
      %v2441 = vld [vmem:[#allocation3 + $0x1] sm:$0xff]
      %v2442 = vld [vmem:[#allocation3 + $0x9] sm:$0xff]
      %v2443 = vld [vmem:[#allocation3 + $0x19] sm:$0xff]
      %v2444 = vld [vmem:[#allocation3 + $0x21] sm:$0xff]
      %v2445 = vld [vmem:[#allocation3 + $0x31] sm:$0xff]
      %v2446 = vld [vmem:[#allocation3 + $0x39] sm:$0xff]
      %v2447 = vld [vmem:[#allocation3 + $0x49] sm:$0xff]
      %v2448 = vld [vmem:[#allocation3 + $0x51] sm:$0xff]
      %v2449 = vld [vmem:[#allocation3 + $0x61] sm:$0xff]
      %v2450 = vld [vmem:[#allocation3 + $0x69] sm:$0xff]
      %v2451 = vld [vmem:[#allocation3 + $0x79] sm:$0xff]
      %v2452 = vld [vmem:[#allocation3 + $0x81] sm:$0xff]
      %v2453 = vld [vmem:[#allocation3 + $0x91] sm:$0xff]
      %v2454 = vld [vmem:[#allocation3 + $0x99] sm:$0xff]
      %v2455 = vld [vmem:[#allocation3 + $0xa9] sm:$0xff]
      %v2456 = vld [vmem:[#allocation3 + $0xb1] sm:$0xff]
      %v2457 = vld [vmem:[#allocation3 + $0xc1] sm:$0xff]
      %v2458 = vld [vmem:[#allocation3 + $0xc9] sm:$0xff]
      %v2459 = vld [vmem:[#allocation3 + $0xd9] sm:$0xff]
      %v2460 = vld [vmem:[#allocation3 + $0xe1] sm:$0xff]
      %v2461 = vld [vmem:[#allocation3 + $0xf1] sm:$0xff]
      %v2462 = vld [vmem:[#allocation3 + $0xf9] sm:$0xff]
      %v2463 = vld [vmem:[#allocation3 + $0x109] sm:$0xff]
      %v2464 = vld [vmem:[#allocation3 + $0x111] sm:$0xff]
      %v2465 = vld [vmem:[#allocation3 + $0x121] sm:$0xff]
      %v2466 = vld [vmem:[#allocation3 + $0x129] sm:$0xff]
      %v2467 = vld [vmem:[#allocation3 + $0x139] sm:$0xff]
      %v2468 = vld [vmem:[#allocation3 + $0x141] sm:$0xff]
      %v2469 = vld [vmem:[#allocation3 + $0x151] sm:$0xff]
      %v2470 = vld [vmem:[#allocation3 + $0x159] sm:$0xff]
      %v2471 = vld [vmem:[#allocation3 + $0x169] sm:$0xff]
      %v2472 = vld [vmem:[#allocation3 + $0x171] sm:$0xff]
      %2505 = vrot.lane.b32.xlu0 %v2441, 8
      %v2506 = vpop.permute.xlu0 %2505
      %2507 = vrot.lane.b32.xlu0 %v2442, 8
      %v2508 = vpop.permute.xlu0 %2507
      %2509 = vrot.lane.b32.xlu0 %v2443, 8
      %v2510 = vpop.permute.xlu0 %2509
      %2511 = vrot.lane.b32.xlu0 %v2444, 8
      %v2512 = vpop.permute.xlu0 %2511
      %2513 = vrot.lane.b32.xlu0 %v2445, 8
      %v2514 = vpop.permute.xlu0 %2513
      %2515 = vrot.lane.b32.xlu0 %v2446, 8
      %v2516 = vpop.permute.xlu0 %2515
      %2517 = vrot.lane.b32.xlu0 %v2447, 8
      %v2518 = vpop.permute.xlu0 %2517
      %2519 = vrot.lane.b32.xlu0 %v2448, 8
      %v2520 = vpop.permute.xlu0 %2519
      %2521 = vrot.lane.b32.xlu0 %v2449, 8
      %v2522 = vpop.permute.xlu0 %2521
      %2523 = vrot.lane.b32.xlu0 %v2450, 8
      %v2524 = vpop.permute.xlu0 %2523
      %2525 = vrot.lane.b32.xlu0 %v2451, 8
      %v2526 = vpop.permute.xlu0 %2525
      %2527 = vrot.lane.b32.xlu0 %v2452, 8
      %v2528 = vpop.permute.xlu0 %2527
      %2529 = vrot.lane.b32.xlu0 %v2453, 8
      %v2530 = vpop.permute.xlu0 %2529
      %2531 = vrot.lane.b32.xlu0 %v2454, 8
      %v2532 = vpop.permute.xlu0 %2531
      %2533 = vrot.lane.b32.xlu0 %v2455, 8
      %v2534 = vpop.permute.xlu0 %2533
      %2535 = vrot.lane.b32.xlu0 %v2456, 8
      %v2536 = vpop.permute.xlu0 %2535
      %2537 = vrot.lane.b32.xlu0 %v2457, 8
      %v2538 = vpop.permute.xlu0 %2537
      %2539 = vrot.lane.b32.xlu0 %v2458, 8
      %v2540 = vpop.permute.xlu0 %2539
      %2541 = vrot.lane.b32.xlu0 %v2459, 8
      %v2542 = vpop.permute.xlu0 %2541
      %2543 = vrot.lane.b32.xlu0 %v2460, 8
      %v2544 = vpop.permute.xlu0 %2543
      %2545 = vrot.lane.b32.xlu0 %v2461, 8
      %v2546 = vpop.permute.xlu0 %2545
      %2547 = vrot.lane.b32.xlu0 %v2462, 8
      %v2548 = vpop.permute.xlu0 %2547
      %2549 = vrot.lane.b32.xlu0 %v2463, 8
      %v2550 = vpop.permute.xlu0 %2549
      %2551 = vrot.lane.b32.xlu0 %v2464, 8
      %v2552 = vpop.permute.xlu0 %2551
      %2553 = vrot.lane.b32.xlu0 %v2465, 8
      %v2554 = vpop.permute.xlu0 %2553
      %2555 = vrot.lane.b32.xlu0 %v2466, 8
      %v2556 = vpop.permute.xlu0 %2555
      %2557 = vrot.lane.b32.xlu0 %v2467, 8
      %v2558 = vpop.permute.xlu0 %2557
      %2559 = vrot.lane.b32.xlu0 %v2468, 8
      %v2560 = vpop.permute.xlu0 %2559
      %2561 = vrot.lane.b32.xlu0 %v2469, 8
      %v2562 = vpop.permute.xlu0 %2561
      %2563 = vrot.lane.b32.xlu0 %v2470, 8
      %v2564 = vpop.permute.xlu0 %2563
      %2565 = vrot.lane.b32.xlu0 %v2471, 8
      %v2566 = vpop.permute.xlu0 %2565
      %2567 = vrot.lane.b32.xlu0 %v2472, 8
      %v2568 = vpop.permute.xlu0 %2567
      %vm2601 = vcmask 130112
      %2602 = vst.msk [vmem:[#allocation5] sm:$0xff] %vm2601, %v2506
      %2603 = vst.msk [vmem:[#allocation5 + $0x8] sm:$0xff] %vm2601, %v2508
      %2604 = vst.msk [vmem:[#allocation5 + $0x10] sm:$0xff] %vm2601, %v2510
      %2605 = vst.msk [vmem:[#allocation5 + $0x18] sm:$0xff] %vm2601, %v2512
      %2606 = vst.msk [vmem:[#allocation5 + $0x20] sm:$0xff] %vm2601, %v2514
      %2607 = vst.msk [vmem:[#allocation5 + $0x28] sm:$0xff] %vm2601, %v2516
      %2608 = vst.msk [vmem:[#allocation5 + $0x30] sm:$0xff] %vm2601, %v2518
      %2609 = vst.msk [vmem:[#allocation5 + $0x38] sm:$0xff] %vm2601, %v2520
      %2610 = vst.msk [vmem:[#allocation5 + $0x40] sm:$0xff] %vm2601, %v2522
      %2611 = vst.msk [vmem:[#allocation5 + $0x48] sm:$0xff] %vm2601, %v2524
      %2612 = vst.msk [vmem:[#allocation5 + $0x50] sm:$0xff] %vm2601, %v2526
      %2613 = vst.msk [vmem:[#allocation5 + $0x58] sm:$0xff] %vm2601, %v2528
      %2614 = vst.msk [vmem:[#allocation5 + $0x60] sm:$0xff] %vm2601, %v2530
      %2615 = vst.msk [vmem:[#allocation5 + $0x68] sm:$0xff] %vm2601, %v2532
      %2616 = vst.msk [vmem:[#allocation5 + $0x70] sm:$0xff] %vm2601, %v2534
      %2617 = vst.msk [vmem:[#allocation5 + $0x78] sm:$0xff] %vm2601, %v2536
      %2618 = vst.msk [vmem:[#allocation5 + $0x80] sm:$0xff] %vm2601, %v2538
      %2619 = vst.msk [vmem:[#allocation5 + $0x88] sm:$0xff] %vm2601, %v2540
      %2620 = vst.msk [vmem:[#allocation5 + $0x90] sm:$0xff] %vm2601, %v2542
      %2621 = vst.msk [vmem:[#allocation5 + $0x98] sm:$0xff] %vm2601, %v2544
      %2622 = vst.msk [vmem:[#allocation5 + $0xa0] sm:$0xff] %vm2601, %v2546
      %2623 = vst.msk [vmem:[#allocation5 + $0xa8] sm:$0xff] %vm2601, %v2548
      %2624 = vst.msk [vmem:[#allocation5 + $0xb0] sm:$0xff] %vm2601, %v2550
      %2625 = vst.msk [vmem:[#allocation5 + $0xb8] sm:$0xff] %vm2601, %v2552
      %2626 = vst.msk [vmem:[#allocation5 + $0xc0] sm:$0xff] %vm2601, %v2554
      %2627 = vst.msk [vmem:[#allocation5 + $0xc8] sm:$0xff] %vm2601, %v2556
      %2628 = vst.msk [vmem:[#allocation5 + $0xd0] sm:$0xff] %vm2601, %v2558
      %2629 = vst.msk [vmem:[#allocation5 + $0xd8] sm:$0xff] %vm2601, %v2560
      %2630 = vst.msk [vmem:[#allocation5 + $0xe0] sm:$0xff] %vm2601, %v2562
      %2631 = vst.msk [vmem:[#allocation5 + $0xe8] sm:$0xff] %vm2601, %v2564
      %2632 = vst.msk [vmem:[#allocation5 + $0xf0] sm:$0xff] %vm2601, %v2566
      %2633 = vst.msk [vmem:[#allocation5 + $0xf8] sm:$0xff] %vm2601, %v2568
      %v2634 = vld [vmem:[#allocation3 + $0x2] sm:$0xff]
      %v2635 = vld [vmem:[#allocation3 + $0xa] sm:$0xff]
      %v2636 = vld [vmem:[#allocation3 + $0x1a] sm:$0xff]
      %v2637 = vld [vmem:[#allocation3 + $0x22] sm:$0xff]
      %v2638 = vld [vmem:[#allocation3 + $0x32] sm:$0xff]
      %v2639 = vld [vmem:[#allocation3 + $0x3a] sm:$0xff]
      %v2640 = vld [vmem:[#allocation3 + $0x4a] sm:$0xff]
      %v2641 = vld [vmem:[#allocation3 + $0x52] sm:$0xff]
      %v2642 = vld [vmem:[#allocation3 + $0x62] sm:$0xff]
      %v2643 = vld [vmem:[#allocation3 + $0x6a] sm:$0xff]
      %v2644 = vld [vmem:[#allocation3 + $0x7a] sm:$0xff]
      %v2645 = vld [vmem:[#allocation3 + $0x82] sm:$0xff]
      %v2646 = vld [vmem:[#allocation3 + $0x92] sm:$0xff]
      %v2647 = vld [vmem:[#allocation3 + $0x9a] sm:$0xff]
      %v2648 = vld [vmem:[#allocation3 + $0xaa] sm:$0xff]
      %v2649 = vld [vmem:[#allocation3 + $0xb2] sm:$0xff]
      %v2650 = vld [vmem:[#allocation3 + $0xc2] sm:$0xff]
      %v2651 = vld [vmem:[#allocation3 + $0xca] sm:$0xff]
      %v2652 = vld [vmem:[#allocation3 + $0xda] sm:$0xff]
      %v2653 = vld [vmem:[#allocation3 + $0xe2] sm:$0xff]
      %v2654 = vld [vmem:[#allocation3 + $0xf2] sm:$0xff]
      %v2655 = vld [vmem:[#allocation3 + $0xfa] sm:$0xff]
      %v2656 = vld [vmem:[#allocation3 + $0x10a] sm:$0xff]
      %v2657 = vld [vmem:[#allocation3 + $0x112] sm:$0xff]
      %v2658 = vld [vmem:[#allocation3 + $0x122] sm:$0xff]
      %v2659 = vld [vmem:[#allocation3 + $0x12a] sm:$0xff]
      %v2660 = vld [vmem:[#allocation3 + $0x13a] sm:$0xff]
      %v2661 = vld [vmem:[#allocation3 + $0x142] sm:$0xff]
      %v2662 = vld [vmem:[#allocation3 + $0x152] sm:$0xff]
      %v2663 = vld [vmem:[#allocation3 + $0x15a] sm:$0xff]
      %v2664 = vld [vmem:[#allocation3 + $0x16a] sm:$0xff]
      %v2665 = vld [vmem:[#allocation3 + $0x172] sm:$0xff]
      %2698 = vrot.lane.b32.xlu0 %v2634, 16
      %v2699 = vpop.permute.xlu0 %2698
      %2700 = vrot.lane.b32.xlu0 %v2635, 16
      %v2701 = vpop.permute.xlu0 %2700
      %2702 = vrot.lane.b32.xlu0 %v2636, 16
      %v2703 = vpop.permute.xlu0 %2702
      %2704 = vrot.lane.b32.xlu0 %v2637, 16
      %v2705 = vpop.permute.xlu0 %2704
      %2706 = vrot.lane.b32.xlu0 %v2638, 16
      %v2707 = vpop.permute.xlu0 %2706
      %2708 = vrot.lane.b32.xlu0 %v2639, 16
      %v2709 = vpop.permute.xlu0 %2708
      %2710 = vrot.lane.b32.xlu0 %v2640, 16
      %v2711 = vpop.permute.xlu0 %2710
      %2712 = vrot.lane.b32.xlu0 %v2641, 16
      %v2713 = vpop.permute.xlu0 %2712
      %2714 = vrot.lane.b32.xlu0 %v2642, 16
      %v2715 = vpop.permute.xlu0 %2714
      %2716 = vrot.lane.b32.xlu0 %v2643, 16
      %v2717 = vpop.permute.xlu0 %2716
      %2718 = vrot.lane.b32.xlu0 %v2644, 16
      %v2719 = vpop.permute.xlu0 %2718
      %2720 = vrot.lane.b32.xlu0 %v2645, 16
      %v2721 = vpop.permute.xlu0 %2720
      %2722 = vrot.lane.b32.xlu0 %v2646, 16
      %v2723 = vpop.permute.xlu0 %2722
      %2724 = vrot.lane.b32.xlu0 %v2647, 16
      %v2725 = vpop.permute.xlu0 %2724
      %2726 = vrot.lane.b32.xlu0 %v2648, 16
      %v2727 = vpop.permute.xlu0 %2726
      %2728 = vrot.lane.b32.xlu0 %v2649, 16
      %v2729 = vpop.permute.xlu0 %2728
      %2730 = vrot.lane.b32.xlu0 %v2650, 16
      %v2731 = vpop.permute.xlu0 %2730
      %2732 = vrot.lane.b32.xlu0 %v2651, 16
      %v2733 = vpop.permute.xlu0 %2732
      %2734 = vrot.lane.b32.xlu0 %v2652, 16
      %v2735 = vpop.permute.xlu0 %2734
      %2736 = vrot.lane.b32.xlu0 %v2653, 16
      %v2737 = vpop.permute.xlu0 %2736
      %2738 = vrot.lane.b32.xlu0 %v2654, 16
      %v2739 = vpop.permute.xlu0 %2738
      %2740 = vrot.lane.b32.xlu0 %v2655, 16
      %v2741 = vpop.permute.xlu0 %2740
      %2742 = vrot.lane.b32.xlu0 %v2656, 16
      %v2743 = vpop.permute.xlu0 %2742
      %2744 = vrot.lane.b32.xlu0 %v2657, 16
      %v2745 = vpop.permute.xlu0 %2744
      %2746 = vrot.lane.b32.xlu0 %v2658, 16
      %v2747 = vpop.permute.xlu0 %2746
      %2748 = vrot.lane.b32.xlu0 %v2659, 16
      %v2749 = vpop.permute.xlu0 %2748
      %2750 = vrot.lane.b32.xlu0 %v2660, 16
      %v2751 = vpop.permute.xlu0 %2750
      %2752 = vrot.lane.b32.xlu0 %v2661, 16
      %v2753 = vpop.permute.xlu0 %2752
      %2754 = vrot.lane.b32.xlu0 %v2662, 16
      %v2755 = vpop.permute.xlu0 %2754
      %2756 = vrot.lane.b32.xlu0 %v2663, 16
      %v2757 = vpop.permute.xlu0 %2756
      %2758 = vrot.lane.b32.xlu0 %v2664, 16
      %v2759 = vpop.permute.xlu0 %2758
      %2760 = vrot.lane.b32.xlu0 %v2665, 16
      %v2761 = vpop.permute.xlu0 %2760
      %vm2794 = vcmask 195712
      %2795 = vst.msk [vmem:[#allocation5] sm:$0xff] %vm2794, %v2699
      %2796 = vst.msk [vmem:[#allocation5 + $0x8] sm:$0xff] %vm2794, %v2701
      %2797 = vst.msk [vmem:[#allocation5 + $0x10] sm:$0xff] %vm2794, %v2703
      %2798 = vst.msk [vmem:[#allocation5 + $0x18] sm:$0xff] %vm2794, %v2705
      %2799 = vst.msk [vmem:[#allocation5 + $0x20] sm:$0xff] %vm2794, %v2707
      %2800 = vst.msk [vmem:[#allocation5 + $0x28] sm:$0xff] %vm2794, %v2709
      %2801 = vst.msk [vmem:[#allocation5 + $0x30] sm:$0xff] %vm2794, %v2711
      %2802 = vst.msk [vmem:[#allocation5 + $0x38] sm:$0xff] %vm2794, %v2713
      %2803 = vst.msk [vmem:[#allocation5 + $0x40] sm:$0xff] %vm2794, %v2715
      %2804 = vst.msk [vmem:[#allocation5 + $0x48] sm:$0xff] %vm2794, %v2717
      %2805 = vst.msk [vmem:[#allocation5 + $0x50] sm:$0xff] %vm2794, %v2719
      %2806 = vst.msk [vmem:[#allocation5 + $0x58] sm:$0xff] %vm2794, %v2721
      %2807 = vst.msk [vmem:[#allocation5 + $0x60] sm:$0xff] %vm2794, %v2723
      %2808 = vst.msk [vmem:[#allocation5 + $0x68] sm:$0xff] %vm2794, %v2725
      %2809 = vst.msk [vmem:[#allocation5 + $0x70] sm:$0xff] %vm2794, %v2727
      %2810 = vst.msk [vmem:[#allocation5 + $0x78] sm:$0xff] %vm2794, %v2729
      %2811 = vst.msk [vmem:[#allocation5 + $0x80] sm:$0xff] %vm2794, %v2731
      %2812 = vst.msk [vmem:[#allocation5 + $0x88] sm:$0xff] %vm2794, %v2733
      %2813 = vst.msk [vmem:[#allocation5 + $0x90] sm:$0xff] %vm2794, %v2735
      %2814 = vst.msk [vmem:[#allocation5 + $0x98] sm:$0xff] %vm2794, %v2737
      %2815 = vst.msk [vmem:[#allocation5 + $0xa0] sm:$0xff] %vm2794, %v2739
      %2816 = vst.msk [vmem:[#allocation5 + $0xa8] sm:$0xff] %vm2794, %v2741
      %2817 = vst.msk [vmem:[#allocation5 + $0xb0] sm:$0xff] %vm2794, %v2743
      %2818 = vst.msk [vmem:[#allocation5 + $0xb8] sm:$0xff] %vm2794, %v2745
      %2819 = vst.msk [vmem:[#allocation5 + $0xc0] sm:$0xff] %vm2794, %v2747
      %2820 = vst.msk [vmem:[#allocation5 + $0xc8] sm:$0xff] %vm2794, %v2749
      %2821 = vst.msk [vmem:[#allocation5 + $0xd0] sm:$0xff] %vm2794, %v2751
      %2822 = vst.msk [vmem:[#allocation5 + $0xd8] sm:$0xff] %vm2794, %v2753
      %2823 = vst.msk [vmem:[#allocation5 + $0xe0] sm:$0xff] %vm2794, %v2755
      %2824 = vst.msk [vmem:[#allocation5 + $0xe8] sm:$0xff] %vm2794, %v2757
      %2825 = vst.msk [vmem:[#allocation5 + $0xf0] sm:$0xff] %vm2794, %v2759
      %2826 = vst.msk [vmem:[#allocation5 + $0xf8] sm:$0xff] %vm2794, %v2761
      %v2827 = vld [vmem:[%s2344] sm:$0xff]
      %v2828 = vld [vmem:[%s2344 + $0x8] sm:$0xff]
      %v2829 = vld [vmem:[%s2344 + $0x18] sm:$0xff]
      %v2830 = vld [vmem:[%s2344 + $0x20] sm:$0xff]
      %v2831 = vld [vmem:[%s2344 + $0x30] sm:$0xff]
      %v2832 = vld [vmem:[%s2344 + $0x38] sm:$0xff]
      %v2833 = vld [vmem:[%s2344 + $0x48] sm:$0xff]
      %v2834 = vld [vmem:[%s2344 + $0x50] sm:$0xff]
      %v2835 = vld [vmem:[%s2344 + $0x60] sm:$0xff]
      %v2836 = vld [vmem:[%s2344 + $0x68] sm:$0xff]
      %v2837 = vld [vmem:[%s2344 + $0x78] sm:$0xff]
      %v2838 = vld [vmem:[%s2344 + $0x80] sm:$0xff]
      %v2839 = vld [vmem:[%s2344 + $0x90] sm:$0xff]
      %v2840 = vld [vmem:[%s2344 + $0x98] sm:$0xff]
      %v2841 = vld [vmem:[%s2344 + $0xa8] sm:$0xff]
      %v2842 = vld [vmem:[%s2344 + $0xb0] sm:$0xff]
      %v2843 = vld [vmem:[%s2344 + $0xc0] sm:$0xff]
      %v2844 = vld [vmem:[%s2344 + $0xc8] sm:$0xff]
      %v2845 = vld [vmem:[%s2344 + $0xd8] sm:$0xff]
      %v2846 = vld [vmem:[%s2344 + $0xe0] sm:$0xff]
      %v2847 = vld [vmem:[%s2344 + $0xf0] sm:$0xff]
      %v2848 = vld [vmem:[%s2344 + $0xf8] sm:$0xff]
      %v2849 = vld [vmem:[%s2344 + $0x108] sm:$0xff]
      %v2850 = vld [vmem:[%s2344 + $0x110] sm:$0xff]
      %v2851 = vld [vmem:[%s2344 + $0x120] sm:$0xff]
      %v2852 = vld [vmem:[%s2344 + $0x128] sm:$0xff]
      %v2853 = vld [vmem:[%s2344 + $0x138] sm:$0xff]
      %v2854 = vld [vmem:[%s2344 + $0x140] sm:$0xff]
      %v2855 = vld [vmem:[%s2344 + $0x150] sm:$0xff]
      %v2856 = vld [vmem:[%s2344 + $0x158] sm:$0xff]
      %v2857 = vld [vmem:[%s2344 + $0x168] sm:$0xff]
      %v2858 = vld [vmem:[%s2344 + $0x170] sm:$0xff]
      %2891 = vrot.lane.b32.xlu0 %v2827, 24
      %v2892 = vpop.permute.xlu0 %2891
      %2893 = vrot.lane.b32.xlu0 %v2828, 24
      %v2894 = vpop.permute.xlu0 %2893
      %2895 = vrot.lane.b32.xlu0 %v2829, 24
      %v2896 = vpop.permute.xlu0 %2895
      %2897 = vrot.lane.b32.xlu0 %v2830, 24
      %v2898 = vpop.permute.xlu0 %2897
      %2899 = vrot.lane.b32.xlu0 %v2831, 24
      %v2900 = vpop.permute.xlu0 %2899
      %2901 = vrot.lane.b32.xlu0 %v2832, 24
      %v2902 = vpop.permute.xlu0 %2901
      %2903 = vrot.lane.b32.xlu0 %v2833, 24
      %v2904 = vpop.permute.xlu0 %2903
      %2905 = vrot.lane.b32.xlu0 %v2834, 24
      %v2906 = vpop.permute.xlu0 %2905
      %2907 = vrot.lane.b32.xlu0 %v2835, 24
      %v2908 = vpop.permute.xlu0 %2907
      %2909 = vrot.lane.b32.xlu0 %v2836, 24
      %v2910 = vpop.permute.xlu0 %2909
      %2911 = vrot.lane.b32.xlu0 %v2837, 24
      %v2912 = vpop.permute.xlu0 %2911
      %2913 = vrot.lane.b32.xlu0 %v2838, 24
      %v2914 = vpop.permute.xlu0 %2913
      %2915 = vrot.lane.b32.xlu0 %v2839, 24
      %v2916 = vpop.permute.xlu0 %2915
      %2917 = vrot.lane.b32.xlu0 %v2840, 24
      %v2918 = vpop.permute.xlu0 %2917
      %2919 = vrot.lane.b32.xlu0 %v2841, 24
      %v2920 = vpop.permute.xlu0 %2919
      %2921 = vrot.lane.b32.xlu0 %v2842, 24
      %v2922 = vpop.permute.xlu0 %2921
      %2923 = vrot.lane.b32.xlu0 %v2843, 24
      %v2924 = vpop.permute.xlu0 %2923
      %2925 = vrot.lane.b32.xlu0 %v2844, 24
      %v2926 = vpop.permute.xlu0 %2925
      %2927 = vrot.lane.b32.xlu0 %v2845, 24
      %v2928 = vpop.permute.xlu0 %2927
      %2929 = vrot.lane.b32.xlu0 %v2846, 24
      %v2930 = vpop.permute.xlu0 %2929
      %2931 = vrot.lane.b32.xlu0 %v2847, 24
      %v2932 = vpop.permute.xlu0 %2931
      %2933 = vrot.lane.b32.xlu0 %v2848, 24
      %v2934 = vpop.permute.xlu0 %2933
      %2935 = vrot.lane.b32.xlu0 %v2849, 24
      %v2936 = vpop.permute.xlu0 %2935
      %2937 = vrot.lane.b32.xlu0 %v2850, 24
      %v2938 = vpop.permute.xlu0 %2937
      %2939 = vrot.lane.b32.xlu0 %v2851, 24
      %v2940 = vpop.permute.xlu0 %2939
      %2941 = vrot.lane.b32.xlu0 %v2852, 24
      %v2942 = vpop.permute.xlu0 %2941
      %2943 = vrot.lane.b32.xlu0 %v2853, 24
      %v2944 = vpop.permute.xlu0 %2943
      %2945 = vrot.lane.b32.xlu0 %v2854, 24
      %v2946 = vpop.permute.xlu0 %2945
      %2947 = vrot.lane.b32.xlu0 %v2855, 24
      %v2948 = vpop.permute.xlu0 %2947
      %2949 = vrot.lane.b32.xlu0 %v2856, 24
      %v2950 = vpop.permute.xlu0 %2949
      %2951 = vrot.lane.b32.xlu0 %v2857, 24
      %v2952 = vpop.permute.xlu0 %2951
      %2953 = vrot.lane.b32.xlu0 %v2858, 24
      %v2954 = vpop.permute.xlu0 %2953
      %vm2987 = vcmask 261312
      %2988 = vst.msk [vmem:[#allocation5] sm:$0xff] %vm2987, %v2892
      %2989 = vst.msk [vmem:[#allocation5 + $0x8] sm:$0xff] %vm2987, %v2894
      %2990 = vst.msk [vmem:[#allocation5 + $0x10] sm:$0xff] %vm2987, %v2896
      %2991 = vst.msk [vmem:[#allocation5 + $0x18] sm:$0xff] %vm2987, %v2898
      %2992 = vst.msk [vmem:[#allocation5 + $0x20] sm:$0xff] %vm2987, %v2900
      %2993 = vst.msk [vmem:[#allocation5 + $0x28] sm:$0xff] %vm2987, %v2902
      %2994 = vst.msk [vmem:[#allocation5 + $0x30] sm:$0xff] %vm2987, %v2904
      %2995 = vst.msk [vmem:[#allocation5 + $0x38] sm:$0xff] %vm2987, %v2906
      %2996 = vst.msk [vmem:[#allocation5 + $0x40] sm:$0xff] %vm2987, %v2908
      %2997 = vst.msk [vmem:[#allocation5 + $0x48] sm:$0xff] %vm2987, %v2910
      %2998 = vst.msk [vmem:[#allocation5 + $0x50] sm:$0xff] %vm2987, %v2912
      %2999 = vst.msk [vmem:[#allocation5 + $0x58] sm:$0xff] %vm2987, %v2914
      %3000 = vst.msk [vmem:[#allocation5 + $0x60] sm:$0xff] %vm2987, %v2916
      %3001 = vst.msk [vmem:[#allocation5 + $0x68] sm:$0xff] %vm2987, %v2918
      %3002 = vst.msk [vmem:[#allocation5 + $0x70] sm:$0xff] %vm2987, %v2920
      %3003 = vst.msk [vmem:[#allocation5 + $0x78] sm:$0xff] %vm2987, %v2922
      %3004 = vst.msk [vmem:[#allocation5 + $0x80] sm:$0xff] %vm2987, %v2924
      %3005 = vst.msk [vmem:[#allocation5 + $0x88] sm:$0xff] %vm2987, %v2926
      %3006 = vst.msk [vmem:[#allocation5 + $0x90] sm:$0xff] %vm2987, %v2928
      %3007 = vst.msk [vmem:[#allocation5 + $0x98] sm:$0xff] %vm2987, %v2930
      %3008 = vst.msk [vmem:[#allocation5 + $0xa0] sm:$0xff] %vm2987, %v2932
      %3009 = vst.msk [vmem:[#allocation5 + $0xa8] sm:$0xff] %vm2987, %v2934
      %3010 = vst.msk [vmem:[#allocation5 + $0xb0] sm:$0xff] %vm2987, %v2936
      %3011 = vst.msk [vmem:[#allocation5 + $0xb8] sm:$0xff] %vm2987, %v2938
      %3012 = vst.msk [vmem:[#allocation5 + $0xc0] sm:$0xff] %vm2987, %v2940
      %3013 = vst.msk [vmem:[#allocation5 + $0xc8] sm:$0xff] %vm2987, %v2942
      %3014 = vst.msk [vmem:[#allocation5 + $0xd0] sm:$0xff] %vm2987, %v2944
      %3015 = vst.msk [vmem:[#allocation5 + $0xd8] sm:$0xff] %vm2987, %v2946
      %3016 = vst.msk [vmem:[#allocation5 + $0xe0] sm:$0xff] %vm2987, %v2948
      %3017 = vst.msk [vmem:[#allocation5 + $0xe8] sm:$0xff] %vm2987, %v2950
      %3018 = vst.msk [vmem:[#allocation5 + $0xf0] sm:$0xff] %vm2987, %v2952
      %3019 = vst.msk [vmem:[#allocation5 + $0xf8] sm:$0xff] %vm2987, %v2954
      %v3020 = vld [vmem:[%s2344 + $0x1] sm:$0xff]
      %v3021 = vld [vmem:[%s2344 + $0x9] sm:$0xff]
      %v3022 = vld [vmem:[%s2344 + $0x19] sm:$0xff]
      %v3023 = vld [vmem:[%s2344 + $0x21] sm:$0xff]
      %v3024 = vld [vmem:[%s2344 + $0x31] sm:$0xff]
      %v3025 = vld [vmem:[%s2344 + $0x39] sm:$0xff]
      %v3026 = vld [vmem:[%s2344 + $0x49] sm:$0xff]
      %v3027 = vld [vmem:[%s2344 + $0x51] sm:$0xff]
      %v3028 = vld [vmem:[%s2344 + $0x61] sm:$0xff]
      %v3029 = vld [vmem:[%s2344 + $0x69] sm:$0xff]
      %v3030 = vld [vmem:[%s2344 + $0x79] sm:$0xff]
      %v3031 = vld [vmem:[%s2344 + $0x81] sm:$0xff]
      %v3032 = vld [vmem:[%s2344 + $0x91] sm:$0xff]
      %v3033 = vld [vmem:[%s2344 + $0x99] sm:$0xff]
      %v3034 = vld [vmem:[%s2344 + $0xa9] sm:$0xff]
      %v3035 = vld [vmem:[%s2344 + $0xb1] sm:$0xff]
      %v3036 = vld [vmem:[%s2344 + $0xc1] sm:$0xff]
      %v3037 = vld [vmem:[%s2344 + $0xc9] sm:$0xff]
      %v3038 = vld [vmem:[%s2344 + $0xd9] sm:$0xff]
      %v3039 = vld [vmem:[%s2344 + $0xe1] sm:$0xff]
      %v3040 = vld [vmem:[%s2344 + $0xf1] sm:$0xff]
      %v3041 = vld [vmem:[%s2344 + $0xf9] sm:$0xff]
      %v3042 = vld [vmem:[%s2344 + $0x109] sm:$0xff]
      %v3043 = vld [vmem:[%s2344 + $0x111] sm:$0xff]
      %v3044 = vld [vmem:[%s2344 + $0x121] sm:$0xff]
      %v3045 = vld [vmem:[%s2344 + $0x129] sm:$0xff]
      %v3046 = vld [vmem:[%s2344 + $0x139] sm:$0xff]
      %v3047 = vld [vmem:[%s2344 + $0x141] sm:$0xff]
      %v3048 = vld [vmem:[%s2344 + $0x151] sm:$0xff]
      %v3049 = vld [vmem:[%s2344 + $0x159] sm:$0xff]
      %v3050 = vld [vmem:[%s2344 + $0x169] sm:$0xff]
      %v3051 = vld [vmem:[%s2344 + $0x171] sm:$0xff]
      %3084 = vrot.lane.b32.xlu0 %v3020, 32
      %v3085 = vpop.permute.xlu0 %3084
      %3086 = vrot.lane.b32.xlu0 %v3021, 32
      %v3087 = vpop.permute.xlu0 %3086
      %3088 = vrot.lane.b32.xlu0 %v3022, 32
      %v3089 = vpop.permute.xlu0 %3088
      %3090 = vrot.lane.b32.xlu0 %v3023, 32
      %v3091 = vpop.permute.xlu0 %3090
      %3092 = vrot.lane.b32.xlu0 %v3024, 32
      %v3093 = vpop.permute.xlu0 %3092
      %3094 = vrot.lane.b32.xlu0 %v3025, 32
      %v3095 = vpop.permute.xlu0 %3094
      %3096 = vrot.lane.b32.xlu0 %v3026, 32
      %v3097 = vpop.permute.xlu0 %3096
      %3098 = vrot.lane.b32.xlu0 %v3027, 32
      %v3099 = vpop.permute.xlu0 %3098
      %3100 = vrot.lane.b32.xlu0 %v3028, 32
      %v3101 = vpop.permute.xlu0 %3100
      %3102 = vrot.lane.b32.xlu0 %v3029, 32
      %v3103 = vpop.permute.xlu0 %3102
      %3104 = vrot.lane.b32.xlu0 %v3030, 32
      %v3105 = vpop.permute.xlu0 %3104
      %3106 = vrot.lane.b32.xlu0 %v3031, 32
      %v3107 = vpop.permute.xlu0 %3106
      %3108 = vrot.lane.b32.xlu0 %v3032, 32
      %v3109 = vpop.permute.xlu0 %3108
      %3110 = vrot.lane.b32.xlu0 %v3033, 32
      %v3111 = vpop.permute.xlu0 %3110
      %3112 = vrot.lane.b32.xlu0 %v3034, 32
      %v3113 = vpop.permute.xlu0 %3112
      %3114 = vrot.lane.b32.xlu0 %v3035, 32
      %v3115 = vpop.permute.xlu0 %3114
      %3116 = vrot.lane.b32.xlu0 %v3036, 32
      %v3117 = vpop.permute.xlu0 %3116
      %3118 = vrot.lane.b32.xlu0 %v3037, 32
      %v3119 = vpop.permute.xlu0 %3118
      %3120 = vrot.lane.b32.xlu0 %v3038, 32
      %v3121 = vpop.permute.xlu0 %3120
      %3122 = vrot.lane.b32.xlu0 %v3039, 32
      %v3123 = vpop.permute.xlu0 %3122
      %3124 = vrot.lane.b32.xlu0 %v3040, 32
      %v3125 = vpop.permute.xlu0 %3124
      %3126 = vrot.lane.b32.xlu0 %v3041, 32
      %v3127 = vpop.permute.xlu0 %3126
      %3128 = vrot.lane.b32.xlu0 %v3042, 32
      %v3129 = vpop.permute.xlu0 %3128
      %3130 = vrot.lane.b32.xlu0 %v3043, 32
      %v3131 = vpop.permute.xlu0 %3130
      %3132 = vrot.lane.b32.xlu0 %v3044, 32
      %v3133 = vpop.permute.xlu0 %3132
      %3134 = vrot.lane.b32.xlu0 %v3045, 32
      %v3135 = vpop.permute.xlu0 %3134
      %3136 = vrot.lane.b32.xlu0 %v3046, 32
      %v3137 = vpop.permute.xlu0 %3136
      %3138 = vrot.lane.b32.xlu0 %v3047, 32
      %v3139 = vpop.permute.xlu0 %3138
      %3140 = vrot.lane.b32.xlu0 %v3048, 32
      %v3141 = vpop.permute.xlu0 %3140
      %3142 = vrot.lane.b32.xlu0 %v3049, 32
      %v3143 = vpop.permute.xlu0 %3142
      %3144 = vrot.lane.b32.xlu0 %v3050, 32
      %v3145 = vpop.permute.xlu0 %3144
      %3146 = vrot.lane.b32.xlu0 %v3051, 32
      %v3147 = vpop.permute.xlu0 %3146
      %vm3180 = vcmask 326912
      %3181 = vst.msk [vmem:[#allocation5] sm:$0xff] %vm3180, %v3085
      %3182 = vst.msk [vmem:[#allocation5 + $0x8] sm:$0xff] %vm3180, %v3087
      %3183 = vst.msk [vmem:[#allocation5 + $0x10] sm:$0xff] %vm3180, %v3089
      %3184 = vst.msk [vmem:[#allocation5 + $0x18] sm:$0xff] %vm3180, %v3091
      %3185 = vst.msk [vmem:[#allocation5 + $0x20] sm:$0xff] %vm3180, %v3093
      %3186 = vst.msk [vmem:[#allocation5 + $0x28] sm:$0xff] %vm3180, %v3095
      %3187 = vst.msk [vmem:[#allocation5 + $0x30] sm:$0xff] %vm3180, %v3097
      %3188 = vst.msk [vmem:[#allocation5 + $0x38] sm:$0xff] %vm3180, %v3099
      %3189 = vst.msk [vmem:[#allocation5 + $0x40] sm:$0xff] %vm3180, %v3101
      %3190 = vst.msk [vmem:[#allocation5 + $0x48] sm:$0xff] %vm3180, %v3103
      %3191 = vst.msk [vmem:[#allocation5 + $0x50] sm:$0xff] %vm3180, %v3105
      %3192 = vst.msk [vmem:[#allocation5 + $0x58] sm:$0xff] %vm3180, %v3107
      %3193 = vst.msk [vmem:[#allocation5 + $0x60] sm:$0xff] %vm3180, %v3109
      %3194 = vst.msk [vmem:[#allocation5 + $0x68] sm:$0xff] %vm3180, %v3111
      %3195 = vst.msk [vmem:[#allocation5 + $0x70] sm:$0xff] %vm3180, %v3113
      %3196 = vst.msk [vmem:[#allocation5 + $0x78] sm:$0xff] %vm3180, %v3115
      %3197 = vst.msk [vmem:[#allocation5 + $0x80] sm:$0xff] %vm3180, %v3117
      %3198 = vst.msk [vmem:[#allocation5 + $0x88] sm:$0xff] %vm3180, %v3119
      %3199 = vst.msk [vmem:[#allocation5 + $0x90] sm:$0xff] %vm3180, %v3121
      %3200 = vst.msk [vmem:[#allocation5 + $0x98] sm:$0xff] %vm3180, %v3123
      %3201 = vst.msk [vmem:[#allocation5 + $0xa0] sm:$0xff] %vm3180, %v3125
      %3202 = vst.msk [vmem:[#allocation5 + $0xa8] sm:$0xff] %vm3180, %v3127
      %3203 = vst.msk [vmem:[#allocation5 + $0xb0] sm:$0xff] %vm3180, %v3129
      %3204 = vst.msk [vmem:[#allocation5 + $0xb8] sm:$0xff] %vm3180, %v3131
      %3205 = vst.msk [vmem:[#allocation5 + $0xc0] sm:$0xff] %vm3180, %v3133
      %3206 = vst.msk [vmem:[#allocation5 + $0xc8] sm:$0xff] %vm3180, %v3135
      %3207 = vst.msk [vmem:[#allocation5 + $0xd0] sm:$0xff] %vm3180, %v3137
      %3208 = vst.msk [vmem:[#allocation5 + $0xd8] sm:$0xff] %vm3180, %v3139
      %3209 = vst.msk [vmem:[#allocation5 + $0xe0] sm:$0xff] %vm3180, %v3141
      %3210 = vst.msk [vmem:[#allocation5 + $0xe8] sm:$0xff] %vm3180, %v3143
      %3211 = vst.msk [vmem:[#allocation5 + $0xf0] sm:$0xff] %vm3180, %v3145
      %3212 = vst.msk [vmem:[#allocation5 + $0xf8] sm:$0xff] %vm3180, %v3147
      %v3213 = vld [vmem:[%s2344 + $0x2] sm:$0xff]
      %v3214 = vld [vmem:[%s2344 + $0xa] sm:$0xff]
      %v3215 = vld [vmem:[%s2344 + $0x1a] sm:$0xff]
      %v3216 = vld [vmem:[%s2344 + $0x22] sm:$0xff]
      %v3217 = vld [vmem:[%s2344 + $0x32] sm:$0xff]
      %v3218 = vld [vmem:[%s2344 + $0x3a] sm:$0xff]
      %v3219 = vld [vmem:[%s2344 + $0x4a] sm:$0xff]
      %v3220 = vld [vmem:[%s2344 + $0x52] sm:$0xff]
      %v3221 = vld [vmem:[%s2344 + $0x62] sm:$0xff]
      %v3222 = vld [vmem:[%s2344 + $0x6a] sm:$0xff]
      %v3223 = vld [vmem:[%s2344 + $0x7a] sm:$0xff]
      %v3224 = vld [vmem:[%s2344 + $0x82] sm:$0xff]
      %v3225 = vld [vmem:[%s2344 + $0x92] sm:$0xff]
      %v3226 = vld [vmem:[%s2344 + $0x9a] sm:$0xff]
      %v3227 = vld [vmem:[%s2344 + $0xaa] sm:$0xff]
      %v3228 = vld [vmem:[%s2344 + $0xb2] sm:$0xff]
      %v3229 = vld [vmem:[%s2344 + $0xc2] sm:$0xff]
      %v3230 = vld [vmem:[%s2344 + $0xca] sm:$0xff]
      %v3231 = vld [vmem:[%s2344 + $0xda] sm:$0xff]
      %v3232 = vld [vmem:[%s2344 + $0xe2] sm:$0xff]
      %v3233 = vld [vmem:[%s2344 + $0xf2] sm:$0xff]
      %v3234 = vld [vmem:[%s2344 + $0xfa] sm:$0xff]
      %v3235 = vld [vmem:[%s2344 + $0x10a] sm:$0xff]
      %v3236 = vld [vmem:[%s2344 + $0x112] sm:$0xff]
      %v3237 = vld [vmem:[%s2344 + $0x122] sm:$0xff]
      %v3238 = vld [vmem:[%s2344 + $0x12a] sm:$0xff]
      %v3239 = vld [vmem:[%s2344 + $0x13a] sm:$0xff]
      %v3240 = vld [vmem:[%s2344 + $0x142] sm:$0xff]
      %v3241 = vld [vmem:[%s2344 + $0x152] sm:$0xff]
      %v3242 = vld [vmem:[%s2344 + $0x15a] sm:$0xff]
      %v3243 = vld [vmem:[%s2344 + $0x16a] sm:$0xff]
      %v3244 = vld [vmem:[%s2344 + $0x172] sm:$0xff]
      %3277 = vrot.lane.b32.xlu0 %v3213, 40
      %v3278 = vpop.permute.xlu0 %3277
      %3279 = vrot.lane.b32.xlu0 %v3214, 40
      %v3280 = vpop.permute.xlu0 %3279
      %3281 = vrot.lane.b32.xlu0 %v3215, 40
      %v3282 = vpop.permute.xlu0 %3281
      %3283 = vrot.lane.b32.xlu0 %v3216, 40
      %v3284 = vpop.permute.xlu0 %3283
      %3285 = vrot.lane.b32.xlu0 %v3217, 40
      %v3286 = vpop.permute.xlu0 %3285
      %3287 = vrot.lane.b32.xlu0 %v3218, 40
      %v3288 = vpop.permute.xlu0 %3287
      %3289 = vrot.lane.b32.xlu0 %v3219, 40
      %v3290 = vpop.permute.xlu0 %3289
      %3291 = vrot.lane.b32.xlu0 %v3220, 40
      %v3292 = vpop.permute.xlu0 %3291
      %3293 = vrot.lane.b32.xlu0 %v3221, 40
      %v3294 = vpop.permute.xlu0 %3293
      %3295 = vrot.lane.b32.xlu0 %v3222, 40
      %v3296 = vpop.permute.xlu0 %3295
      %3297 = vrot.lane.b32.xlu0 %v3223, 40
      %v3298 = vpop.permute.xlu0 %3297
      %3299 = vrot.lane.b32.xlu0 %v3224, 40
      %v3300 = vpop.permute.xlu0 %3299
      %3301 = vrot.lane.b32.xlu0 %v3225, 40
      %v3302 = vpop.permute.xlu0 %3301
      %3303 = vrot.lane.b32.xlu0 %v3226, 40
      %v3304 = vpop.permute.xlu0 %3303
      %3305 = vrot.lane.b32.xlu0 %v3227, 40
      %v3306 = vpop.permute.xlu0 %3305
      %3307 = vrot.lane.b32.xlu0 %v3228, 40
      %v3308 = vpop.permute.xlu0 %3307
      %3309 = vrot.lane.b32.xlu0 %v3229, 40
      %v3310 = vpop.permute.xlu0 %3309
      %3311 = vrot.lane.b32.xlu0 %v3230, 40
      %v3312 = vpop.permute.xlu0 %3311
      %3313 = vrot.lane.b32.xlu0 %v3231, 40
      %v3314 = vpop.permute.xlu0 %3313
      %3315 = vrot.lane.b32.xlu0 %v3232, 40
      %v3316 = vpop.permute.xlu0 %3315
      %3317 = vrot.lane.b32.xlu0 %v3233, 40
      %v3318 = vpop.permute.xlu0 %3317
      %3319 = vrot.lane.b32.xlu0 %v3234, 40
      %v3320 = vpop.permute.xlu0 %3319
      %3321 = vrot.lane.b32.xlu0 %v3235, 40
      %v3322 = vpop.permute.xlu0 %3321
      %3323 = vrot.lane.b32.xlu0 %v3236, 40
      %v3324 = vpop.permute.xlu0 %3323
      %3325 = vrot.lane.b32.xlu0 %v3237, 40
      %v3326 = vpop.permute.xlu0 %3325
      %3327 = vrot.lane.b32.xlu0 %v3238, 40
      %v3328 = vpop.permute.xlu0 %3327
      %3329 = vrot.lane.b32.xlu0 %v3239, 40
      %v3330 = vpop.permute.xlu0 %3329
      %3331 = vrot.lane.b32.xlu0 %v3240, 40
      %v3332 = vpop.permute.xlu0 %3331
      %3333 = vrot.lane.b32.xlu0 %v3241, 40
      %v3334 = vpop.permute.xlu0 %3333
      %3335 = vrot.lane.b32.xlu0 %v3242, 40
      %v3336 = vpop.permute.xlu0 %3335
      %3337 = vrot.lane.b32.xlu0 %v3243, 40
      %v3338 = vpop.permute.xlu0 %3337
      %3339 = vrot.lane.b32.xlu0 %v3244, 40
      %v3340 = vpop.permute.xlu0 %3339
      %vm3373 = vcmask 392512
      %3374 = vst.msk [vmem:[#allocation5] sm:$0xff] %vm3373, %v3278
      %3375 = vst.msk [vmem:[#allocation5 + $0x8] sm:$0xff] %vm3373, %v3280
      %3376 = vst.msk [vmem:[#allocation5 + $0x10] sm:$0xff] %vm3373, %v3282
      %3377 = vst.msk [vmem:[#allocation5 + $0x18] sm:$0xff] %vm3373, %v3284
      %3378 = vst.msk [vmem:[#allocation5 + $0x20] sm:$0xff] %vm3373, %v3286
      %3379 = vst.msk [vmem:[#allocation5 + $0x28] sm:$0xff] %vm3373, %v3288
      %3380 = vst.msk [vmem:[#allocation5 + $0x30] sm:$0xff] %vm3373, %v3290
      %3381 = vst.msk [vmem:[#allocation5 + $0x38] sm:$0xff] %vm3373, %v3292
      %3382 = vst.msk [vmem:[#allocation5 + $0x40] sm:$0xff] %vm3373, %v3294
      %3383 = vst.msk [vmem:[#allocation5 + $0x48] sm:$0xff] %vm3373, %v3296
      %3384 = vst.msk [vmem:[#allocation5 + $0x50] sm:$0xff] %vm3373, %v3298
      %3385 = vst.msk [vmem:[#allocation5 + $0x58] sm:$0xff] %vm3373, %v3300
      %3386 = vst.msk [vmem:[#allocation5 + $0x60] sm:$0xff] %vm3373, %v3302
      %3387 = vst.msk [vmem:[#allocation5 + $0x68] sm:$0xff] %vm3373, %v3304
      %3388 = vst.msk [vmem:[#allocation5 + $0x70] sm:$0xff] %vm3373, %v3306
      %3389 = vst.msk [vmem:[#allocation5 + $0x78] sm:$0xff] %vm3373, %v3308
      %3390 = vst.msk [vmem:[#allocation5 + $0x80] sm:$0xff] %vm3373, %v3310
      %3391 = vst.msk [vmem:[#allocation5 + $0x88] sm:$0xff] %vm3373, %v3312
      %3392 = vst.msk [vmem:[#allocation5 + $0x90] sm:$0xff] %vm3373, %v3314
      %3393 = vst.msk [vmem:[#allocation5 + $0x98] sm:$0xff] %vm3373, %v3316
      %3394 = vst.msk [vmem:[#allocation5 + $0xa0] sm:$0xff] %vm3373, %v3318
      %3395 = vst.msk [vmem:[#allocation5 + $0xa8] sm:$0xff] %vm3373, %v3320
      %3396 = vst.msk [vmem:[#allocation5 + $0xb0] sm:$0xff] %vm3373, %v3322
      %3397 = vst.msk [vmem:[#allocation5 + $0xb8] sm:$0xff] %vm3373, %v3324
      %3398 = vst.msk [vmem:[#allocation5 + $0xc0] sm:$0xff] %vm3373, %v3326
      %3399 = vst.msk [vmem:[#allocation5 + $0xc8] sm:$0xff] %vm3373, %v3328
      %3400 = vst.msk [vmem:[#allocation5 + $0xd0] sm:$0xff] %vm3373, %v3330
      %3401 = vst.msk [vmem:[#allocation5 + $0xd8] sm:$0xff] %vm3373, %v3332
      %3402 = vst.msk [vmem:[#allocation5 + $0xe0] sm:$0xff] %vm3373, %v3334
      %3403 = vst.msk [vmem:[#allocation5 + $0xe8] sm:$0xff] %vm3373, %v3336
      %3404 = vst.msk [vmem:[#allocation5 + $0xf0] sm:$0xff] %vm3373, %v3338
      %3405 = vst.msk [vmem:[#allocation5 + $0xf8] sm:$0xff] %vm3373, %v3340
      %s3406 = scalar_lea.vmem [#allocation3], 48
      %v3407 = vld [vmem:[%s3406] sm:$0xff]
      %v3408 = vld [vmem:[%s3406 + $0x8] sm:$0xff]
      %v3409 = vld [vmem:[%s3406 + $0x18] sm:$0xff]
      %v3410 = vld [vmem:[%s3406 + $0x20] sm:$0xff]
      %v3411 = vld [vmem:[%s3406 + $0x30] sm:$0xff]
      %v3412 = vld [vmem:[%s3406 + $0x38] sm:$0xff]
      %v3413 = vld [vmem:[%s3406 + $0x48] sm:$0xff]
      %v3414 = vld [vmem:[%s3406 + $0x50] sm:$0xff]
      %v3415 = vld [vmem:[%s3406 + $0x60] sm:$0xff]
      %v3416 = vld [vmem:[%s3406 + $0x68] sm:$0xff]
      %v3417 = vld [vmem:[%s3406 + $0x78] sm:$0xff]
      %v3418 = vld [vmem:[%s3406 + $0x80] sm:$0xff]
      %v3419 = vld [vmem:[%s3406 + $0x90] sm:$0xff]
      %v3420 = vld [vmem:[%s3406 + $0x98] sm:$0xff]
      %v3421 = vld [vmem:[%s3406 + $0xa8] sm:$0xff]
      %v3422 = vld [vmem:[%s3406 + $0xb0] sm:$0xff]
      %v3423 = vld [vmem:[%s3406 + $0xc0] sm:$0xff]
      %v3424 = vld [vmem:[%s3406 + $0xc8] sm:$0xff]
      %v3425 = vld [vmem:[%s3406 + $0xd8] sm:$0xff]
      %v3426 = vld [vmem:[%s3406 + $0xe0] sm:$0xff]
      %v3427 = vld [vmem:[%s3406 + $0xf0] sm:$0xff]
      %v3428 = vld [vmem:[%s3406 + $0xf8] sm:$0xff]
      %v3429 = vld [vmem:[%s3406 + $0x108] sm:$0xff]
      %v3430 = vld [vmem:[%s3406 + $0x110] sm:$0xff]
      %v3431 = vld [vmem:[%s3406 + $0x120] sm:$0xff]
      %v3432 = vld [vmem:[%s3406 + $0x128] sm:$0xff]
      %v3433 = vld [vmem:[%s3406 + $0x138] sm:$0xff]
      %v3434 = vld [vmem:[%s3406 + $0x140] sm:$0xff]
      %v3435 = vld [vmem:[%s3406 + $0x150] sm:$0xff]
      %v3436 = vld [vmem:[%s3406 + $0x158] sm:$0xff]
      %v3437 = vld [vmem:[%s3406 + $0x168] sm:$0xff]
      %v3438 = vld [vmem:[%s3406 + $0x170] sm:$0xff]
      %3471 = vrot.lane.b32.xlu0 %v3407, 48
      %v3472 = vpop.permute.xlu0 %3471
      %3473 = vrot.lane.b32.xlu0 %v3408, 48
      %v3474 = vpop.permute.xlu0 %3473
      %3475 = vrot.lane.b32.xlu0 %v3409, 48
      %v3476 = vpop.permute.xlu0 %3475
      %3477 = vrot.lane.b32.xlu0 %v3410, 48
      %v3478 = vpop.permute.xlu0 %3477
      %3479 = vrot.lane.b32.xlu0 %v3411, 48
      %v3480 = vpop.permute.xlu0 %3479
      %3481 = vrot.lane.b32.xlu0 %v3412, 48
      %v3482 = vpop.permute.xlu0 %3481
      %3483 = vrot.lane.b32.xlu0 %v3413, 48
      %v3484 = vpop.permute.xlu0 %3483
      %3485 = vrot.lane.b32.xlu0 %v3414, 48
      %v3486 = vpop.permute.xlu0 %3485
      %3487 = vrot.lane.b32.xlu0 %v3415, 48
      %v3488 = vpop.permute.xlu0 %3487
      %3489 = vrot.lane.b32.xlu0 %v3416, 48
      %v3490 = vpop.permute.xlu0 %3489
      %3491 = vrot.lane.b32.xlu0 %v3417, 48
      %v3492 = vpop.permute.xlu0 %3491
      %3493 = vrot.lane.b32.xlu0 %v3418, 48
      %v3494 = vpop.permute.xlu0 %3493
      %3495 = vrot.lane.b32.xlu0 %v3419, 48
      %v3496 = vpop.permute.xlu0 %3495
      %3497 = vrot.lane.b32.xlu0 %v3420, 48
      %v3498 = vpop.permute.xlu0 %3497
      %3499 = vrot.lane.b32.xlu0 %v3421, 48
      %v3500 = vpop.permute.xlu0 %3499
      %3501 = vrot.lane.b32.xlu0 %v3422, 48
      %v3502 = vpop.permute.xlu0 %3501
      %3503 = vrot.lane.b32.xlu0 %v3423, 48
      %v3504 = vpop.permute.xlu0 %3503
      %3505 = vrot.lane.b32.xlu0 %v3424, 48
      %v3506 = vpop.permute.xlu0 %3505
      %3507 = vrot.lane.b32.xlu0 %v3425, 48
      %v3508 = vpop.permute.xlu0 %3507
      %3509 = vrot.lane.b32.xlu0 %v3426, 48
      %v3510 = vpop.permute.xlu0 %3509
      %3511 = vrot.lane.b32.xlu0 %v3427, 48
      %v3512 = vpop.permute.xlu0 %3511
      %3513 = vrot.lane.b32.xlu0 %v3428, 48
      %v3514 = vpop.permute.xlu0 %3513
      %3515 = vrot.lane.b32.xlu0 %v3429, 48
      %v3516 = vpop.permute.xlu0 %3515
      %3517 = vrot.lane.b32.xlu0 %v3430, 48
      %v3518 = vpop.permute.xlu0 %3517
      %3519 = vrot.lane.b32.xlu0 %v3431, 48
      %v3520 = vpop.permute.xlu0 %3519
      %3521 = vrot.lane.b32.xlu0 %v3432, 48
      %v3522 = vpop.permute.xlu0 %3521
      %3523 = vrot.lane.b32.xlu0 %v3433, 48
      %v3524 = vpop.permute.xlu0 %3523
      %3525 = vrot.lane.b32.xlu0 %v3434, 48
      %v3526 = vpop.permute.xlu0 %3525
      %3527 = vrot.lane.b32.xlu0 %v3435, 48
      %v3528 = vpop.permute.xlu0 %3527
      %3529 = vrot.lane.b32.xlu0 %v3436, 48
      %v3530 = vpop.permute.xlu0 %3529
      %3531 = vrot.lane.b32.xlu0 %v3437, 48
      %v3532 = vpop.permute.xlu0 %3531
      %3533 = vrot.lane.b32.xlu0 %v3438, 48
      %v3534 = vpop.permute.xlu0 %3533
      %vm3567 = vcmask 458112
      %3568 = vst.msk [vmem:[#allocation5] sm:$0xff] %vm3567, %v3472
      %3569 = vst.msk [vmem:[#allocation5 + $0x8] sm:$0xff] %vm3567, %v3474
      %3570 = vst.msk [vmem:[#allocation5 + $0x10] sm:$0xff] %vm3567, %v3476
      %3571 = vst.msk [vmem:[#allocation5 + $0x18] sm:$0xff] %vm3567, %v3478
      %3572 = vst.msk [vmem:[#allocation5 + $0x20] sm:$0xff] %vm3567, %v3480
      %3573 = vst.msk [vmem:[#allocation5 + $0x28] sm:$0xff] %vm3567, %v3482
      %3574 = vst.msk [vmem:[#allocation5 + $0x30] sm:$0xff] %vm3567, %v3484
      %3575 = vst.msk [vmem:[#allocation5 + $0x38] sm:$0xff] %vm3567, %v3486
      %3576 = vst.msk [vmem:[#allocation5 + $0x40] sm:$0xff] %vm3567, %v3488
      %3577 = vst.msk [vmem:[#allocation5 + $0x48] sm:$0xff] %vm3567, %v3490
      %3578 = vst.msk [vmem:[#allocation5 + $0x50] sm:$0xff] %vm3567, %v3492
      %3579 = vst.msk [vmem:[#allocation5 + $0x58] sm:$0xff] %vm3567, %v3494
      %3580 = vst.msk [vmem:[#allocation5 + $0x60] sm:$0xff] %vm3567, %v3496
      %3581 = vst.msk [vmem:[#allocation5 + $0x68] sm:$0xff] %vm3567, %v3498
      %3582 = vst.msk [vmem:[#allocation5 + $0x70] sm:$0xff] %vm3567, %v3500
      %3583 = vst.msk [vmem:[#allocation5 + $0x78] sm:$0xff] %vm3567, %v3502
      %3584 = vst.msk [vmem:[#allocation5 + $0x80] sm:$0xff] %vm3567, %v3504
      %3585 = vst.msk [vmem:[#allocation5 + $0x88] sm:$0xff] %vm3567, %v3506
      %3586 = vst.msk [vmem:[#allocation5 + $0x90] sm:$0xff] %vm3567, %v3508
      %3587 = vst.msk [vmem:[#allocation5 + $0x98] sm:$0xff] %vm3567, %v3510
      %3588 = vst.msk [vmem:[#allocation5 + $0xa0] sm:$0xff] %vm3567, %v3512
      %3589 = vst.msk [vmem:[#allocation5 + $0xa8] sm:$0xff] %vm3567, %v3514
      %3590 = vst.msk [vmem:[#allocation5 + $0xb0] sm:$0xff] %vm3567, %v3516
      %3591 = vst.msk [vmem:[#allocation5 + $0xb8] sm:$0xff] %vm3567, %v3518
      %3592 = vst.msk [vmem:[#allocation5 + $0xc0] sm:$0xff] %vm3567, %v3520
      %3593 = vst.msk [vmem:[#allocation5 + $0xc8] sm:$0xff] %vm3567, %v3522
      %3594 = vst.msk [vmem:[#allocation5 + $0xd0] sm:$0xff] %vm3567, %v3524
      %3595 = vst.msk [vmem:[#allocation5 + $0xd8] sm:$0xff] %vm3567, %v3526
      %3596 = vst.msk [vmem:[#allocation5 + $0xe0] sm:$0xff] %vm3567, %v3528
      %3597 = vst.msk [vmem:[#allocation5 + $0xe8] sm:$0xff] %vm3567, %v3530
      %3598 = vst.msk [vmem:[#allocation5 + $0xf0] sm:$0xff] %vm3567, %v3532
      %3599 = vst.msk [vmem:[#allocation5 + $0xf8] sm:$0xff] %vm3567, %v3534
      %v3600 = vld [vmem:[%s3406 + $0x1] sm:$0xff]
      %v3601 = vld [vmem:[%s3406 + $0x9] sm:$0xff]
      %v3602 = vld [vmem:[%s3406 + $0x19] sm:$0xff]
      %v3603 = vld [vmem:[%s3406 + $0x21] sm:$0xff]
      %v3604 = vld [vmem:[%s3406 + $0x31] sm:$0xff]
      %v3605 = vld [vmem:[%s3406 + $0x39] sm:$0xff]
      %v3606 = vld [vmem:[%s3406 + $0x49] sm:$0xff]
      %v3607 = vld [vmem:[%s3406 + $0x51] sm:$0xff]
      %v3608 = vld [vmem:[%s3406 + $0x61] sm:$0xff]
      %v3609 = vld [vmem:[%s3406 + $0x69] sm:$0xff]
      %v3610 = vld [vmem:[%s3406 + $0x79] sm:$0xff]
      %v3611 = vld [vmem:[%s3406 + $0x81] sm:$0xff]
      %v3612 = vld [vmem:[%s3406 + $0x91] sm:$0xff]
      %v3613 = vld [vmem:[%s3406 + $0x99] sm:$0xff]
      %v3614 = vld [vmem:[%s3406 + $0xa9] sm:$0xff]
      %v3615 = vld [vmem:[%s3406 + $0xb1] sm:$0xff]
      %v3616 = vld [vmem:[%s3406 + $0xc1] sm:$0xff]
      %v3617 = vld [vmem:[%s3406 + $0xc9] sm:$0xff]
      %v3618 = vld [vmem:[%s3406 + $0xd9] sm:$0xff]
      %v3619 = vld [vmem:[%s3406 + $0xe1] sm:$0xff]
      %v3620 = vld [vmem:[%s3406 + $0xf1] sm:$0xff]
      %v3621 = vld [vmem:[%s3406 + $0xf9] sm:$0xff]
      %v3622 = vld [vmem:[%s3406 + $0x109] sm:$0xff]
      %v3623 = vld [vmem:[%s3406 + $0x111] sm:$0xff]
      %v3624 = vld [vmem:[%s3406 + $0x121] sm:$0xff]
      %v3625 = vld [vmem:[%s3406 + $0x129] sm:$0xff]
      %v3626 = vld [vmem:[%s3406 + $0x139] sm:$0xff]
      %v3627 = vld [vmem:[%s3406 + $0x141] sm:$0xff]
      %v3628 = vld [vmem:[%s3406 + $0x151] sm:$0xff]
      %v3629 = vld [vmem:[%s3406 + $0x159] sm:$0xff]
      %v3630 = vld [vmem:[%s3406 + $0x169] sm:$0xff]
      %v3631 = vld [vmem:[%s3406 + $0x171] sm:$0xff]
      %3664 = vrot.lane.b32.xlu0 %v3600, 56
      %v3665 = vpop.permute.xlu0 %3664
      %3666 = vrot.lane.b32.xlu0 %v3601, 56
      %v3667 = vpop.permute.xlu0 %3666
      %3668 = vrot.lane.b32.xlu0 %v3602, 56
      %v3669 = vpop.permute.xlu0 %3668
      %3670 = vrot.lane.b32.xlu0 %v3603, 56
      %v3671 = vpop.permute.xlu0 %3670
      %3672 = vrot.lane.b32.xlu0 %v3604, 56
      %v3673 = vpop.permute.xlu0 %3672
      %3674 = vrot.lane.b32.xlu0 %v3605, 56
      %v3675 = vpop.permute.xlu0 %3674
      %3676 = vrot.lane.b32.xlu0 %v3606, 56
      %v3677 = vpop.permute.xlu0 %3676
      %3678 = vrot.lane.b32.xlu0 %v3607, 56
      %v3679 = vpop.permute.xlu0 %3678
      %3680 = vrot.lane.b32.xlu0 %v3608, 56
      %v3681 = vpop.permute.xlu0 %3680
      %3682 = vrot.lane.b32.xlu0 %v3609, 56
      %v3683 = vpop.permute.xlu0 %3682
      %3684 = vrot.lane.b32.xlu0 %v3610, 56
      %v3685 = vpop.permute.xlu0 %3684
      %3686 = vrot.lane.b32.xlu0 %v3611, 56
      %v3687 = vpop.permute.xlu0 %3686
      %3688 = vrot.lane.b32.xlu0 %v3612, 56
      %v3689 = vpop.permute.xlu0 %3688
      %3690 = vrot.lane.b32.xlu0 %v3613, 56
      %v3691 = vpop.permute.xlu0 %3690
      %3692 = vrot.lane.b32.xlu0 %v3614, 56
      %v3693 = vpop.permute.xlu0 %3692
      %3694 = vrot.lane.b32.xlu0 %v3615, 56
      %v3695 = vpop.permute.xlu0 %3694
      %3696 = vrot.lane.b32.xlu0 %v3616, 56
      %v3697 = vpop.permute.xlu0 %3696
      %3698 = vrot.lane.b32.xlu0 %v3617, 56
      %v3699 = vpop.permute.xlu0 %3698
      %3700 = vrot.lane.b32.xlu0 %v3618, 56
      %v3701 = vpop.permute.xlu0 %3700
      %3702 = vrot.lane.b32.xlu0 %v3619, 56
      %v3703 = vpop.permute.xlu0 %3702
      %3704 = vrot.lane.b32.xlu0 %v3620, 56
      %v3705 = vpop.permute.xlu0 %3704
      %3706 = vrot.lane.b32.xlu0 %v3621, 56
      %v3707 = vpop.permute.xlu0 %3706
      %3708 = vrot.lane.b32.xlu0 %v3622, 56
      %v3709 = vpop.permute.xlu0 %3708
      %3710 = vrot.lane.b32.xlu0 %v3623, 56
      %v3711 = vpop.permute.xlu0 %3710
      %3712 = vrot.lane.b32.xlu0 %v3624, 56
      %v3713 = vpop.permute.xlu0 %3712
      %3714 = vrot.lane.b32.xlu0 %v3625, 56
      %v3715 = vpop.permute.xlu0 %3714
      %3716 = vrot.lane.b32.xlu0 %v3626, 56
      %v3717 = vpop.permute.xlu0 %3716
      %3718 = vrot.lane.b32.xlu0 %v3627, 56
      %v3719 = vpop.permute.xlu0 %3718
      %3720 = vrot.lane.b32.xlu0 %v3628, 56
      %v3721 = vpop.permute.xlu0 %3720
      %3722 = vrot.lane.b32.xlu0 %v3629, 56
      %v3723 = vpop.permute.xlu0 %3722
      %3724 = vrot.lane.b32.xlu0 %v3630, 56
      %v3725 = vpop.permute.xlu0 %3724
      %3726 = vrot.lane.b32.xlu0 %v3631, 56
      %v3727 = vpop.permute.xlu0 %3726
      %vm3760 = vcmask 523712
      %3761 = vst.msk [vmem:[#allocation5] sm:$0xff] %vm3760, %v3665
      %3762 = vst.msk [vmem:[#allocation5 + $0x8] sm:$0xff] %vm3760, %v3667
      %3763 = vst.msk [vmem:[#allocation5 + $0x10] sm:$0xff] %vm3760, %v3669
      %3764 = vst.msk [vmem:[#allocation5 + $0x18] sm:$0xff] %vm3760, %v3671
      %3765 = vst.msk [vmem:[#allocation5 + $0x20] sm:$0xff] %vm3760, %v3673
      %3766 = vst.msk [vmem:[#allocation5 + $0x28] sm:$0xff] %vm3760, %v3675
      %3767 = vst.msk [vmem:[#allocation5 + $0x30] sm:$0xff] %vm3760, %v3677
      %3768 = vst.msk [vmem:[#allocation5 + $0x38] sm:$0xff] %vm3760, %v3679
      %3769 = vst.msk [vmem:[#allocation5 + $0x40] sm:$0xff] %vm3760, %v3681
      %3770 = vst.msk [vmem:[#allocation5 + $0x48] sm:$0xff] %vm3760, %v3683
      %3771 = vst.msk [vmem:[#allocation5 + $0x50] sm:$0xff] %vm3760, %v3685
      %3772 = vst.msk [vmem:[#allocation5 + $0x58] sm:$0xff] %vm3760, %v3687
      %3773 = vst.msk [vmem:[#allocation5 + $0x60] sm:$0xff] %vm3760, %v3689
      %3774 = vst.msk [vmem:[#allocation5 + $0x68] sm:$0xff] %vm3760, %v3691
      %3775 = vst.msk [vmem:[#allocation5 + $0x70] sm:$0xff] %vm3760, %v3693
      %3776 = vst.msk [vmem:[#allocation5 + $0x78] sm:$0xff] %vm3760, %v3695
      %3777 = vst.msk [vmem:[#allocation5 + $0x80] sm:$0xff] %vm3760, %v3697
      %3778 = vst.msk [vmem:[#allocation5 + $0x88] sm:$0xff] %vm3760, %v3699
      %3779 = vst.msk [vmem:[#allocation5 + $0x90] sm:$0xff] %vm3760, %v3701
      %3780 = vst.msk [vmem:[#allocation5 + $0x98] sm:$0xff] %vm3760, %v3703
      %3781 = vst.msk [vmem:[#allocation5 + $0xa0] sm:$0xff] %vm3760, %v3705
      %3782 = vst.msk [vmem:[#allocation5 + $0xa8] sm:$0xff] %vm3760, %v3707
      %3783 = vst.msk [vmem:[#allocation5 + $0xb0] sm:$0xff] %vm3760, %v3709
      %3784 = vst.msk [vmem:[#allocation5 + $0xb8] sm:$0xff] %vm3760, %v3711
      %3785 = vst.msk [vmem:[#allocation5 + $0xc0] sm:$0xff] %vm3760, %v3713
      %3786 = vst.msk [vmem:[#allocation5 + $0xc8] sm:$0xff] %vm3760, %v3715
      %3787 = vst.msk [vmem:[#allocation5 + $0xd0] sm:$0xff] %vm3760, %v3717
      %3788 = vst.msk [vmem:[#allocation5 + $0xd8] sm:$0xff] %vm3760, %v3719
      %3789 = vst.msk [vmem:[#allocation5 + $0xe0] sm:$0xff] %vm3760, %v3721
      %3790 = vst.msk [vmem:[#allocation5 + $0xe8] sm:$0xff] %vm3760, %v3723
      %3791 = vst.msk [vmem:[#allocation5 + $0xf0] sm:$0xff] %vm3760, %v3725
      %3792 = vst.msk [vmem:[#allocation5 + $0xf8] sm:$0xff] %vm3760, %v3727
      %v3793 = vld [vmem:[%s3406 + $0x2] sm:$0xff]
      %v3794 = vld [vmem:[%s3406 + $0xa] sm:$0xff]
      %v3795 = vld [vmem:[%s3406 + $0x1a] sm:$0xff]
      %v3796 = vld [vmem:[%s3406 + $0x22] sm:$0xff]
      %v3797 = vld [vmem:[%s3406 + $0x32] sm:$0xff]
      %v3798 = vld [vmem:[%s3406 + $0x3a] sm:$0xff]
      %v3799 = vld [vmem:[%s3406 + $0x4a] sm:$0xff]
      %v3800 = vld [vmem:[%s3406 + $0x52] sm:$0xff]
      %v3801 = vld [vmem:[%s3406 + $0x62] sm:$0xff]
      %v3802 = vld [vmem:[%s3406 + $0x6a] sm:$0xff]
      %v3803 = vld [vmem:[%s3406 + $0x7a] sm:$0xff]
      %v3804 = vld [vmem:[%s3406 + $0x82] sm:$0xff]
      %v3805 = vld [vmem:[%s3406 + $0x92] sm:$0xff]
      %v3806 = vld [vmem:[%s3406 + $0x9a] sm:$0xff]
      %v3807 = vld [vmem:[%s3406 + $0xaa] sm:$0xff]
      %v3808 = vld [vmem:[%s3406 + $0xb2] sm:$0xff]
      %v3809 = vld [vmem:[%s3406 + $0xc2] sm:$0xff]
      %v3810 = vld [vmem:[%s3406 + $0xca] sm:$0xff]
      %v3811 = vld [vmem:[%s3406 + $0xda] sm:$0xff]
      %v3812 = vld [vmem:[%s3406 + $0xe2] sm:$0xff]
      %v3813 = vld [vmem:[%s3406 + $0xf2] sm:$0xff]
      %v3814 = vld [vmem:[%s3406 + $0xfa] sm:$0xff]
      %v3815 = vld [vmem:[%s3406 + $0x10a] sm:$0xff]
      %v3816 = vld [vmem:[%s3406 + $0x112] sm:$0xff]
      %v3817 = vld [vmem:[%s3406 + $0x122] sm:$0xff]
      %v3818 = vld [vmem:[%s3406 + $0x12a] sm:$0xff]
      %v3819 = vld [vmem:[%s3406 + $0x13a] sm:$0xff]
      %v3820 = vld [vmem:[%s3406 + $0x142] sm:$0xff]
      %v3821 = vld [vmem:[%s3406 + $0x152] sm:$0xff]
      %v3822 = vld [vmem:[%s3406 + $0x15a] sm:$0xff]
      %v3823 = vld [vmem:[%s3406 + $0x16a] sm:$0xff]
      %v3824 = vld [vmem:[%s3406 + $0x172] sm:$0xff]
      %3857 = vrot.lane.b32.xlu0 %v3793, 64
      %v3858 = vpop.permute.xlu0 %3857
      %3859 = vrot.lane.b32.xlu0 %v3794, 64
      %v3860 = vpop.permute.xlu0 %3859
      %3861 = vrot.lane.b32.xlu0 %v3795, 64
      %v3862 = vpop.permute.xlu0 %3861
      %3863 = vrot.lane.b32.xlu0 %v3796, 64
      %v3864 = vpop.permute.xlu0 %3863
      %3865 = vrot.lane.b32.xlu0 %v3797, 64
      %v3866 = vpop.permute.xlu0 %3865
      %3867 = vrot.lane.b32.xlu0 %v3798, 64
      %v3868 = vpop.permute.xlu0 %3867
      %3869 = vrot.lane.b32.xlu0 %v3799, 64
      %v3870 = vpop.permute.xlu0 %3869
      %3871 = vrot.lane.b32.xlu0 %v3800, 64
      %v3872 = vpop.permute.xlu0 %3871
      %3873 = vrot.lane.b32.xlu0 %v3801, 64
      %v3874 = vpop.permute.xlu0 %3873
      %3875 = vrot.lane.b32.xlu0 %v3802, 64
      %v3876 = vpop.permute.xlu0 %3875
      %3877 = vrot.lane.b32.xlu0 %v3803, 64
      %v3878 = vpop.permute.xlu0 %3877
      %3879 = vrot.lane.b32.xlu0 %v3804, 64
      %v3880 = vpop.permute.xlu0 %3879
      %3881 = vrot.lane.b32.xlu0 %v3805, 64
      %v3882 = vpop.permute.xlu0 %3881
      %3883 = vrot.lane.b32.xlu0 %v3806, 64
      %v3884 = vpop.permute.xlu0 %3883
      %3885 = vrot.lane.b32.xlu0 %v3807, 64
      %v3886 = vpop.permute.xlu0 %3885
      %3887 = vrot.lane.b32.xlu0 %v3808, 64
      %v3888 = vpop.permute.xlu0 %3887
      %3889 = vrot.lane.b32.xlu0 %v3809, 64
      %v3890 = vpop.permute.xlu0 %3889
      %3891 = vrot.lane.b32.xlu0 %v3810, 64
      %v3892 = vpop.permute.xlu0 %3891
      %3893 = vrot.lane.b32.xlu0 %v3811, 64
      %v3894 = vpop.permute.xlu0 %3893
      %3895 = vrot.lane.b32.xlu0 %v3812, 64
      %v3896 = vpop.permute.xlu0 %3895
      %3897 = vrot.lane.b32.xlu0 %v3813, 64
      %v3898 = vpop.permute.xlu0 %3897
      %3899 = vrot.lane.b32.xlu0 %v3814, 64
      %v3900 = vpop.permute.xlu0 %3899
      %3901 = vrot.lane.b32.xlu0 %v3815, 64
      %v3902 = vpop.permute.xlu0 %3901
      %3903 = vrot.lane.b32.xlu0 %v3816, 64
      %v3904 = vpop.permute.xlu0 %3903
      %3905 = vrot.lane.b32.xlu0 %v3817, 64
      %v3906 = vpop.permute.xlu0 %3905
      %3907 = vrot.lane.b32.xlu0 %v3818, 64
      %v3908 = vpop.permute.xlu0 %3907
      %3909 = vrot.lane.b32.xlu0 %v3819, 64
      %v3910 = vpop.permute.xlu0 %3909
      %3911 = vrot.lane.b32.xlu0 %v3820, 64
      %v3912 = vpop.permute.xlu0 %3911
      %3913 = vrot.lane.b32.xlu0 %v3821, 64
      %v3914 = vpop.permute.xlu0 %3913
      %3915 = vrot.lane.b32.xlu0 %v3822, 64
      %v3916 = vpop.permute.xlu0 %3915
      %3917 = vrot.lane.b32.xlu0 %v3823, 64
      %v3918 = vpop.permute.xlu0 %3917
      %3919 = vrot.lane.b32.xlu0 %v3824, 64
      %v3920 = vpop.permute.xlu0 %3919
      %vm3953 = vcmask 589312
      %3954 = vst.msk [vmem:[#allocation5] sm:$0xff] %vm3953, %v3858
      %3955 = vst.msk [vmem:[#allocation5 + $0x8] sm:$0xff] %vm3953, %v3860
      %3956 = vst.msk [vmem:[#allocation5 + $0x10] sm:$0xff] %vm3953, %v3862
      %3957 = vst.msk [vmem:[#allocation5 + $0x18] sm:$0xff] %vm3953, %v3864
      %3958 = vst.msk [vmem:[#allocation5 + $0x20] sm:$0xff] %vm3953, %v3866
      %3959 = vst.msk [vmem:[#allocation5 + $0x28] sm:$0xff] %vm3953, %v3868
      %3960 = vst.msk [vmem:[#allocation5 + $0x30] sm:$0xff] %vm3953, %v3870
      %3961 = vst.msk [vmem:[#allocation5 + $0x38] sm:$0xff] %vm3953, %v3872
      %3962 = vst.msk [vmem:[#allocation5 + $0x40] sm:$0xff] %vm3953, %v3874
      %3963 = vst.msk [vmem:[#allocation5 + $0x48] sm:$0xff] %vm3953, %v3876
      %3964 = vst.msk [vmem:[#allocation5 + $0x50] sm:$0xff] %vm3953, %v3878
      %3965 = vst.msk [vmem:[#allocation5 + $0x58] sm:$0xff] %vm3953, %v3880
      %3966 = vst.msk [vmem:[#allocation5 + $0x60] sm:$0xff] %vm3953, %v3882
      %3967 = vst.msk [vmem:[#allocation5 + $0x68] sm:$0xff] %vm3953, %v3884
      %3968 = vst.msk [vmem:[#allocation5 + $0x70] sm:$0xff] %vm3953, %v3886
      %3969 = vst.msk [vmem:[#allocation5 + $0x78] sm:$0xff] %vm3953, %v3888
      %3970 = vst.msk [vmem:[#allocation5 + $0x80] sm:$0xff] %vm3953, %v3890
      %3971 = vst.msk [vmem:[#allocation5 + $0x88] sm:$0xff] %vm3953, %v3892
      %3972 = vst.msk [vmem:[#allocation5 + $0x90] sm:$0xff] %vm3953, %v3894
      %3973 = vst.msk [vmem:[#allocation5 + $0x98] sm:$0xff] %vm3953, %v3896
      %3974 = vst.msk [vmem:[#allocation5 + $0xa0] sm:$0xff] %vm3953, %v3898
      %3975 = vst.msk [vmem:[#allocation5 + $0xa8] sm:$0xff] %vm3953, %v3900
      %3976 = vst.msk [vmem:[#allocation5 + $0xb0] sm:$0xff] %vm3953, %v3902
      %3977 = vst.msk [vmem:[#allocation5 + $0xb8] sm:$0xff] %vm3953, %v3904
      %3978 = vst.msk [vmem:[#allocation5 + $0xc0] sm:$0xff] %vm3953, %v3906
      %3979 = vst.msk [vmem:[#allocation5 + $0xc8] sm:$0xff] %vm3953, %v3908
      %3980 = vst.msk [vmem:[#allocation5 + $0xd0] sm:$0xff] %vm3953, %v3910
      %3981 = vst.msk [vmem:[#allocation5 + $0xd8] sm:$0xff] %vm3953, %v3912
      %3982 = vst.msk [vmem:[#allocation5 + $0xe0] sm:$0xff] %vm3953, %v3914
      %3983 = vst.msk [vmem:[#allocation5 + $0xe8] sm:$0xff] %vm3953, %v3916
      %3984 = vst.msk [vmem:[#allocation5 + $0xf0] sm:$0xff] %vm3953, %v3918
      %3985 = vst.msk [vmem:[#allocation5 + $0xf8] sm:$0xff] %vm3953, %v3920
      %v3986 = vld [vmem:[#allocation5] sm:$0xff]
      %v3987 = vld [vmem:[#allocation5 + $0x8] sm:$0xff]
      %v3988 = vld [vmem:[#allocation5 + $0x10] sm:$0xff]
      %v3989 = vld [vmem:[#allocation5 + $0x18] sm:$0xff]
      %v3990 = vld [vmem:[#allocation5 + $0x20] sm:$0xff]
      %v3991 = vld [vmem:[#allocation5 + $0x28] sm:$0xff]
      %v3992 = vld [vmem:[#allocation5 + $0x30] sm:$0xff]
      %v3993 = vld [vmem:[#allocation5 + $0x38] sm:$0xff]
      %v3994 = vld [vmem:[#allocation5 + $0x40] sm:$0xff]
      %v3995 = vld [vmem:[#allocation5 + $0x48] sm:$0xff]
      %v3996 = vld [vmem:[#allocation5 + $0x50] sm:$0xff]
      %v3997 = vld [vmem:[#allocation5 + $0x58] sm:$0xff]
      %v3998 = vld [vmem:[#allocation5 + $0x60] sm:$0xff]
      %v3999 = vld [vmem:[#allocation5 + $0x68] sm:$0xff]
      %v4000 = vld [vmem:[#allocation5 + $0x70] sm:$0xff]
      %v4001 = vld [vmem:[#allocation5 + $0x78] sm:$0xff]
      %v4002 = vld [vmem:[#allocation5 + $0x80] sm:$0xff]
      %v4003 = vld [vmem:[#allocation5 + $0x88] sm:$0xff]
      %v4004 = vld [vmem:[#allocation5 + $0x90] sm:$0xff]
      %v4005 = vld [vmem:[#allocation5 + $0x98] sm:$0xff]
      %v4006 = vld [vmem:[#allocation5 + $0xa0] sm:$0xff]
      %v4007 = vld [vmem:[#allocation5 + $0xa8] sm:$0xff]
      %v4008 = vld [vmem:[#allocation5 + $0xb0] sm:$0xff]
      %v4009 = vld [vmem:[#allocation5 + $0xb8] sm:$0xff]
      %v4010 = vld [vmem:[#allocation5 + $0xc0] sm:$0xff]
      %v4011 = vld [vmem:[#allocation5 + $0xc8] sm:$0xff]
      %v4012 = vld [vmem:[#allocation5 + $0xd0] sm:$0xff]
      %v4013 = vld [vmem:[#allocation5 + $0xd8] sm:$0xff]
      %v4014 = vld [vmem:[#allocation5 + $0xe0] sm:$0xff]
      %v4015 = vld [vmem:[#allocation5 + $0xe8] sm:$0xff]
      %v4016 = vld [vmem:[#allocation5 + $0xf0] sm:$0xff]
      %v4017 = vld [vmem:[#allocation5 + $0xf8] sm:$0xff]
      %v4018 = vld [vmem:[%s2] sm:$0xff]
      %v4019 = vld [vmem:[%s2 + $0x8] sm:$0xff]
      %v4020 = vld [vmem:[%s2 + $0x10] sm:$0xff]
      %v4021 = vld [vmem:[%s2 + $0x18] sm:$0xff]
      %v4022 = vld [vmem:[%s2 + $0x20] sm:$0xff]
      %v4023 = vld [vmem:[%s2 + $0x28] sm:$0xff]
      %v4024 = vld [vmem:[%s2 + $0x30] sm:$0xff]
      %v4025 = vld [vmem:[%s2 + $0x38] sm:$0xff]
      %v4026 = vld [vmem:[%s2 + $0x40] sm:$0xff]
      %vm4027 = vcmask 588800
      %v4029 = vsel %vm4027, %v3986, 0
      %v4032 = vsel %vm4027, %v3987, 0
      %v4035 = vsel %vm4027, %v3988, 0
      %v4038 = vsel %vm4027, %v3989, 0
      %v4041 = vsel %vm4027, %v3990, 0
      %v4044 = vsel %vm4027, %v3991, 0
      %v4047 = vsel %vm4027, %v3992, 0
      %v4050 = vsel %vm4027, %v3993, 0
      %v4053 = vsel %vm4027, %v3994, 0
      %v4056 = vsel %vm4027, %v3995, 0
      %v4059 = vsel %vm4027, %v3996, 0
      %v4062 = vsel %vm4027, %v3997, 0
      %v4065 = vsel %vm4027, %v3998, 0
      %v4068 = vsel %vm4027, %v3999, 0
      %v4071 = vsel %vm4027, %v4000, 0
      %v4074 = vsel %vm4027, %v4001, 0
      %v4077 = vsel %vm4027, %v4002, 0
      %v4080 = vsel %vm4027, %v4003, 0
      %v4083 = vsel %vm4027, %v4004, 0
      %v4086 = vsel %vm4027, %v4005, 0
      %v4089 = vsel %vm4027, %v4006, 0
      %v4092 = vsel %vm4027, %v4007, 0
      %v4095 = vsel %vm4027, %v4008, 0
      %v4098 = vsel %vm4027, %v4009, 0
      %v4101 = vsel %vm4027, %v4010, 0
      %v4104 = vsel %vm4027, %v4011, 0
      %v4107 = vsel %vm4027, %v4012, 0
      %v4110 = vsel %vm4027, %v4013, 0
      %v4113 = vsel %vm4027, %v4014, 0
      %v4116 = vsel %vm4027, %v4015, 0
      %v4119 = vsel %vm4027, %v4016, 0
      %v4122 = vsel %vm4027, %v4017, 0
      %4124 = vmatpush.msra.mxu0 0.0
      %4125 = vmatpush.msra.mxu0 0.0
      %4126 = vmatpush.msra.mxu0 0.0
      %4127 = vmatpush.msra.mxu0 0.0
      %4128 = vmatpush.msra.mxu0 0.0
      %4129 = vmatpush.msra.mxu0 0.0
      %4130 = vmatpush.msra.mxu0 0.0
      %4131 = vmatpush.msra.mxu0 %v4026
      %4132 = vmatpush.msra.mxu0 %v4025
      %4133 = vmatpush.msra.mxu0 %v4024
      %4134 = vmatpush.msra.mxu0 %v4023
      %4135 = vmatpush.msra.mxu0 %v4022
      %4136 = vmatpush.msra.mxu0 %v4021
      %4137 = vmatpush.msra.mxu0 %v4020
      %4138 = vmatpush.msra.mxu0 %v4019
      %4139 = vmatpush.msra.mxu0 %v4018
      %4140 = vmatmul.f32.gmra.mxu0 %v4029
      %v4141 = vpop.f32.mrf.mxu0
      %v4142 = vadd.f32 0.0, %v4141
      %4143 = vmatmul.f32.gmra.mxu0 %v4032
      %v4144 = vpop.f32.mrf.mxu0
      %v4145 = vadd.f32 0.0, %v4144
      %4146 = vmatmul.f32.gmra.mxu0 %v4035
      %v4147 = vpop.f32.mrf.mxu0
      %v4148 = vadd.f32 0.0, %v4147
      %4149 = vmatmul.f32.gmra.mxu0 %v4038
      %v4150 = vpop.f32.mrf.mxu0
      %v4151 = vadd.f32 0.0, %v4150
      %4152 = vmatmul.f32.gmra.mxu0 %v4041
      %v4153 = vpop.f32.mrf.mxu0
      %v4154 = vadd.f32 0.0, %v4153
      %4155 = vmatmul.f32.gmra.mxu0 %v4044
      %v4156 = vpop.f32.mrf.mxu0
      %v4157 = vadd.f32 0.0, %v4156
      %4158 = vmatmul.f32.gmra.mxu0 %v4047
      %v4159 = vpop.f32.mrf.mxu0
      %v4160 = vadd.f32 0.0, %v4159
      %4161 = vmatmul.f32.gmra.mxu0 %v4050
      %v4162 = vpop.f32.mrf.mxu0
      %v4163 = vadd.f32 0.0, %v4162
      %4164 = vmatmul.f32.gmra.mxu0 %v4053
      %v4165 = vpop.f32.mrf.mxu0
      %v4166 = vadd.f32 0.0, %v4165
      %4167 = vmatmul.f32.gmra.mxu0 %v4056
      %v4168 = vpop.f32.mrf.mxu0
      %v4169 = vadd.f32 0.0, %v4168
      %4170 = vmatmul.f32.gmra.mxu0 %v4059
      %v4171 = vpop.f32.mrf.mxu0
      %v4172 = vadd.f32 0.0, %v4171
      %4173 = vmatmul.f32.gmra.mxu0 %v4062
      %v4174 = vpop.f32.mrf.mxu0
      %v4175 = vadd.f32 0.0, %v4174
      %4176 = vmatmul.f32.gmra.mxu0 %v4065
      %v4177 = vpop.f32.mrf.mxu0
      %v4178 = vadd.f32 0.0, %v4177
      %4179 = vmatmul.f32.gmra.mxu0 %v4068
      %v4180 = vpop.f32.mrf.mxu0
      %v4181 = vadd.f32 0.0, %v4180
      %4182 = vmatmul.f32.gmra.mxu0 %v4071
      %v4183 = vpop.f32.mrf.mxu0
      %v4184 = vadd.f32 0.0, %v4183
      %4185 = vmatmul.f32.gmra.mxu0 %v4074
      %v4186 = vpop.f32.mrf.mxu0
      %v4187 = vadd.f32 0.0, %v4186
      %4188 = vmatmul.f32.gmra.mxu0 %v4077
      %v4189 = vpop.f32.mrf.mxu0
      %v4190 = vadd.f32 0.0, %v4189
      %4191 = vmatmul.f32.gmra.mxu0 %v4080
      %v4192 = vpop.f32.mrf.mxu0
      %v4193 = vadd.f32 0.0, %v4192
      %4194 = vmatmul.f32.gmra.mxu0 %v4083
      %v4195 = vpop.f32.mrf.mxu0
      %v4196 = vadd.f32 0.0, %v4195
      %4197 = vmatmul.f32.gmra.mxu0 %v4086
      %v4198 = vpop.f32.mrf.mxu0
      %v4199 = vadd.f32 0.0, %v4198
      %4200 = vmatmul.f32.gmra.mxu0 %v4089
      %v4201 = vpop.f32.mrf.mxu0
      %v4202 = vadd.f32 0.0, %v4201
      %4203 = vmatmul.f32.gmra.mxu0 %v4092
      %v4204 = vpop.f32.mrf.mxu0
      %v4205 = vadd.f32 0.0, %v4204
      %4206 = vmatmul.f32.gmra.mxu0 %v4095
      %v4207 = vpop.f32.mrf.mxu0
      %v4208 = vadd.f32 0.0, %v4207
      %4209 = vmatmul.f32.gmra.mxu0 %v4098
      %v4210 = vpop.f32.mrf.mxu0
      %v4211 = vadd.f32 0.0, %v4210
      %4212 = vmatmul.f32.gmra.mxu0 %v4101
      %v4213 = vpop.f32.mrf.mxu0
      %v4214 = vadd.f32 0.0, %v4213
      %4215 = vmatmul.f32.gmra.mxu0 %v4104
      %v4216 = vpop.f32.mrf.mxu0
      %v4217 = vadd.f32 0.0, %v4216
      %4218 = vmatmul.f32.gmra.mxu0 %v4107
      %v4219 = vpop.f32.mrf.mxu0
      %v4220 = vadd.f32 0.0, %v4219
      %4221 = vmatmul.f32.gmra.mxu0 %v4110
      %v4222 = vpop.f32.mrf.mxu0
      %v4223 = vadd.f32 0.0, %v4222
      %4224 = vmatmul.f32.gmra.mxu0 %v4113
      %v4225 = vpop.f32.mrf.mxu0
      %v4226 = vadd.f32 0.0, %v4225
      %4227 = vmatmul.f32.gmra.mxu0 %v4116
      %v4228 = vpop.f32.mrf.mxu0
      %v4229 = vadd.f32 0.0, %v4228
      %4230 = vmatmul.f32.gmra.mxu0 %v4119
      %v4231 = vpop.f32.mrf.mxu0
      %v4232 = vadd.f32 0.0, %v4231
      %4233 = vmatmul.f32.gmra.mxu0 %v4122
      %v4234 = vpop.f32.mrf.mxu0
      %v4235 = vadd.f32 0.0, %v4234
      %4236 = vdwg.mxu0
      %v4237 = vmax.f32 %v4142, 0.0
      %v4238 = vmax.f32 %v4145, 0.0
      %v4239 = vmax.f32 %v4148, 0.0
      %v4240 = vmax.f32 %v4151, 0.0
      %v4241 = vmax.f32 %v4154, 0.0
      %v4242 = vmax.f32 %v4157, 0.0
      %v4243 = vmax.f32 %v4160, 0.0
      %v4244 = vmax.f32 %v4163, 0.0
      %v4245 = vmax.f32 %v4166, 0.0
      %v4246 = vmax.f32 %v4169, 0.0
      %v4247 = vmax.f32 %v4172, 0.0
      %v4248 = vmax.f32 %v4175, 0.0
      %v4249 = vmax.f32 %v4178, 0.0
      %v4250 = vmax.f32 %v4181, 0.0
      %v4251 = vmax.f32 %v4184, 0.0
      %v4252 = vmax.f32 %v4187, 0.0
      %v4253 = vmax.f32 %v4190, 0.0
      %v4254 = vmax.f32 %v4193, 0.0
      %v4255 = vmax.f32 %v4196, 0.0
      %v4256 = vmax.f32 %v4199, 0.0
      %v4257 = vmax.f32 %v4202, 0.0
      %v4258 = vmax.f32 %v4205, 0.0
      %v4259 = vmax.f32 %v4208, 0.0
      %v4260 = vmax.f32 %v4211, 0.0
      %v4261 = vmax.f32 %v4214, 0.0
      %v4262 = vmax.f32 %v4217, 0.0
      %v4263 = vmax.f32 %v4220, 0.0
      %v4264 = vmax.f32 %v4223, 0.0
      %v4265 = vmax.f32 %v4226, 0.0
      %v4266 = vmax.f32 %v4229, 0.0
      %v4267 = vmax.f32 %v4232, 0.0
      %v4268 = vmax.f32 %v4235, 0.0
      %v4269 = vmin.f32 %v4237, 448.0
      %v4270 = vmin.f32 %v4238, 448.0
      %v4271 = vmin.f32 %v4239, 448.0
      %v4272 = vmin.f32 %v4240, 448.0
      %v4273 = vmin.f32 %v4241, 448.0
      %v4274 = vmin.f32 %v4242, 448.0
      %v4275 = vmin.f32 %v4243, 448.0
      %v4276 = vmin.f32 %v4244, 448.0
      %v4277 = vmin.f32 %v4245, 448.0
      %v4278 = vmin.f32 %v4246, 448.0
      %v4279 = vmin.f32 %v4247, 448.0
      %v4280 = vmin.f32 %v4248, 448.0
      %v4281 = vmin.f32 %v4249, 448.0
      %v4282 = vmin.f32 %v4250, 448.0
      %v4283 = vmin.f32 %v4251, 448.0
      %v4284 = vmin.f32 %v4252, 448.0
      %v4285 = vmin.f32 %v4253, 448.0
      %v4286 = vmin.f32 %v4254, 448.0
      %v4287 = vmin.f32 %v4255, 448.0
      %v4288 = vmin.f32 %v4256, 448.0
      %v4289 = vmin.f32 %v4257, 448.0
      %v4290 = vmin.f32 %v4258, 448.0
      %v4291 = vmin.f32 %v4259, 448.0
      %v4292 = vmin.f32 %v4260, 448.0
      %v4293 = vmin.f32 %v4261, 448.0
      %v4294 = vmin.f32 %v4262, 448.0
      %v4295 = vmin.f32 %v4263, 448.0
      %v4296 = vmin.f32 %v4264, 448.0
      %v4297 = vmin.f32 %v4265, 448.0
      %v4298 = vmin.f32 %v4266, 448.0
      %v4299 = vmin.f32 %v4267, 448.0
      %v4300 = vmin.f32 %v4268, 448.0
      %4301 = vst.msk [vmem:[%s210] sm:$0xff] %vm2256, %v4269
      %4302 = vst.msk [vmem:[%s210 + $0x8] sm:$0xff] %vm2256, %v4270
      %4303 = vst.msk [vmem:[%s210 + $0x10] sm:$0xff] %vm2256, %v4271
      %4304 = vst.msk [vmem:[%s210 + $0x18] sm:$0xff] %vm2256, %v4272
      %4305 = vst.msk [vmem:[%s210 + $0x20] sm:$0xff] %vm2256, %v4273
      %4306 = vst.msk [vmem:[%s210 + $0x28] sm:$0xff] %vm2256, %v4274
      %4307 = vst.msk [vmem:[%s210 + $0x30] sm:$0xff] %vm2256, %v4275
      %4308 = vst.msk [vmem:[%s210 + $0x38] sm:$0xff] %vm2256, %v4276
      %4309 = vst.msk [vmem:[%s210 + $0x40] sm:$0xff] %vm2256, %v4277
      %4310 = vst.msk [vmem:[%s210 + $0x48] sm:$0xff] %vm2256, %v4278
      %4311 = vst.msk [vmem:[%s210 + $0x50] sm:$0xff] %vm2256, %v4279
      %4312 = vst.msk [vmem:[%s210 + $0x58] sm:$0xff] %vm2256, %v4280
      %4313 = vst.msk [vmem:[%s210 + $0x60] sm:$0xff] %vm2256, %v4281
      %4314 = vst.msk [vmem:[%s210 + $0x68] sm:$0xff] %vm2256, %v4282
      %4315 = vst.msk [vmem:[%s210 + $0x70] sm:$0xff] %vm2256, %v4283
      %4316 = vst.msk [vmem:[%s210 + $0x78] sm:$0xff] %vm2256, %v4284
      %4317 = vst.msk [vmem:[%s210 + $0x80] sm:$0xff] %vm2256, %v4285
      %4318 = vst.msk [vmem:[%s210 + $0x88] sm:$0xff] %vm2256, %v4286
      %4319 = vst.msk [vmem:[%s210 + $0x90] sm:$0xff] %vm2256, %v4287
      %4320 = vst.msk [vmem:[%s210 + $0x98] sm:$0xff] %vm2256, %v4288
      %4321 = vst.msk [vmem:[%s210 + $0xa0] sm:$0xff] %vm2256, %v4289
      %4322 = vst.msk [vmem:[%s210 + $0xa8] sm:$0xff] %vm2256, %v4290
      %4323 = vst.msk [vmem:[%s210 + $0xb0] sm:$0xff] %vm2256, %v4291
      %4324 = vst.msk [vmem:[%s210 + $0xb8] sm:$0xff] %vm2256, %v4292
      %4325 = vst.msk [vmem:[%s210 + $0xc0] sm:$0xff] %vm2256, %v4293
      %4326 = vst.msk [vmem:[%s210 + $0xc8] sm:$0xff] %vm2256, %v4294
      %4327 = vst.msk [vmem:[%s210 + $0xd0] sm:$0xff] %vm2256, %v4295
      %4328 = vst.msk [vmem:[%s210 + $0xd8] sm:$0xff] %vm2256, %v4296
      %4329 = vst.msk [vmem:[%s210 + $0xe0] sm:$0xff] %vm2256, %v4297
      %4330 = vst.msk [vmem:[%s210 + $0xe8] sm:$0xff] %vm2256, %v4298
      %4331 = vst.msk [vmem:[%s210 + $0xf0] sm:$0xff] %vm2256, %v4299
      %4332 = vst.msk [vmem:[%s210 + $0xf8] sm:$0xff] %vm2256, %v4300
      %p4333 = scmp.lt.s32.totalorder %s16, 1
      %s4334 = scalar_select %p4333, %s16, 1
      %s4335 = smul.addr %s4334, 32
      %s4336 = smul.addr %s4335, 8
      %s4337 = scalar_lea.vmem %s3, %s4336
      %p4338 = scmp.lt.s32.totalorder %s16, 1
      %s4339 = scalar_select %p4338, %s16, 1
      %s4340 = smul.addr %s4339, 32
      %s4341 = smul.addr %s4340, 8
      %s4342 = scalar_lea.vmem %s4, %s4341
      // Predicated region
      $region33: #{basic_block_forward.1} parent=31 // pred_check
        %p4343 = pneg %p102
      $region34: #{basic_block_forward.1} parent=31 // pred_check_branch
        %4345 = sbr.rel (%p4343) target = $region36
      $region35: #{basic_block_forward.1} parent=31 // pred_region
        _
      $region36: #{basic_block_forward.1} parent=31 // pred_fallthru
        _
      // Predicated region
      $region37: #{basic_block_forward.1} parent=31 // pred_check
        %p4346 = pneg %p128
      $region38: #{basic_block_forward.1} parent=31 // pred_check_branch
        %4348 = sbr.rel (%p4346) target = $region40
      $region39: #{basic_block_forward.1} parent=31 // pred_region
        _
      $region40: #{basic_block_forward.1} parent=31 // pred_fallthru
        _
    $region32: #{basic_block_forward.1} parent=5 // pred_fallthru
      _
    %p4349 = scmp.le.s32.totalorder 2, %s11
    // Predicated region
    $region41: #{basic_block_forward.1} parent=5 // pred_check
      %p4350 = pneg %p4349
    $region42: #{basic_block_forward.1} parent=5 // pred_check_branch
      %4352 = sbr.rel (%p4350) target = $region44
    $region43: #{basic_block_forward.1} parent=5 // pred_region
      %s4353 = ssub.s32 %s11, 2
      // Predicated region
      $region45: #{basic_block_forward.1} parent=43 // pred_check
        %p4354 = pneg %p108
      $region46: #{basic_block_forward.1} parent=43 // pred_check_branch
        %4356 = sbr.rel (%p4354) target = $region48
      $region47: #{basic_block_forward.1} parent=43 // pred_region
        %p4357 = scmp.lt.s32.totalorder %s17, 1
        %s4358 = scalar_select %p4357, %s17, 1
        %s4359 = smul.addr %s4358, 32
        %s4360 = smul.addr %s4359, 8
        %s4361 = scalar_lea.vmem %s3, %s4360
      $region48: #{basic_block_forward.1} parent=43 // pred_fallthru
        _
      // Predicated region
      $region49: #{basic_block_forward.1} parent=43 // pred_check
        %p4362 = pneg %p134
      $region50: #{basic_block_forward.1} parent=43 // pred_check_branch
        %4364 = sbr.rel (%p4362) target = $region52
      $region51: #{basic_block_forward.1} parent=43 // pred_region
        %p4365 = scmp.lt.s32.totalorder %s17, 1
        %s4366 = scalar_select %p4365, %s17, 1
        %s4367 = smul.addr %s4366, 32
        %s4368 = smul.addr %s4367, 8
        %s4369 = scalar_lea.vmem %s4, %s4368
      $region52: #{basic_block_forward.1} parent=43 // pred_fallthru
        _
    $region44: #{basic_block_forward.1} parent=5 // pred_fallthru
      _
  $region6: #{basic_block_forward.1} parent=0 // loop_footer
    %s15 = sadd.s32 1, %s11
  $region7: #{basic_block_forward.1} parent=0 // loop_footer_branch
    %10 = sbr.rel target = $region3
  $region8: #{basic_block_forward.1} parent=0 // loop_exit
    _

</llo_original>
